<compile_context>
chip_gen: v7x
topology: tpu7x:2x2x1
jax: 0.10.0
libtpu: 0.0.40
codegen_flags: <defaults>
</compile_context>

<pallas_src>
import functools

import jax
import jax.numpy as jnp
from jax.experimental import pallas as pl
from jax.experimental.pallas import tpu as pltpu


def _gcn_kernel(layers, head_dim, adj_ref, x_ref, ws_ref, bs_ref, *refs):
    # refs = [wc_0, ..., wc_{layers-2}, wo, bo, out_ref]
    out_ref = refs[-1]
    wo_ref = refs[-3]                      # (D, D)
    bo = refs[-2][...]                     # (1, D)
    wc_refs = refs[:layers - 1]            # each (hd, D), zero-padded corrections

    Bt, N, D = x_ref.shape
    hd = head_dim

    adj = adj_ref[...]                     # (Bt, N, N) f32
    x3 = x_ref[...]                        # (Bt, N, D) f32

    # Row normalizer. Zero-degree rows give Inf/NaN exactly like the PyTorch reference
    # (no guard added, inputs carry self-loops). Exact reciprocal keeps 1e-4 parity.
    denom = jnp.sum(adj, axis=2, keepdims=True)           # (Bt, N, 1)
    recip = 1.0 / denom

    # ((adj + I) @ X) / denom computed as a post-matmul row scale -- batched MXU matmul on
    # the raw 0/1 adjacency + one lane-dense FMA, no eye / adj_hat tiles.
    ahx3 = (jnp.einsum('bij,bjd->bid', adj, x3,
                       preferred_element_type=jnp.float32) + x3) * recip
    ahx = ahx3.reshape(Bt * N, D)
    x2 = x3.reshape(Bt * N, D)
    recip2 = recip.reshape(Bt * N, 1)
    two_recip = 2.0 * recip2                              # the two Linear biases, normalized

    # Stacked pre-activation: one (Bt*N,128) @ (128,128) matmul gives every layer's
    # x-contribution; bias block i is b_i, scaled by 2/denom.
    h = jnp.dot(ahx, ws_ref[...], preferred_element_type=jnp.float32)
    h = h + bs_ref[...] * two_recip                       # (Bt*N, D)

    # Sequential corrections: layer i consumes (adj_hat @ g_j) @ w_i[D+j*hd : D+(j+1)*hd]
    # for j < i. wc_j is zero in column blocks <= j, so adding it never perturbs already
    # finalized lanes and the output stays 128 lanes wide.
    for j in range(layers - 1):
        g_j = jnp.maximum(h[:, j * hd:(j + 1) * hd], 0.0)          # (Bt*N, hd)
        g_j3 = g_j.reshape(Bt, N, hd)
        ahg3 = (jnp.einsum('bij,bjh->bih', adj, g_j3,
                           preferred_element_type=jnp.float32) + g_j3) * recip
        h = h + jnp.dot(ahg3.reshape(Bt * N, hd), wc_refs[j][...],
                        preferred_element_type=jnp.float32)

    # Full-width ReLU == concat(g_0 .. g_{L-1}) along lanes (earlier lanes are untouched by
    # later corrections, so re-applying ReLU reproduces g_j exactly).
    g_stacked = jnp.maximum(h, 0.0)
    # TODO(synk): gcn_drop (Dropout 0.1) omitted -- identity in eval mode.

    # linear_output(concat(g) + x): single lane-dense (Bt*N,128) @ (128,128).
    out2 = jnp.dot(g_stacked + x2, wo_ref[...], preferred_element_type=jnp.float32) + bo
    out_ref[...] = out2.reshape(Bt, N, D)                 # lane-dense store (D = 128)


def _default_block_b(B):
    """grid=1 on single-TC chips (v5e/v6e); 2-way batch split on multi-TC devices (v7x,
    megacore v4/v5p) so the "parallel" batch axis can shard across TensorCores."""
    multi_tc = False
    try:
        kind = jax.devices()[0].device_kind.lower()
        multi_tc = any(tag in kind for tag in ("v7", "7x", "v4", "v5p"))
    except Exception:
        pass
    if multi_tc and B >= 2 and B % 2 == 0:
        return B // 2
    return B


def intra_sentence_gcn(gcn_inputs, adj, layer_weights, layer_biases, wo, bo, *, block_b=None):
    """gcn_inputs: (B, N, D) f32, adj: (B, N, N) f32.
    layer_weights[i]: (D + head_dim*i, head_dim); layer_biases[i]: (1, head_dim).
    wo: (D, D); bo: (1, D). Returns (B, N, D) f32."""
    B, N, D = gcn_inputs.shape
    layers = len(layer_weights)
    hd = layer_biases[0].shape[-1]
    assert layers * hd == D, "layers * head_dim must equal mem_dim"

    # ---- host-side weight restacking (pure layout plumbing, no kernel cost) ----
    # Shared-LHS blocks stacked along the output axis -> (D, D) lane-dense weight.
    ws = jnp.concatenate([w[0:D, :] for w in layer_weights], axis=1).astype(jnp.float32)
    bs = jnp.concatenate(list(layer_biases), axis=1).astype(jnp.float32)       # (1, D)
    # Correction weights: wc_j has column block i = w_i[D+j*hd : D+(j+1)*hd, :] for i > j,
    # zeros elsewhere -> (hd, D), keeps the correction matmul output 128 lanes wide.
    wcs = []
    for j in range(layers - 1):
        blocks = []
        for i in range(layers):
            if i > j:
                blocks.append(layer_weights[i][D + j * hd:D + (j + 1) * hd, :])
            else:
                blocks.append(jnp.zeros((hd, hd), jnp.float32))
        wcs.append(jnp.concatenate(blocks, axis=1).astype(jnp.float32))

    if block_b is None:
        block_b = _default_block_b(B)
    assert B % block_b == 0

    in_specs = [
        pl.BlockSpec((block_b, N, N), lambda b: (b, 0, 0)),   # adj
        pl.BlockSpec((block_b, N, D), lambda b: (b, 0, 0)),   # gcn_inputs
        pl.BlockSpec(ws.shape, lambda b: (0, 0)),             # stacked layer weight
        pl.BlockSpec(bs.shape, lambda b: (0, 0)),             # stacked layer bias
    ]
    args = [adj.astype(jnp.float32), gcn_inputs.astype(jnp.float32), ws, bs]
    for wc in wcs:
        in_specs.append(pl.BlockSpec(wc.shape, lambda b: (0, 0)))
        args.append(wc)
    in_specs.append(pl.BlockSpec(wo.shape, lambda b: (0, 0)))
    in_specs.append(pl.BlockSpec(bo.shape, lambda b: (0, 0)))
    args += [wo.astype(jnp.float32), bo.astype(jnp.float32)]

    out_spec = pl.BlockSpec((block_b, N, D), lambda b: (b, 0, 0))

    return pl.pallas_call(
        functools.partial(_gcn_kernel, layers, hd),
        out_shape=jax.ShapeDtypeStruct((B, N, D), jnp.float32),
        grid_spec=pltpu.PrefetchScalarGridSpec(
            num_scalar_prefetch=0,
            grid=(B // block_b,),
            in_specs=in_specs,
            out_specs=out_spec,
        ),
        compiler_params=pltpu.CompilerParams(
            dimension_semantics=("parallel",),       # independent batch blocks; 2 TCs on v7x
            vmem_limit_bytes=32 * 1024 * 1024,       # <1 MiB resident; safe on v5e/v6e/v7x
        ),
    )(*args)


# ----------------------------- parameter setup (glue) -----------------------------

def _weight_norm_linear(key, in_f, out_f):
    """Deterministic weight_norm(Linear(in_f, out_f), dim=None) effective params."""
    kv, kg, kb = jax.random.split(key, 3)
    v = jax.random.normal(kv, (out_f, in_f), jnp.float32) * 0.1
    g = jax.random.uniform(kg, (), jnp.float32, minval=0.5, maxval=1.5)
    b = jax.random.normal(kb, (out_f,), jnp.float32) * 0.1
    w_eff = g * v / jnp.linalg.norm(v)    # scalar norm over all elements (dim=None)
    return w_eff, b                       # w_eff: (out_f, in_f)


def _reference(gcn_inputs, adj, layer_weights_T, layer_biases, woT, bo):
    """Pure-JAX reference mirroring the PyTorch forward (eval mode)."""
    denom = jnp.sum(adj, axis=2, keepdims=True)
    outputs = gcn_inputs
    cache = [outputs]
    out_list = []
    for w, b in zip(layer_weights_T, layer_biases):
        Ax = jnp.einsum("bij,bjd->bid", adj, outputs)
        AxW = Ax @ w + b
        AxW = AxW + (outputs @ w + b)
        AxW = AxW / denom
        g = jnp.maximum(AxW, 0.0)
        cache.append(g)
        outputs = jnp.concatenate(cache, axis=2)
        out_list.append(g)
    gcn_out = jnp.concatenate(out_list, axis=2) + gcn_inputs
    return gcn_out @ woT + bo


if __name__ == "__main__":
    B = 8            # batch
    N = 40           # node_number in GCN_Module
    mem_dim = 128    # args.hidden_size (lane-dense output width)
    layers = 2       # GCN_Module builds Intra_sentence_GCN(hidden_size, 2, ...)
    head_dim = mem_dim // layers

    key = jax.random.PRNGKey(0)
    k_x, k_adj, k_out, *k_layers = jax.random.split(key, 3 + layers)

    x = jax.random.normal(k_x, (B, N, mem_dim), jnp.float32)
    # 0/1 adjacency with self-loops (keeps row sums > 0, like a sane GCN input)
    adj = (jax.random.uniform(k_adj, (B, N, N)) < 0.3).astype(jnp.float32)
    adj = jnp.minimum(adj + jnp.eye(N, dtype=jnp.float32)[None], 1.0)

    layer_weights, layer_biases = [], []
    for i in range(layers):
        w, b = _weight_norm_linear(k_layers[i], mem_dim + head_dim * i, head_dim)
        layer_weights.append(jnp.asarray(w.T))            # (in, out) for the kernel
        layer_biases.append(b.reshape(1, head_dim))
    wo, bo = _weight_norm_linear(k_out, mem_dim, mem_dim)
    woT = jnp.asarray(wo.T)                               # (D, D)
    bo2 = bo.reshape(1, mem_dim)

    out = intra_sentence_gcn(x, adj, layer_weights, layer_biases, woT, bo2)
    out = jax.block_until_ready(out)

    ref = _reference(x, adj, layer_weights, layer_biases, woT, bo2)
    assert out.shape == (B, N, mem_dim)
    assert jnp.allclose(out, ref, atol=1e-4, rtol=1e-4), "kernel mismatch vs reference"

    print("KERNEL_OK")
</pallas_src>

<mosaic_0001>
module attributes {stable_mosaic.version = 11 : i64} {
  func.func @_gcn_kernel(%arg0: i32, %arg1: memref<8x40x40xf32, #tpu.memory_space<vmem>>, %arg2: memref<8x40x128xf32, #tpu.memory_space<vmem>>, %arg3: memref<128x128xf32, #tpu.memory_space<vmem>>, %arg4: memref<1x128xf32, #tpu.memory_space<vmem>>, %arg5: memref<64x128xf32, #tpu.memory_space<vmem>>, %arg6: memref<128x128xf32, #tpu.memory_space<vmem>>, %arg7: memref<1x128xf32, #tpu.memory_space<vmem>>, %arg8: memref<8x40x128xf32, #tpu.memory_space<vmem>>) attributes {dimension_semantics = [#tpu.dimension_semantics<parallel>], iteration_bounds = array<i64: 1>, scalar_prefetch = 0 : i64, scratch_operands = 0 : i64, tpu.core_type = #tpu.core_type<tc>, window_params = [{transform_indices = @transform_0, window_bounds = array<i64: 8, 40, 40>}, {transform_indices = @transform_1, window_bounds = array<i64: 8, 40, 128>}, {pipeline_mode = #tpu.pipeline_mode<synchronous>, transform_indices = @transform_2, window_bounds = array<i64: 128, 128>}, {pipeline_mode = #tpu.pipeline_mode<synchronous>, transform_indices = @transform_3, window_bounds = array<i64: 1, 128>}, {pipeline_mode = #tpu.pipeline_mode<synchronous>, transform_indices = @transform_4, window_bounds = array<i64: 64, 128>}, {pipeline_mode = #tpu.pipeline_mode<synchronous>, transform_indices = @transform_5, window_bounds = array<i64: 128, 128>}, {pipeline_mode = #tpu.pipeline_mode<synchronous>, transform_indices = @transform_6, window_bounds = array<i64: 1, 128>}, {transform_indices = @transform_7, window_bounds = array<i64: 8, 40, 128>}]} {
    %c0 = arith.constant 0 : index
    %c0_0 = arith.constant 0 : index
    %0 = vector.load %arg7[%c0, %c0_0] : memref<1x128xf32, #tpu.memory_space<vmem>>, vector<1x128xf32>
    %c0_1 = arith.constant 0 : index
    %c0_2 = arith.constant 0 : index
    %c0_3 = arith.constant 0 : index
    %1 = vector.load %arg1[%c0_1, %c0_2, %c0_3] : memref<8x40x40xf32, #tpu.memory_space<vmem>>, vector<8x40x40xf32>
    %c0_4 = arith.constant 0 : index
    %c0_5 = arith.constant 0 : index
    %c0_6 = arith.constant 0 : index
    %2 = vector.load %arg2[%c0_4, %c0_5, %c0_6] : memref<8x40x128xf32, #tpu.memory_space<vmem>>, vector<8x40x128xf32>
    %cst = arith.constant dense<0.000000e+00> : vector<8x40xf32>
    %3 = vector.multi_reduction <add>, %1, %cst [2] : vector<8x40x40xf32> to vector<8x40xf32>
    %4 = vector.shape_cast %3 : vector<8x40xf32> to vector<8x40x1xf32>
    %cst_7 = arith.constant 1.000000e+00 : f32
    %5 = vector.broadcast %cst_7 : f32 to vector<8x40x1xf32>
    %6 = arith.divf %5, %4 : vector<8x40x1xf32>
    "tpu.trace_start"() <{level = 10 : i32, message = "bij,bjd->bid"}> : () -> ()
    %cst_8 = arith.constant dense<0.000000e+00> : vector<8x40x128xf32>
    %7 = tpu.matmul %1, %2, %cst_8 {dimension_numbers = #tpu.dot_dimension_numbers<[2], [1], [1], [2], [0, 0, 0, 1, 1, 2], [0], [0]>} : vector<8x40x40xf32>, vector<8x40x128xf32>, vector<8x40x128xf32> -> vector<8x40x128xf32>
    "tpu.trace_stop"() : () -> ()
    %8 = arith.addf %7, %2 : vector<8x40x128xf32>
    %9 = vector.broadcast %6 : vector<8x40x1xf32> to vector<8x40x128xf32>
    %10 = arith.mulf %8, %9 : vector<8x40x128xf32>
    %11 = vector.shape_cast %10 : vector<8x40x128xf32> to vector<320x128xf32>
    %12 = vector.shape_cast %2 : vector<8x40x128xf32> to vector<320x128xf32>
    %13 = vector.shape_cast %6 : vector<8x40x1xf32> to vector<320x1xf32>
    %cst_9 = arith.constant 2.000000e+00 : f32
    %14 = vector.broadcast %cst_9 : f32 to vector<320x1xf32>
    %15 = arith.mulf %14, %13 : vector<320x1xf32>
    %c0_10 = arith.constant 0 : index
    %c0_11 = arith.constant 0 : index
    %16 = vector.load %arg3[%c0_10, %c0_11] : memref<128x128xf32, #tpu.memory_space<vmem>>, vector<128x128xf32>
    %cst_12 = arith.constant dense<0.000000e+00> : vector<320x128xf32>
    %17 = tpu.matmul %11, %16, %cst_12 {dimension_numbers = #tpu.dot_dimension_numbers<[1], [0], [0], [1], [0, 0, 1, 1], [], []>} : vector<320x128xf32>, vector<128x128xf32>, vector<320x128xf32> -> vector<320x128xf32>
    %c0_13 = arith.constant 0 : index
    %c0_14 = arith.constant 0 : index
    %18 = vector.load %arg4[%c0_13, %c0_14] : memref<1x128xf32, #tpu.memory_space<vmem>>, vector<1x128xf32>
    %19 = vector.broadcast %18 : vector<1x128xf32> to vector<320x128xf32>
    %20 = vector.broadcast %15 : vector<320x1xf32> to vector<320x128xf32>
    %21 = arith.mulf %19, %20 : vector<320x128xf32>
    %22 = arith.addf %17, %21 : vector<320x128xf32>
    %23 = vector.extract_strided_slice %22 {offsets = [0, 0], sizes = [320, 64], strides = [1, 1]} : vector<320x128xf32> to vector<320x64xf32>
    %cst_15 = arith.constant 0.000000e+00 : f32
    %24 = vector.broadcast %cst_15 : f32 to vector<320x64xf32>
    %25 = arith.maximumf %23, %24 : vector<320x64xf32>
    %26 = vector.shape_cast %25 : vector<320x64xf32> to vector<8x40x64xf32>
    "tpu.trace_start"() <{level = 10 : i32, message = "bij,bjh->bih"}> : () -> ()
    %cst_16 = arith.constant dense<0.000000e+00> : vector<8x40x64xf32>
    %27 = tpu.matmul %1, %26, %cst_16 {dimension_numbers = #tpu.dot_dimension_numbers<[2], [1], [1], [2], [0, 0, 0, 1, 1, 2], [0], [0]>} : vector<8x40x40xf32>, vector<8x40x64xf32>, vector<8x40x64xf32> -> vector<8x40x64xf32>
    "tpu.trace_stop"() : () -> ()
    %28 = arith.addf %27, %26 : vector<8x40x64xf32>
    %29 = vector.broadcast %6 : vector<8x40x1xf32> to vector<8x40x64xf32>
    %30 = arith.mulf %28, %29 : vector<8x40x64xf32>
    %31 = vector.shape_cast %30 : vector<8x40x64xf32> to vector<320x64xf32>
    %c0_17 = arith.constant 0 : index
    %c0_18 = arith.constant 0 : index
    %32 = vector.load %arg5[%c0_17, %c0_18] : memref<64x128xf32, #tpu.memory_space<vmem>>, vector<64x128xf32>
    %cst_19 = arith.constant dense<0.000000e+00> : vector<320x128xf32>
    %33 = tpu.matmul %31, %32, %cst_19 {dimension_numbers = #tpu.dot_dimension_numbers<[1], [0], [0], [1], [0, 0, 1, 1], [], []>} : vector<320x64xf32>, vector<64x128xf32>, vector<320x128xf32> -> vector<320x128xf32>
    %34 = arith.addf %22, %33 : vector<320x128xf32>
    %cst_20 = arith.constant 0.000000e+00 : f32
    %35 = vector.broadcast %cst_20 : f32 to vector<320x128xf32>
    %36 = arith.maximumf %34, %35 : vector<320x128xf32>
    %37 = arith.addf %36, %12 : vector<320x128xf32>
    %c0_21 = arith.constant 0 : index
    %c0_22 = arith.constant 0 : index
    %38 = vector.load %arg6[%c0_21, %c0_22] : memref<128x128xf32, #tpu.memory_space<vmem>>, vector<128x128xf32>
    %cst_23 = arith.constant dense<0.000000e+00> : vector<320x128xf32>
    %39 = tpu.matmul %37, %38, %cst_23 {dimension_numbers = #tpu.dot_dimension_numbers<[1], [0], [0], [1], [0, 0, 1, 1], [], []>} : vector<320x128xf32>, vector<128x128xf32>, vector<320x128xf32> -> vector<320x128xf32>
    %40 = vector.broadcast %0 : vector<1x128xf32> to vector<320x128xf32>
    %41 = arith.addf %39, %40 : vector<320x128xf32>
    %42 = vector.shape_cast %41 : vector<320x128xf32> to vector<8x40x128xf32>
    %c0_24 = arith.constant 0 : index
    %c0_25 = arith.constant 0 : index
    %c0_26 = arith.constant 0 : index
    %43 = vector.load %arg8[%c0_24, %c0_25, %c0_26] : memref<8x40x128xf32, #tpu.memory_space<vmem>>, vector<8x40x128xf32>
    tpu.vector_store %arg8[%c0_24, %c0_25, %c0_26], %42 {strides = array<i32>} : memref<8x40x128xf32, #tpu.memory_space<vmem>>, vector<8x40x128xf32>,
    return
  }
  func.func @transform_0(%arg0: i32) -> (i32, i32, i32) {
    %c0_i32 = arith.constant 0 : i32
    %c0_i32_0 = arith.constant 0 : i32
    %c0_i32_1 = arith.constant 0 : i32
    return %arg0, %c0_i32, %c0_i32_0 : i32, i32, i32
  }
  func.func @transform_1(%arg0: i32) -> (i32, i32, i32) {
    %c0_i32 = arith.constant 0 : i32
    %c0_i32_0 = arith.constant 0 : i32
    %c0_i32_1 = arith.constant 0 : i32
    return %arg0, %c0_i32, %c0_i32_0 : i32, i32, i32
  }
  func.func @transform_2(%arg0: i32) -> (i32, i32) {
    %c0_i32 = arith.constant 0 : i32
    %c0_i32_0 = arith.constant 0 : i32
    %c0_i32_1 = arith.constant 0 : i32
    return %c0_i32, %c0_i32_0 : i32, i32
  }
  func.func @transform_3(%arg0: i32) -> (i32, i32) {
    %c0_i32 = arith.constant 0 : i32
    %c0_i32_0 = arith.constant 0 : i32
    %c0_i32_1 = arith.constant 0 : i32
    return %c0_i32, %c0_i32_0 : i32, i32
  }
  func.func @transform_4(%arg0: i32) -> (i32, i32) {
    %c0_i32 = arith.constant 0 : i32
    %c0_i32_0 = arith.constant 0 : i32
    %c0_i32_1 = arith.constant 0 : i32
    return %c0_i32, %c0_i32_0 : i32, i32
  }
  func.func @transform_5(%arg0: i32) -> (i32, i32) {
    %c0_i32 = arith.constant 0 : i32
    %c0_i32_0 = arith.constant 0 : i32
    %c0_i32_1 = arith.constant 0 : i32
    return %c0_i32, %c0_i32_0 : i32, i32
  }
  func.func @transform_6(%arg0: i32) -> (i32, i32) {
    %c0_i32 = arith.constant 0 : i32
    %c0_i32_0 = arith.constant 0 : i32
    %c0_i32_1 = arith.constant 0 : i32
    return %c0_i32, %c0_i32_0 : i32, i32
  }
  func.func @transform_7(%arg0: i32) -> (i32, i32, i32) {
    %c0_i32 = arith.constant 0 : i32
    %c0_i32_0 = arith.constant 0 : i32
    %c0_i32_1 = arith.constant 0 : i32
    return %arg0, %c0_i32, %c0_i32_0 : i32, i32, i32
  }
}

</mosaic_0001>

<llo_original>
// kernel: tpu_custom_call.1
$region0: #{tpu_custom_call.1}
  #allocation0 [shape = 'u32[]', space=smem, size = 0x4, offset = 0x4, fixed_abs, tag = 'smem constant byte address 0x4 - core index']
  #allocation1 [shape = 'u32[144,128]{1,0:T(1,128)}', space=vmem, size = 0x12000, scoped, tag = 'internal scratch']
  %s0 = inlined_call_operand.hbm [shape: f32[8,40,40], index: 0, kind: input, shape index: {}]
  %s1 = inlined_call_operand.hbm [shape: f32[8,40,128], index: 1, kind: input, shape index: {}]
  %s2 = inlined_call_operand.hbm [shape: f32[128,128], index: 2, kind: input, shape index: {}]
  %s3 = inlined_call_operand.vmem [shape: f32[1,128], index: 3, kind: input, shape index: {}]
  %s4 = inlined_call_operand.hbm [shape: f32[64,128], index: 4, kind: input, shape index: {}]
  %s5 = inlined_call_operand.hbm [shape: f32[128,128], index: 5, kind: input, shape index: {}]
  %s6 = inlined_call_operand.vmem [shape: f32[1,128], index: 6, kind: input, shape index: {}]
  %s7 = inlined_call_operand.hbm [shape: f32[8,40,128], index: 7, kind: output, shape index: {}]
  %s8 = sld [smem:[#allocation0]]
  $region58: #{tpu_custom_call.1} parent=0
    _
  %s10 = ssub.s32 1, %s8
  %s11 = scalar_select 0, %s10, %s8
  $region1: #{tpu_custom_call.1} parent=0
    #allocation2 [shape = 'u8[163840]{0}', space=vmem, size = 0x28000, scoped, tag = 'input window, operand 0, single buffered']
    #allocation3 [shape = 's32[1]{0}', space=sflag, size = 0x4, scoped, tag = 'scoped memory for tpu_custom_call.1']
    #allocation4 [shape = 's32[1]{0}', space=sflag, size = 0x4, scoped, tag = 'scoped memory for tpu_custom_call.1']
    #allocation5 [shape = 'u8[163840]{0}', space=vmem, size = 0x28000, scoped, tag = 'input window, operand 1, single buffered']
    #allocation6 [shape = 's32[1]{0}', space=sflag, size = 0x4, scoped, tag = 'scoped memory for tpu_custom_call.1']
    #allocation7 [shape = 'u8[65536]{0}', space=vmem, size = 0x10000, scoped, tag = 'input window, operand 2, single buffered']
    #allocation8 [shape = 'u8[32768]{0}', space=vmem, size = 0x8000, scoped, tag = 'input window, operand 4, single buffered']
    #allocation9 [shape = 's32[1]{0}', space=sflag, size = 0x4, scoped, tag = 'scoped memory for tpu_custom_call.1']
    #allocation10 [shape = 'u8[65536]{0}', space=vmem, size = 0x10000, scoped, tag = 'input window, operand 5, single buffered']
    #allocation11 [shape = 'u8[163840]{0}', space=vmem, size = 0x28000, scoped, tag = 'output window, operand 0, single buffered']
    %12 = vsyncpa [#allocation3], 0
    %13 = vsyncpa [#allocation6], 0
    %14 = vsyncpa [#allocation9], 0
    %15 = vsyncpa [#allocation4], 0
    // Predicated region
    $region2: #{tpu_custom_call.1} parent=1 // pred_check
      _
    $region3: #{tpu_custom_call.1} parent=1 // pred_check_branch
      %17 = sbr.rel (0) target = $region5
    $region4: #{tpu_custom_call.1} parent=1 // pred_region
      %s19 = ssub.s32 5120, 5120
      %20 = vsyncadd [#allocation3], %s19
      %s21 = sshll.u32 [#allocation2], 4
      %s22 = int_to_ptr.vmem [resolvable:$true] %s21
      %27 = dma.hbm_to_vmem [thread:$0]  %s0, 5120, %s22, [#allocation3], 128, 128, 8
    $region5: #{tpu_custom_call.1} parent=1 // pred_fallthru
      _
    // Predicated region
    $region6: #{tpu_custom_call.1} parent=1 // pred_check
      _
    $region7: #{tpu_custom_call.1} parent=1 // pred_check_branch
      %29 = sbr.rel (0) target = $region9
    $region8: #{tpu_custom_call.1} parent=1 // pred_region
      %s31 = ssub.s32 5120, 5120
      %32 = vsyncadd [#allocation6], %s31
      %s33 = sshll.u32 [#allocation5], 4
      %s34 = int_to_ptr.vmem [resolvable:$true] %s33
      %39 = dma.hbm_to_vmem [thread:$0]  %s1, 5120, %s34, [#allocation6], 128, 128, 8
    $region9: #{tpu_custom_call.1} parent=1 // pred_fallthru
      _
    // Predicated region
    $region10: #{tpu_custom_call.1} parent=1 // pred_check
      _
    $region11: #{tpu_custom_call.1} parent=1 // pred_check_branch
      %41 = sbr.rel (0) target = $region13
    $region12: #{tpu_custom_call.1} parent=1 // pred_region
      %s43 = ssub.s32 2048, 2048
      %44 = vsyncadd [#allocation6], %s43
      %s45 = sshll.u32 [#allocation7], 4
      %s46 = int_to_ptr.vmem [resolvable:$true] %s45
      %51 = dma.hbm_to_vmem [thread:$0]  %s2, 2048, %s46, [#allocation6], 128, 128, 8
    $region13: #{tpu_custom_call.1} parent=1 // pred_fallthru
      _
    // Predicated region
    $region14: #{tpu_custom_call.1} parent=1 // pred_check
      _
    $region15: #{tpu_custom_call.1} parent=1 // pred_check_branch
      %53 = sbr.rel (0) target = $region17
    $region16: #{tpu_custom_call.1} parent=1 // pred_region
      _
    $region17: #{tpu_custom_call.1} parent=1 // pred_fallthru
      _
    // Predicated region
    $region18: #{tpu_custom_call.1} parent=1 // pred_check
      _
    $region19: #{tpu_custom_call.1} parent=1 // pred_check_branch
      %55 = sbr.rel (0) target = $region21
    $region20: #{tpu_custom_call.1} parent=1 // pred_region
      %s57 = ssub.s32 1024, 1024
      %58 = vsyncadd [#allocation9], %s57
      %s59 = sshll.u32 [#allocation8], 4
      %s60 = int_to_ptr.vmem [resolvable:$true] %s59
      %65 = dma.hbm_to_vmem [thread:$0]  %s4, 1024, %s60, [#allocation9], 128, 128, 8
    $region21: #{tpu_custom_call.1} parent=1 // pred_fallthru
      _
    // Predicated region
    $region22: #{tpu_custom_call.1} parent=1 // pred_check
      _
    $region23: #{tpu_custom_call.1} parent=1 // pred_check_branch
      %67 = sbr.rel (0) target = $region25
    $region24: #{tpu_custom_call.1} parent=1 // pred_region
      %s69 = ssub.s32 2048, 2048
      %70 = vsyncadd [#allocation9], %s69
      %s71 = sshll.u32 [#allocation10], 4
      %s72 = int_to_ptr.vmem [resolvable:$true] %s71
      %77 = dma.hbm_to_vmem [thread:$0]  %s5, 2048, %s72, [#allocation9], 128, 128, 8
    $region25: #{tpu_custom_call.1} parent=1 // pred_fallthru
      _
    // Predicated region
    $region26: #{tpu_custom_call.1} parent=1 // pred_check
      _
    $region27: #{tpu_custom_call.1} parent=1 // pred_check_branch
      %79 = sbr.rel (0) target = $region29
    $region28: #{tpu_custom_call.1} parent=1 // pred_region
      _
    $region29: #{tpu_custom_call.1} parent=1 // pred_fallthru
      _
    // Predicated region
    $region30: #{tpu_custom_call.1} parent=1 // pred_check
      _
    $region31: #{tpu_custom_call.1} parent=1 // pred_check_branch
      %81 = sbr.rel (0) target = $region33
    $region32: #{tpu_custom_call.1} parent=1 // pred_region
      %82 = dma.done [#allocation3], 5120
    $region33: #{tpu_custom_call.1} parent=1 // pred_fallthru
      _
    // Predicated region
    $region34: #{tpu_custom_call.1} parent=1 // pred_check
      _
    $region35: #{tpu_custom_call.1} parent=1 // pred_check_branch
      %84 = sbr.rel (0) target = $region37
    $region36: #{tpu_custom_call.1} parent=1 // pred_region
      %85 = dma.done [#allocation6], 5120
    $region37: #{tpu_custom_call.1} parent=1 // pred_fallthru
      _
    // Predicated region
    $region38: #{tpu_custom_call.1} parent=1 // pred_check
      _
    $region39: #{tpu_custom_call.1} parent=1 // pred_check_branch
      %87 = sbr.rel (0) target = $region41
    $region40: #{tpu_custom_call.1} parent=1 // pred_region
      %88 = dma.done [#allocation6], 2048
    $region41: #{tpu_custom_call.1} parent=1 // pred_fallthru
      _
    // Predicated region
    $region42: #{tpu_custom_call.1} parent=1 // pred_check
      _
    $region43: #{tpu_custom_call.1} parent=1 // pred_check_branch
      %90 = sbr.rel (0) target = $region45
    $region44: #{tpu_custom_call.1} parent=1 // pred_region
      %91 = dma.done [#allocation9], 1024
    $region45: #{tpu_custom_call.1} parent=1 // pred_fallthru
      _
    // Predicated region
    $region46: #{tpu_custom_call.1} parent=1 // pred_check
      _
    $region47: #{tpu_custom_call.1} parent=1 // pred_check_branch
      %93 = sbr.rel (0) target = $region49
    $region48: #{tpu_custom_call.1} parent=1 // pred_region
      %94 = dma.done [#allocation9], 2048
    $region49: #{tpu_custom_call.1} parent=1 // pred_fallthru
      _
    %v95 = vld [vmem:[%s6] sm:$0x1]
    %v96 = vld [vmem:[#allocation2] sm:$0xff]
    %v97 = vld [vmem:[#allocation2 + $0x8] sm:$0xff]
    %v98 = vld [vmem:[#allocation2 + $0x10] sm:$0xff]
    %v99 = vld [vmem:[#allocation2 + $0x18] sm:$0xff]
    %v100 = vld [vmem:[#allocation2 + $0x20] sm:$0xff]
    %v101 = vld [vmem:[#allocation2 + $0x28] sm:$0xff]
    %v102 = vld [vmem:[#allocation2 + $0x30] sm:$0xff]
    %v103 = vld [vmem:[#allocation2 + $0x38] sm:$0xff]
    %v104 = vld [vmem:[#allocation2 + $0x40] sm:$0xff]
    %v105 = vld [vmem:[#allocation2 + $0x48] sm:$0xff]
    %v106 = vld [vmem:[#allocation2 + $0x50] sm:$0xff]
    %v107 = vld [vmem:[#allocation2 + $0x58] sm:$0xff]
    %v108 = vld [vmem:[#allocation2 + $0x60] sm:$0xff]
    %v109 = vld [vmem:[#allocation2 + $0x68] sm:$0xff]
    %v110 = vld [vmem:[#allocation2 + $0x70] sm:$0xff]
    %v111 = vld [vmem:[#allocation2 + $0x78] sm:$0xff]
    %v112 = vld [vmem:[#allocation2 + $0x80] sm:$0xff]
    %v113 = vld [vmem:[#allocation2 + $0x88] sm:$0xff]
    %v114 = vld [vmem:[#allocation2 + $0x90] sm:$0xff]
    %v115 = vld [vmem:[#allocation2 + $0x98] sm:$0xff]
    %v116 = vld [vmem:[#allocation2 + $0xa0] sm:$0xff]
    %v117 = vld [vmem:[#allocation2 + $0xa8] sm:$0xff]
    %v118 = vld [vmem:[#allocation2 + $0xb0] sm:$0xff]
    %v119 = vld [vmem:[#allocation2 + $0xb8] sm:$0xff]
    %v120 = vld [vmem:[#allocation2 + $0xc0] sm:$0xff]
    %v121 = vld [vmem:[#allocation2 + $0xc8] sm:$0xff]
    %v122 = vld [vmem:[#allocation2 + $0xd0] sm:$0xff]
    %v123 = vld [vmem:[#allocation2 + $0xd8] sm:$0xff]
    %v124 = vld [vmem:[#allocation2 + $0xe0] sm:$0xff]
    %v125 = vld [vmem:[#allocation2 + $0xe8] sm:$0xff]
    %v126 = vld [vmem:[#allocation2 + $0xf0] sm:$0xff]
    %v127 = vld [vmem:[#allocation2 + $0xf8] sm:$0xff]
    %v128 = vld [vmem:[#allocation2 + $0x100] sm:$0xff]
    %v129 = vld [vmem:[#allocation2 + $0x108] sm:$0xff]
    %v130 = vld [vmem:[#allocation2 + $0x110] sm:$0xff]
    %v131 = vld [vmem:[#allocation2 + $0x118] sm:$0xff]
    %v132 = vld [vmem:[#allocation2 + $0x120] sm:$0xff]
    %v133 = vld [vmem:[#allocation2 + $0x128] sm:$0xff]
    %v134 = vld [vmem:[#allocation2 + $0x130] sm:$0xff]
    %v135 = vld [vmem:[#allocation2 + $0x138] sm:$0xff]
    %v136 = vld [vmem:[#allocation5] sm:$0xff]
    %v137 = vld [vmem:[#allocation5 + $0x8] sm:$0xff]
    %v138 = vld [vmem:[#allocation5 + $0x10] sm:$0xff]
    %v139 = vld [vmem:[#allocation5 + $0x18] sm:$0xff]
    %v140 = vld [vmem:[#allocation5 + $0x20] sm:$0xff]
    %v141 = vld [vmem:[#allocation5 + $0x28] sm:$0xff]
    %v142 = vld [vmem:[#allocation5 + $0x30] sm:$0xff]
    %v143 = vld [vmem:[#allocation5 + $0x38] sm:$0xff]
    %v144 = vld [vmem:[#allocation5 + $0x40] sm:$0xff]
    %v145 = vld [vmem:[#allocation5 + $0x48] sm:$0xff]
    %v146 = vld [vmem:[#allocation5 + $0x50] sm:$0xff]
    %v147 = vld [vmem:[#allocation5 + $0x58] sm:$0xff]
    %v148 = vld [vmem:[#allocation5 + $0x60] sm:$0xff]
    %v149 = vld [vmem:[#allocation5 + $0x68] sm:$0xff]
    %v150 = vld [vmem:[#allocation5 + $0x70] sm:$0xff]
    %v151 = vld [vmem:[#allocation5 + $0x78] sm:$0xff]
    %v152 = vld [vmem:[#allocation5 + $0x80] sm:$0xff]
    %v153 = vld [vmem:[#allocation5 + $0x88] sm:$0xff]
    %v154 = vld [vmem:[#allocation5 + $0x90] sm:$0xff]
    %v155 = vld [vmem:[#allocation5 + $0x98] sm:$0xff]
    %v156 = vld [vmem:[#allocation5 + $0xa0] sm:$0xff]
    %v157 = vld [vmem:[#allocation5 + $0xa8] sm:$0xff]
    %v158 = vld [vmem:[#allocation5 + $0xb0] sm:$0xff]
    %v159 = vld [vmem:[#allocation5 + $0xb8] sm:$0xff]
    %v160 = vld [vmem:[#allocation5 + $0xc0] sm:$0xff]
    %v161 = vld [vmem:[#allocation5 + $0xc8] sm:$0xff]
    %v162 = vld [vmem:[#allocation5 + $0xd0] sm:$0xff]
    %v163 = vld [vmem:[#allocation5 + $0xd8] sm:$0xff]
    %v164 = vld [vmem:[#allocation5 + $0xe0] sm:$0xff]
    %v165 = vld [vmem:[#allocation5 + $0xe8] sm:$0xff]
    %v166 = vld [vmem:[#allocation5 + $0xf0] sm:$0xff]
    %v167 = vld [vmem:[#allocation5 + $0xf8] sm:$0xff]
    %v168 = vld [vmem:[#allocation5 + $0x100] sm:$0xff]
    %v169 = vld [vmem:[#allocation5 + $0x108] sm:$0xff]
    %v170 = vld [vmem:[#allocation5 + $0x110] sm:$0xff]
    %v171 = vld [vmem:[#allocation5 + $0x118] sm:$0xff]
    %v172 = vld [vmem:[#allocation5 + $0x120] sm:$0xff]
    %v173 = vld [vmem:[#allocation5 + $0x128] sm:$0xff]
    %v174 = vld [vmem:[#allocation5 + $0x130] sm:$0xff]
    %v175 = vld [vmem:[#allocation5 + $0x138] sm:$0xff]
    %vm176 = vcmask 326656
    %v177 = vsel %vm176, %v96, 0.0
    %178 = vadd.xlane.f32.xlu0 %v177
    %v179 = vpop.xlane.xlu0 %178
    %v180 = vsel %vm176, %v97, 0.0
    %181 = vadd.xlane.f32.xlu0 %v180
    %v182 = vpop.xlane.xlu0 %181
    %v183 = vsel %vm176, %v98, 0.0
    %184 = vadd.xlane.f32.xlu0 %v183
    %v185 = vpop.xlane.xlu0 %184
    %v186 = vsel %vm176, %v99, 0.0
    %187 = vadd.xlane.f32.xlu0 %v186
    %v188 = vpop.xlane.xlu0 %187
    %v189 = vsel %vm176, %v100, 0.0
    %190 = vadd.xlane.f32.xlu0 %v189
    %v191 = vpop.xlane.xlu0 %190
    %v192 = vsel %vm176, %v101, 0.0
    %193 = vadd.xlane.f32.xlu0 %v192
    %v194 = vpop.xlane.xlu0 %193
    %v195 = vsel %vm176, %v102, 0.0
    %196 = vadd.xlane.f32.xlu0 %v195
    %v197 = vpop.xlane.xlu0 %196
    %v198 = vsel %vm176, %v103, 0.0
    %199 = vadd.xlane.f32.xlu0 %v198
    %v200 = vpop.xlane.xlu0 %199
    %v201 = vsel %vm176, %v104, 0.0
    %202 = vadd.xlane.f32.xlu0 %v201
    %v203 = vpop.xlane.xlu0 %202
    %v204 = vsel %vm176, %v105, 0.0
    %205 = vadd.xlane.f32.xlu0 %v204
    %v206 = vpop.xlane.xlu0 %205
    %v207 = vsel %vm176, %v106, 0.0
    %208 = vadd.xlane.f32.xlu0 %v207
    %v209 = vpop.xlane.xlu0 %208
    %v210 = vsel %vm176, %v107, 0.0
    %211 = vadd.xlane.f32.xlu0 %v210
    %v212 = vpop.xlane.xlu0 %211
    %v213 = vsel %vm176, %v108, 0.0
    %214 = vadd.xlane.f32.xlu0 %v213
    %v215 = vpop.xlane.xlu0 %214
    %v216 = vsel %vm176, %v109, 0.0
    %217 = vadd.xlane.f32.xlu0 %v216
    %v218 = vpop.xlane.xlu0 %217
    %v219 = vsel %vm176, %v110, 0.0
    %220 = vadd.xlane.f32.xlu0 %v219
    %v221 = vpop.xlane.xlu0 %220
    %v222 = vsel %vm176, %v111, 0.0
    %223 = vadd.xlane.f32.xlu0 %v222
    %v224 = vpop.xlane.xlu0 %223
    %v225 = vsel %vm176, %v112, 0.0
    %226 = vadd.xlane.f32.xlu0 %v225
    %v227 = vpop.xlane.xlu0 %226
    %v228 = vsel %vm176, %v113, 0.0
    %229 = vadd.xlane.f32.xlu0 %v228
    %v230 = vpop.xlane.xlu0 %229
    %v231 = vsel %vm176, %v114, 0.0
    %232 = vadd.xlane.f32.xlu0 %v231
    %v233 = vpop.xlane.xlu0 %232
    %v234 = vsel %vm176, %v115, 0.0
    %235 = vadd.xlane.f32.xlu0 %v234
    %v236 = vpop.xlane.xlu0 %235
    %v237 = vsel %vm176, %v116, 0.0
    %238 = vadd.xlane.f32.xlu0 %v237
    %v239 = vpop.xlane.xlu0 %238
    %v240 = vsel %vm176, %v117, 0.0
    %241 = vadd.xlane.f32.xlu0 %v240
    %v242 = vpop.xlane.xlu0 %241
    %v243 = vsel %vm176, %v118, 0.0
    %244 = vadd.xlane.f32.xlu0 %v243
    %v245 = vpop.xlane.xlu0 %244
    %v246 = vsel %vm176, %v119, 0.0
    %247 = vadd.xlane.f32.xlu0 %v246
    %v248 = vpop.xlane.xlu0 %247
    %v249 = vsel %vm176, %v120, 0.0
    %250 = vadd.xlane.f32.xlu0 %v249
    %v251 = vpop.xlane.xlu0 %250
    %v252 = vsel %vm176, %v121, 0.0
    %253 = vadd.xlane.f32.xlu0 %v252
    %v254 = vpop.xlane.xlu0 %253
    %v255 = vsel %vm176, %v122, 0.0
    %256 = vadd.xlane.f32.xlu0 %v255
    %v257 = vpop.xlane.xlu0 %256
    %v258 = vsel %vm176, %v123, 0.0
    %259 = vadd.xlane.f32.xlu0 %v258
    %v260 = vpop.xlane.xlu0 %259
    %v261 = vsel %vm176, %v124, 0.0
    %262 = vadd.xlane.f32.xlu0 %v261
    %v263 = vpop.xlane.xlu0 %262
    %v264 = vsel %vm176, %v125, 0.0
    %265 = vadd.xlane.f32.xlu0 %v264
    %v266 = vpop.xlane.xlu0 %265
    %v267 = vsel %vm176, %v126, 0.0
    %268 = vadd.xlane.f32.xlu0 %v267
    %v269 = vpop.xlane.xlu0 %268
    %v270 = vsel %vm176, %v127, 0.0
    %271 = vadd.xlane.f32.xlu0 %v270
    %v272 = vpop.xlane.xlu0 %271
    %v273 = vsel %vm176, %v128, 0.0
    %274 = vadd.xlane.f32.xlu0 %v273
    %v275 = vpop.xlane.xlu0 %274
    %v276 = vsel %vm176, %v129, 0.0
    %277 = vadd.xlane.f32.xlu0 %v276
    %v278 = vpop.xlane.xlu0 %277
    %v279 = vsel %vm176, %v130, 0.0
    %280 = vadd.xlane.f32.xlu0 %v279
    %v281 = vpop.xlane.xlu0 %280
    %v282 = vsel %vm176, %v131, 0.0
    %283 = vadd.xlane.f32.xlu0 %v282
    %v284 = vpop.xlane.xlu0 %283
    %v285 = vsel %vm176, %v132, 0.0
    %286 = vadd.xlane.f32.xlu0 %v285
    %v287 = vpop.xlane.xlu0 %286
    %v288 = vsel %vm176, %v133, 0.0
    %289 = vadd.xlane.f32.xlu0 %v288
    %v290 = vpop.xlane.xlu0 %289
    %v291 = vsel %vm176, %v134, 0.0
    %292 = vadd.xlane.f32.xlu0 %v291
    %v293 = vpop.xlane.xlu0 %292
    %v294 = vsel %vm176, %v135, 0.0
    %295 = vadd.xlane.f32.xlu0 %v294
    %v296 = vpop.xlane.xlu0 %295
    %v297 = vrcp.pop %v179
    %v298 = vmul.f32 1.0, %v297
    %v299 = vrcp.pop %v182
    %v300 = vmul.f32 1.0, %v299
    %v301 = vrcp.pop %v185
    %v302 = vmul.f32 1.0, %v301
    %v303 = vrcp.pop %v188
    %v304 = vmul.f32 1.0, %v303
    %v305 = vrcp.pop %v191
    %v306 = vmul.f32 1.0, %v305
    %v307 = vrcp.pop %v194
    %v308 = vmul.f32 1.0, %v307
    %v309 = vrcp.pop %v197
    %v310 = vmul.f32 1.0, %v309
    %v311 = vrcp.pop %v200
    %v312 = vmul.f32 1.0, %v311
    %v313 = vrcp.pop %v203
    %v314 = vmul.f32 1.0, %v313
    %v315 = vrcp.pop %v206
    %v316 = vmul.f32 1.0, %v315
    %v317 = vrcp.pop %v209
    %v318 = vmul.f32 1.0, %v317
    %v319 = vrcp.pop %v212
    %v320 = vmul.f32 1.0, %v319
    %v321 = vrcp.pop %v215
    %v322 = vmul.f32 1.0, %v321
    %v323 = vrcp.pop %v218
    %v324 = vmul.f32 1.0, %v323
    %v325 = vrcp.pop %v221
    %v326 = vmul.f32 1.0, %v325
    %v327 = vrcp.pop %v224
    %v328 = vmul.f32 1.0, %v327
    %v329 = vrcp.pop %v227
    %v330 = vmul.f32 1.0, %v329
    %v331 = vrcp.pop %v230
    %v332 = vmul.f32 1.0, %v331
    %v333 = vrcp.pop %v233
    %v334 = vmul.f32 1.0, %v333
    %v335 = vrcp.pop %v236
    %v336 = vmul.f32 1.0, %v335
    %v337 = vrcp.pop %v239
    %v338 = vmul.f32 1.0, %v337
    %v339 = vrcp.pop %v242
    %v340 = vmul.f32 1.0, %v339
    %v341 = vrcp.pop %v245
    %v342 = vmul.f32 1.0, %v341
    %v343 = vrcp.pop %v248
    %v344 = vmul.f32 1.0, %v343
    %v345 = vrcp.pop %v251
    %v346 = vmul.f32 1.0, %v345
    %v347 = vrcp.pop %v254
    %v348 = vmul.f32 1.0, %v347
    %v349 = vrcp.pop %v257
    %v350 = vmul.f32 1.0, %v349
    %v351 = vrcp.pop %v260
    %v352 = vmul.f32 1.0, %v351
    %v353 = vrcp.pop %v263
    %v354 = vmul.f32 1.0, %v353
    %v355 = vrcp.pop %v266
    %v356 = vmul.f32 1.0, %v355
    %v357 = vrcp.pop %v269
    %v358 = vmul.f32 1.0, %v357
    %v359 = vrcp.pop %v272
    %v360 = vmul.f32 1.0, %v359
    %v361 = vrcp.pop %v275
    %v362 = vmul.f32 1.0, %v361
    %v363 = vrcp.pop %v278
    %v364 = vmul.f32 1.0, %v363
    %v365 = vrcp.pop %v281
    %v366 = vmul.f32 1.0, %v365
    %v367 = vrcp.pop %v284
    %v368 = vmul.f32 1.0, %v367
    %v369 = vrcp.pop %v287
    %v370 = vmul.f32 1.0, %v369
    %v371 = vrcp.pop %v290
    %v372 = vmul.f32 1.0, %v371
    %v373 = vrcp.pop %v293
    %v374 = vmul.f32 1.0, %v373
    %v375 = vrcp.pop %v296
    %v376 = vmul.f32 1.0, %v375
    %v378 = vsel %vm176, %v96, 0
    %v381 = vsel %vm176, %v97, 0
    %v384 = vsel %vm176, %v98, 0
    %v387 = vsel %vm176, %v99, 0
    %v390 = vsel %vm176, %v100, 0
    %392 = vmatprep.subr.mxu0 0.0
    %393 = vmatpush1.msra.mxu0 %v136
    %394 = vmatprep.subr.mxu0 0.0
    %395 = vmatpush1.msra.mxu0 %v137
    %396 = vmatprep.subr.mxu0 0.0
    %397 = vmatpush1.msra.mxu0 %v138
    %398 = vmatprep.subr.mxu0 0.0
    %399 = vmatpush1.msra.mxu0 %v139
    %400 = vmatprep.subr.mxu0 0.0
    %401 = vmatpush1.msra.mxu0 %v140
    %402 = vmatprep.subr.mxu0 0.0
    %403 = vmatpush1.msra.mxu0 0.0
    %404 = vmatprep.subr.mxu0 0.0
    %405 = vmatpush1.msra.mxu0 0.0
    %406 = vmatprep.subr.mxu0 0.0
    %407 = vmatpush1.msra.mxu0 0.0
    %408 = vmatprep.subr.mxu0 0.0
    %409 = vmatpush1.msra.mxu0 0.0
    %410 = vmatprep.subr.mxu0 0.0
    %411 = vmatpush1.msra.mxu0 0.0
    %412 = vmatprep.subr.mxu0 0.0
    %413 = vmatpush1.msra.mxu0 0.0
    %414 = vmatprep.subr.mxu0 0.0
    %415 = vmatpush1.msra.mxu0 0.0
    %416 = vmatprep.subr.mxu0 0.0
    %417 = vmatpush1.msra.mxu0 0.0
    %418 = vmatprep.subr.mxu0 0.0
    %419 = vmatpush1.msra.mxu0 0.0
    %420 = vmatprep.subr.mxu0 0.0
    %421 = vmatpush1.msra.mxu0 0.0
    %422 = vmatprep.subr.mxu0 0.0
    %423 = vmatpush1.msra.mxu0 0.0
    %424 = vmatprep.subr.mxu0 0.0
    %425 = vmatpush1.msra.mxu0 0.0
    %426 = vmatprep.subr.mxu0 0.0
    %427 = vmatpush1.msra.mxu0 0.0
    %428 = vmatprep.subr.mxu0 0.0
    %429 = vmatpush1.msra.mxu0 0.0
    %430 = vmatprep.subr.mxu0 0.0
    %431 = vmatpush1.msra.mxu0 0.0
    %432 = vmatprep.subr.mxu0 0.0
    %433 = vmatpush1.msra.mxu0 0.0
    %434 = vmatprep.subr.mxu0 0.0
    %435 = vmatpush1.msra.mxu0 0.0
    %436 = vmatprep.subr.mxu0 0.0
    %437 = vmatpush1.msra.mxu0 0.0
    %438 = vmatprep.subr.mxu0 0.0
    %439 = vmatpush1.msra.mxu0 0.0
    %440 = vmatprep.subr.mxu0 0.0
    %441 = vmatpush1.msra.mxu0 0.0
    %442 = vmatprep.subr.mxu0 0.0
    %443 = vmatpush1.msra.mxu0 0.0
    %444 = vmatprep.subr.mxu0 0.0
    %445 = vmatpush1.msra.mxu0 0.0
    %446 = vmatprep.subr.mxu0 0.0
    %447 = vmatpush1.msra.mxu0 0.0
    %448 = vmatprep.subr.mxu0 0.0
    %449 = vmatpush1.msra.mxu0 0.0
    %450 = vmatprep.subr.mxu0 0.0
    %451 = vmatpush1.msra.mxu0 0.0
    %452 = vmatprep.subr.mxu0 0.0
    %453 = vmatpush1.msra.mxu0 0.0
    %454 = vmatprep.subr.mxu0 0.0
    %455 = vmatpush1.msra.mxu0 0.0
    %456 = vmatprep.mubr.f32.mxu0 0.0
    %457 = vmatmul.mubr.f32.gmra.mrb[0].mxu0 %v378
    %v458 = vpop.f32.mrb[0].mxu0
    %v459 = vadd.f32 %v136, %v458
    %v460 = vpop.f32.mrb[0].mxu0
    %461 = vmatprep.mubr.f32.mxu0 0.0
    %462 = vmatmul.mubr.f32.gmra.mrb[0].mxu0 %v381
    %v463 = vpop.f32.mrb[0].mxu0
    %v464 = vadd.f32 %v137, %v463
    %v465 = vpop.f32.mrb[0].mxu0
    %466 = vmatprep.mubr.f32.mxu0 0.0
    %467 = vmatmul.mubr.f32.gmra.mrb[0].mxu0 %v384
    %v468 = vpop.f32.mrb[0].mxu0
    %v469 = vadd.f32 %v138, %v468
    %v470 = vpop.f32.mrb[0].mxu0
    %471 = vmatprep.mubr.f32.mxu0 0.0
    %472 = vmatmul.mubr.f32.gmra.mrb[0].mxu0 %v387
    %v473 = vpop.f32.mrb[0].mxu0
    %v474 = vadd.f32 %v139, %v473
    %v475 = vpop.f32.mrb[0].mxu0
    %476 = vmatprep.mubr.f32.mxu0 0.0
    %477 = vmatmul.mubr.f32.gmra.mrb[0].mxu0 %v390
    %v478 = vpop.f32.mrb[0].mxu0
    %v479 = vadd.f32 %v140, %v478
    %v480 = vpop.f32.mrb[0].mxu0
    %481 = vdwg.mxu0
    %v483 = vsel %vm176, %v101, 0
    %v486 = vsel %vm176, %v102, 0
    %v489 = vsel %vm176, %v103, 0
    %v492 = vsel %vm176, %v104, 0
    %v495 = vsel %vm176, %v105, 0
    %497 = vmatprep.subr.mxu0 0.0
    %498 = vmatpush1.msra.mxu0 %v141
    %499 = vmatprep.subr.mxu0 0.0
    %500 = vmatpush1.msra.mxu0 %v142
    %501 = vmatprep.subr.mxu0 0.0
    %502 = vmatpush1.msra.mxu0 %v143
    %503 = vmatprep.subr.mxu0 0.0
    %504 = vmatpush1.msra.mxu0 %v144
    %505 = vmatprep.subr.mxu0 0.0
    %506 = vmatpush1.msra.mxu0 %v145
    %507 = vmatprep.subr.mxu0 0.0
    %508 = vmatpush1.msra.mxu0 0.0
    %509 = vmatprep.subr.mxu0 0.0
    %510 = vmatpush1.msra.mxu0 0.0
    %511 = vmatprep.subr.mxu0 0.0
    %512 = vmatpush1.msra.mxu0 0.0
    %513 = vmatprep.subr.mxu0 0.0
    %514 = vmatpush1.msra.mxu0 0.0
    %515 = vmatprep.subr.mxu0 0.0
    %516 = vmatpush1.msra.mxu0 0.0
    %517 = vmatprep.subr.mxu0 0.0
    %518 = vmatpush1.msra.mxu0 0.0
    %519 = vmatprep.subr.mxu0 0.0
    %520 = vmatpush1.msra.mxu0 0.0
    %521 = vmatprep.subr.mxu0 0.0
    %522 = vmatpush1.msra.mxu0 0.0
    %523 = vmatprep.subr.mxu0 0.0
    %524 = vmatpush1.msra.mxu0 0.0
    %525 = vmatprep.subr.mxu0 0.0
    %526 = vmatpush1.msra.mxu0 0.0
    %527 = vmatprep.subr.mxu0 0.0
    %528 = vmatpush1.msra.mxu0 0.0
    %529 = vmatprep.subr.mxu0 0.0
    %530 = vmatpush1.msra.mxu0 0.0
    %531 = vmatprep.subr.mxu0 0.0
    %532 = vmatpush1.msra.mxu0 0.0
    %533 = vmatprep.subr.mxu0 0.0
    %534 = vmatpush1.msra.mxu0 0.0
    %535 = vmatprep.subr.mxu0 0.0
    %536 = vmatpush1.msra.mxu0 0.0
    %537 = vmatprep.subr.mxu0 0.0
    %538 = vmatpush1.msra.mxu0 0.0
    %539 = vmatprep.subr.mxu0 0.0
    %540 = vmatpush1.msra.mxu0 0.0
    %541 = vmatprep.subr.mxu0 0.0
    %542 = vmatpush1.msra.mxu0 0.0
    %543 = vmatprep.subr.mxu0 0.0
    %544 = vmatpush1.msra.mxu0 0.0
    %545 = vmatprep.subr.mxu0 0.0
    %546 = vmatpush1.msra.mxu0 0.0
    %547 = vmatprep.subr.mxu0 0.0
    %548 = vmatpush1.msra.mxu0 0.0
    %549 = vmatprep.subr.mxu0 0.0
    %550 = vmatpush1.msra.mxu0 0.0
    %551 = vmatprep.subr.mxu0 0.0
    %552 = vmatpush1.msra.mxu0 0.0
    %553 = vmatprep.subr.mxu0 0.0
    %554 = vmatpush1.msra.mxu0 0.0
    %555 = vmatprep.subr.mxu0 0.0
    %556 = vmatpush1.msra.mxu0 0.0
    %557 = vmatprep.subr.mxu0 0.0
    %558 = vmatpush1.msra.mxu0 0.0
    %559 = vmatprep.subr.mxu0 0.0
    %560 = vmatpush1.msra.mxu0 0.0
    %561 = vmatprep.mubr.f32.mxu0 0.0
    %562 = vmatmul.mubr.f32.gmra.mrb[0].mxu0 %v483
    %v563 = vpop.f32.mrb[0].mxu0
    %v564 = vadd.f32 %v141, %v563
    %v565 = vpop.f32.mrb[0].mxu0
    %566 = vmatprep.mubr.f32.mxu0 0.0
    %567 = vmatmul.mubr.f32.gmra.mrb[0].mxu0 %v486
    %v568 = vpop.f32.mrb[0].mxu0
    %v569 = vadd.f32 %v142, %v568
    %v570 = vpop.f32.mrb[0].mxu0
    %571 = vmatprep.mubr.f32.mxu0 0.0
    %572 = vmatmul.mubr.f32.gmra.mrb[0].mxu0 %v489
    %v573 = vpop.f32.mrb[0].mxu0
    %v574 = vadd.f32 %v143, %v573
    %v575 = vpop.f32.mrb[0].mxu0
    %576 = vmatprep.mubr.f32.mxu0 0.0
    %577 = vmatmul.mubr.f32.gmra.mrb[0].mxu0 %v492
    %v578 = vpop.f32.mrb[0].mxu0
    %v579 = vadd.f32 %v144, %v578
    %v580 = vpop.f32.mrb[0].mxu0
    %581 = vmatprep.mubr.f32.mxu0 0.0
    %582 = vmatmul.mubr.f32.gmra.mrb[0].mxu0 %v495
    %v583 = vpop.f32.mrb[0].mxu0
    %v584 = vadd.f32 %v145, %v583
    %v585 = vpop.f32.mrb[0].mxu0
    %586 = vdwg.mxu0
    %v588 = vsel %vm176, %v106, 0
    %v591 = vsel %vm176, %v107, 0
    %v594 = vsel %vm176, %v108, 0
    %v597 = vsel %vm176, %v109, 0
    %v600 = vsel %vm176, %v110, 0
    %602 = vmatprep.subr.mxu0 0.0
    %603 = vmatpush1.msra.mxu0 %v146
    %604 = vmatprep.subr.mxu0 0.0
    %605 = vmatpush1.msra.mxu0 %v147
    %606 = vmatprep.subr.mxu0 0.0
    %607 = vmatpush1.msra.mxu0 %v148
    %608 = vmatprep.subr.mxu0 0.0
    %609 = vmatpush1.msra.mxu0 %v149
    %610 = vmatprep.subr.mxu0 0.0
    %611 = vmatpush1.msra.mxu0 %v150
    %612 = vmatprep.subr.mxu0 0.0
    %613 = vmatpush1.msra.mxu0 0.0
    %614 = vmatprep.subr.mxu0 0.0
    %615 = vmatpush1.msra.mxu0 0.0
    %616 = vmatprep.subr.mxu0 0.0
    %617 = vmatpush1.msra.mxu0 0.0
    %618 = vmatprep.subr.mxu0 0.0
    %619 = vmatpush1.msra.mxu0 0.0
    %620 = vmatprep.subr.mxu0 0.0
    %621 = vmatpush1.msra.mxu0 0.0
    %622 = vmatprep.subr.mxu0 0.0
    %623 = vmatpush1.msra.mxu0 0.0
    %624 = vmatprep.subr.mxu0 0.0
    %625 = vmatpush1.msra.mxu0 0.0
    %626 = vmatprep.subr.mxu0 0.0
    %627 = vmatpush1.msra.mxu0 0.0
    %628 = vmatprep.subr.mxu0 0.0
    %629 = vmatpush1.msra.mxu0 0.0
    %630 = vmatprep.subr.mxu0 0.0
    %631 = vmatpush1.msra.mxu0 0.0
    %632 = vmatprep.subr.mxu0 0.0
    %633 = vmatpush1.msra.mxu0 0.0
    %634 = vmatprep.subr.mxu0 0.0
    %635 = vmatpush1.msra.mxu0 0.0
    %636 = vmatprep.subr.mxu0 0.0
    %637 = vmatpush1.msra.mxu0 0.0
    %638 = vmatprep.subr.mxu0 0.0
    %639 = vmatpush1.msra.mxu0 0.0
    %640 = vmatprep.subr.mxu0 0.0
    %641 = vmatpush1.msra.mxu0 0.0
    %642 = vmatprep.subr.mxu0 0.0
    %643 = vmatpush1.msra.mxu0 0.0
    %644 = vmatprep.subr.mxu0 0.0
    %645 = vmatpush1.msra.mxu0 0.0
    %646 = vmatprep.subr.mxu0 0.0
    %647 = vmatpush1.msra.mxu0 0.0
    %648 = vmatprep.subr.mxu0 0.0
    %649 = vmatpush1.msra.mxu0 0.0
    %650 = vmatprep.subr.mxu0 0.0
    %651 = vmatpush1.msra.mxu0 0.0
    %652 = vmatprep.subr.mxu0 0.0
    %653 = vmatpush1.msra.mxu0 0.0
    %654 = vmatprep.subr.mxu0 0.0
    %655 = vmatpush1.msra.mxu0 0.0
    %656 = vmatprep.subr.mxu0 0.0
    %657 = vmatpush1.msra.mxu0 0.0
    %658 = vmatprep.subr.mxu0 0.0
    %659 = vmatpush1.msra.mxu0 0.0
    %660 = vmatprep.subr.mxu0 0.0
    %661 = vmatpush1.msra.mxu0 0.0
    %662 = vmatprep.subr.mxu0 0.0
    %663 = vmatpush1.msra.mxu0 0.0
    %664 = vmatprep.subr.mxu0 0.0
    %665 = vmatpush1.msra.mxu0 0.0
    %666 = vmatprep.mubr.f32.mxu0 0.0
    %667 = vmatmul.mubr.f32.gmra.mrb[0].mxu0 %v588
    %v668 = vpop.f32.mrb[0].mxu0
    %v669 = vadd.f32 %v146, %v668
    %v670 = vpop.f32.mrb[0].mxu0
    %671 = vmatprep.mubr.f32.mxu0 0.0
    %672 = vmatmul.mubr.f32.gmra.mrb[0].mxu0 %v591
    %v673 = vpop.f32.mrb[0].mxu0
    %v674 = vadd.f32 %v147, %v673
    %v675 = vpop.f32.mrb[0].mxu0
    %676 = vmatprep.mubr.f32.mxu0 0.0
    %677 = vmatmul.mubr.f32.gmra.mrb[0].mxu0 %v594
    %v678 = vpop.f32.mrb[0].mxu0
    %v679 = vadd.f32 %v148, %v678
    %v680 = vpop.f32.mrb[0].mxu0
    %681 = vmatprep.mubr.f32.mxu0 0.0
    %682 = vmatmul.mubr.f32.gmra.mrb[0].mxu0 %v597
    %v683 = vpop.f32.mrb[0].mxu0
    %v684 = vadd.f32 %v149, %v683
    %v685 = vpop.f32.mrb[0].mxu0
    %686 = vmatprep.mubr.f32.mxu0 0.0
    %687 = vmatmul.mubr.f32.gmra.mrb[0].mxu0 %v600
    %v688 = vpop.f32.mrb[0].mxu0
    %v689 = vadd.f32 %v150, %v688
    %v690 = vpop.f32.mrb[0].mxu0
    %691 = vdwg.mxu0
    %v693 = vsel %vm176, %v111, 0
    %v696 = vsel %vm176, %v112, 0
    %v699 = vsel %vm176, %v113, 0
    %v702 = vsel %vm176, %v114, 0
    %v705 = vsel %vm176, %v115, 0
    %707 = vmatprep.subr.mxu0 0.0
    %708 = vmatpush1.msra.mxu0 %v151
    %709 = vmatprep.subr.mxu0 0.0
    %710 = vmatpush1.msra.mxu0 %v152
    %711 = vmatprep.subr.mxu0 0.0
    %712 = vmatpush1.msra.mxu0 %v153
    %713 = vmatprep.subr.mxu0 0.0
    %714 = vmatpush1.msra.mxu0 %v154
    %715 = vmatprep.subr.mxu0 0.0
    %716 = vmatpush1.msra.mxu0 %v155
    %717 = vmatprep.subr.mxu0 0.0
    %718 = vmatpush1.msra.mxu0 0.0
    %719 = vmatprep.subr.mxu0 0.0
    %720 = vmatpush1.msra.mxu0 0.0
    %721 = vmatprep.subr.mxu0 0.0
    %722 = vmatpush1.msra.mxu0 0.0
    %723 = vmatprep.subr.mxu0 0.0
    %724 = vmatpush1.msra.mxu0 0.0
    %725 = vmatprep.subr.mxu0 0.0
    %726 = vmatpush1.msra.mxu0 0.0
    %727 = vmatprep.subr.mxu0 0.0
    %728 = vmatpush1.msra.mxu0 0.0
    %729 = vmatprep.subr.mxu0 0.0
    %730 = vmatpush1.msra.mxu0 0.0
    %731 = vmatprep.subr.mxu0 0.0
    %732 = vmatpush1.msra.mxu0 0.0
    %733 = vmatprep.subr.mxu0 0.0
    %734 = vmatpush1.msra.mxu0 0.0
    %735 = vmatprep.subr.mxu0 0.0
    %736 = vmatpush1.msra.mxu0 0.0
    %737 = vmatprep.subr.mxu0 0.0
    %738 = vmatpush1.msra.mxu0 0.0
    %739 = vmatprep.subr.mxu0 0.0
    %740 = vmatpush1.msra.mxu0 0.0
    %741 = vmatprep.subr.mxu0 0.0
    %742 = vmatpush1.msra.mxu0 0.0
    %743 = vmatprep.subr.mxu0 0.0
    %744 = vmatpush1.msra.mxu0 0.0
    %745 = vmatprep.subr.mxu0 0.0
    %746 = vmatpush1.msra.mxu0 0.0
    %747 = vmatprep.subr.mxu0 0.0
    %748 = vmatpush1.msra.mxu0 0.0
    %749 = vmatprep.subr.mxu0 0.0
    %750 = vmatpush1.msra.mxu0 0.0
    %751 = vmatprep.subr.mxu0 0.0
    %752 = vmatpush1.msra.mxu0 0.0
    %753 = vmatprep.subr.mxu0 0.0
    %754 = vmatpush1.msra.mxu0 0.0
    %755 = vmatprep.subr.mxu0 0.0
    %756 = vmatpush1.msra.mxu0 0.0
    %757 = vmatprep.subr.mxu0 0.0
    %758 = vmatpush1.msra.mxu0 0.0
    %759 = vmatprep.subr.mxu0 0.0
    %760 = vmatpush1.msra.mxu0 0.0
    %761 = vmatprep.subr.mxu0 0.0
    %762 = vmatpush1.msra.mxu0 0.0
    %763 = vmatprep.subr.mxu0 0.0
    %764 = vmatpush1.msra.mxu0 0.0
    %765 = vmatprep.subr.mxu0 0.0
    %766 = vmatpush1.msra.mxu0 0.0
    %767 = vmatprep.subr.mxu0 0.0
    %768 = vmatpush1.msra.mxu0 0.0
    %769 = vmatprep.subr.mxu0 0.0
    %770 = vmatpush1.msra.mxu0 0.0
    %771 = vmatprep.mubr.f32.mxu0 0.0
    %772 = vmatmul.mubr.f32.gmra.mrb[0].mxu0 %v693
    %v773 = vpop.f32.mrb[0].mxu0
    %v774 = vadd.f32 %v151, %v773
    %v775 = vpop.f32.mrb[0].mxu0
    %776 = vmatprep.mubr.f32.mxu0 0.0
    %777 = vmatmul.mubr.f32.gmra.mrb[0].mxu0 %v696
    %v778 = vpop.f32.mrb[0].mxu0
    %v779 = vadd.f32 %v152, %v778
    %v780 = vpop.f32.mrb[0].mxu0
    %781 = vmatprep.mubr.f32.mxu0 0.0
    %782 = vmatmul.mubr.f32.gmra.mrb[0].mxu0 %v699
    %v783 = vpop.f32.mrb[0].mxu0
    %v784 = vadd.f32 %v153, %v783
    %v785 = vpop.f32.mrb[0].mxu0
    %786 = vmatprep.mubr.f32.mxu0 0.0
    %787 = vmatmul.mubr.f32.gmra.mrb[0].mxu0 %v702
    %v788 = vpop.f32.mrb[0].mxu0
    %v789 = vadd.f32 %v154, %v788
    %v790 = vpop.f32.mrb[0].mxu0
    %791 = vmatprep.mubr.f32.mxu0 0.0
    %792 = vmatmul.mubr.f32.gmra.mrb[0].mxu0 %v705
    %v793 = vpop.f32.mrb[0].mxu0
    %v794 = vadd.f32 %v155, %v793
    %v795 = vpop.f32.mrb[0].mxu0
    %796 = vdwg.mxu0
    %v798 = vsel %vm176, %v116, 0
    %v801 = vsel %vm176, %v117, 0
    %v804 = vsel %vm176, %v118, 0
    %v807 = vsel %vm176, %v119, 0
    %v810 = vsel %vm176, %v120, 0
    %812 = vmatprep.subr.mxu0 0.0
    %813 = vmatpush1.msra.mxu0 %v156
    %814 = vmatprep.subr.mxu0 0.0
    %815 = vmatpush1.msra.mxu0 %v157
    %816 = vmatprep.subr.mxu0 0.0
    %817 = vmatpush1.msra.mxu0 %v158
    %818 = vmatprep.subr.mxu0 0.0
    %819 = vmatpush1.msra.mxu0 %v159
    %820 = vmatprep.subr.mxu0 0.0
    %821 = vmatpush1.msra.mxu0 %v160
    %822 = vmatprep.subr.mxu0 0.0
    %823 = vmatpush1.msra.mxu0 0.0
    %824 = vmatprep.subr.mxu0 0.0
    %825 = vmatpush1.msra.mxu0 0.0
    %826 = vmatprep.subr.mxu0 0.0
    %827 = vmatpush1.msra.mxu0 0.0
    %828 = vmatprep.subr.mxu0 0.0
    %829 = vmatpush1.msra.mxu0 0.0
    %830 = vmatprep.subr.mxu0 0.0
    %831 = vmatpush1.msra.mxu0 0.0
    %832 = vmatprep.subr.mxu0 0.0
    %833 = vmatpush1.msra.mxu0 0.0
    %834 = vmatprep.subr.mxu0 0.0
    %835 = vmatpush1.msra.mxu0 0.0
    %836 = vmatprep.subr.mxu0 0.0
    %837 = vmatpush1.msra.mxu0 0.0
    %838 = vmatprep.subr.mxu0 0.0
    %839 = vmatpush1.msra.mxu0 0.0
    %840 = vmatprep.subr.mxu0 0.0
    %841 = vmatpush1.msra.mxu0 0.0
    %842 = vmatprep.subr.mxu0 0.0
    %843 = vmatpush1.msra.mxu0 0.0
    %844 = vmatprep.subr.mxu0 0.0
    %845 = vmatpush1.msra.mxu0 0.0
    %846 = vmatprep.subr.mxu0 0.0
    %847 = vmatpush1.msra.mxu0 0.0
    %848 = vmatprep.subr.mxu0 0.0
    %849 = vmatpush1.msra.mxu0 0.0
    %850 = vmatprep.subr.mxu0 0.0
    %851 = vmatpush1.msra.mxu0 0.0
    %852 = vmatprep.subr.mxu0 0.0
    %853 = vmatpush1.msra.mxu0 0.0
    %854 = vmatprep.subr.mxu0 0.0
    %855 = vmatpush1.msra.mxu0 0.0
    %856 = vmatprep.subr.mxu0 0.0
    %857 = vmatpush1.msra.mxu0 0.0
    %858 = vmatprep.subr.mxu0 0.0
    %859 = vmatpush1.msra.mxu0 0.0
    %860 = vmatprep.subr.mxu0 0.0
    %861 = vmatpush1.msra.mxu0 0.0
    %862 = vmatprep.subr.mxu0 0.0
    %863 = vmatpush1.msra.mxu0 0.0
    %864 = vmatprep.subr.mxu0 0.0
    %865 = vmatpush1.msra.mxu0 0.0
    %866 = vmatprep.subr.mxu0 0.0
    %867 = vmatpush1.msra.mxu0 0.0
    %868 = vmatprep.subr.mxu0 0.0
    %869 = vmatpush1.msra.mxu0 0.0
    %870 = vmatprep.subr.mxu0 0.0
    %871 = vmatpush1.msra.mxu0 0.0
    %872 = vmatprep.subr.mxu0 0.0
    %873 = vmatpush1.msra.mxu0 0.0
    %874 = vmatprep.subr.mxu0 0.0
    %875 = vmatpush1.msra.mxu0 0.0
    %876 = vmatprep.mubr.f32.mxu0 0.0
    %877 = vmatmul.mubr.f32.gmra.mrb[0].mxu0 %v798
    %v878 = vpop.f32.mrb[0].mxu0
    %v879 = vadd.f32 %v156, %v878
    %v880 = vpop.f32.mrb[0].mxu0
    %881 = vmatprep.mubr.f32.mxu0 0.0
    %882 = vmatmul.mubr.f32.gmra.mrb[0].mxu0 %v801
    %v883 = vpop.f32.mrb[0].mxu0
    %v884 = vadd.f32 %v157, %v883
    %v885 = vpop.f32.mrb[0].mxu0
    %886 = vmatprep.mubr.f32.mxu0 0.0
    %887 = vmatmul.mubr.f32.gmra.mrb[0].mxu0 %v804
    %v888 = vpop.f32.mrb[0].mxu0
    %v889 = vadd.f32 %v158, %v888
    %v890 = vpop.f32.mrb[0].mxu0
    %891 = vmatprep.mubr.f32.mxu0 0.0
    %892 = vmatmul.mubr.f32.gmra.mrb[0].mxu0 %v807
    %v893 = vpop.f32.mrb[0].mxu0
    %v894 = vadd.f32 %v159, %v893
    %v895 = vpop.f32.mrb[0].mxu0
    %896 = vmatprep.mubr.f32.mxu0 0.0
    %897 = vmatmul.mubr.f32.gmra.mrb[0].mxu0 %v810
    %v898 = vpop.f32.mrb[0].mxu0
    %v899 = vadd.f32 %v160, %v898
    %v900 = vpop.f32.mrb[0].mxu0
    %901 = vdwg.mxu0
    %v903 = vsel %vm176, %v121, 0
    %v906 = vsel %vm176, %v122, 0
    %v909 = vsel %vm176, %v123, 0
    %v912 = vsel %vm176, %v124, 0
    %v915 = vsel %vm176, %v125, 0
    %917 = vmatprep.subr.mxu0 0.0
    %918 = vmatpush1.msra.mxu0 %v161
    %919 = vmatprep.subr.mxu0 0.0
    %920 = vmatpush1.msra.mxu0 %v162
    %921 = vmatprep.subr.mxu0 0.0
    %922 = vmatpush1.msra.mxu0 %v163
    %923 = vmatprep.subr.mxu0 0.0
    %924 = vmatpush1.msra.mxu0 %v164
    %925 = vmatprep.subr.mxu0 0.0
    %926 = vmatpush1.msra.mxu0 %v165
    %927 = vmatprep.subr.mxu0 0.0
    %928 = vmatpush1.msra.mxu0 0.0
    %929 = vmatprep.subr.mxu0 0.0
    %930 = vmatpush1.msra.mxu0 0.0
    %931 = vmatprep.subr.mxu0 0.0
    %932 = vmatpush1.msra.mxu0 0.0
    %933 = vmatprep.subr.mxu0 0.0
    %934 = vmatpush1.msra.mxu0 0.0
    %935 = vmatprep.subr.mxu0 0.0
    %936 = vmatpush1.msra.mxu0 0.0
    %937 = vmatprep.subr.mxu0 0.0
    %938 = vmatpush1.msra.mxu0 0.0
    %939 = vmatprep.subr.mxu0 0.0
    %940 = vmatpush1.msra.mxu0 0.0
    %941 = vmatprep.subr.mxu0 0.0
    %942 = vmatpush1.msra.mxu0 0.0
    %943 = vmatprep.subr.mxu0 0.0
    %944 = vmatpush1.msra.mxu0 0.0
    %945 = vmatprep.subr.mxu0 0.0
    %946 = vmatpush1.msra.mxu0 0.0
    %947 = vmatprep.subr.mxu0 0.0
    %948 = vmatpush1.msra.mxu0 0.0
    %949 = vmatprep.subr.mxu0 0.0
    %950 = vmatpush1.msra.mxu0 0.0
    %951 = vmatprep.subr.mxu0 0.0
    %952 = vmatpush1.msra.mxu0 0.0
    %953 = vmatprep.subr.mxu0 0.0
    %954 = vmatpush1.msra.mxu0 0.0
    %955 = vmatprep.subr.mxu0 0.0
    %956 = vmatpush1.msra.mxu0 0.0
    %957 = vmatprep.subr.mxu0 0.0
    %958 = vmatpush1.msra.mxu0 0.0
    %959 = vmatprep.subr.mxu0 0.0
    %960 = vmatpush1.msra.mxu0 0.0
    %961 = vmatprep.subr.mxu0 0.0
    %962 = vmatpush1.msra.mxu0 0.0
    %963 = vmatprep.subr.mxu0 0.0
    %964 = vmatpush1.msra.mxu0 0.0
    %965 = vmatprep.subr.mxu0 0.0
    %966 = vmatpush1.msra.mxu0 0.0
    %967 = vmatprep.subr.mxu0 0.0
    %968 = vmatpush1.msra.mxu0 0.0
    %969 = vmatprep.subr.mxu0 0.0
    %970 = vmatpush1.msra.mxu0 0.0
    %971 = vmatprep.subr.mxu0 0.0
    %972 = vmatpush1.msra.mxu0 0.0
    %973 = vmatprep.subr.mxu0 0.0
    %974 = vmatpush1.msra.mxu0 0.0
    %975 = vmatprep.subr.mxu0 0.0
    %976 = vmatpush1.msra.mxu0 0.0
    %977 = vmatprep.subr.mxu0 0.0
    %978 = vmatpush1.msra.mxu0 0.0
    %979 = vmatprep.subr.mxu0 0.0
    %980 = vmatpush1.msra.mxu0 0.0
    %981 = vmatprep.mubr.f32.mxu0 0.0
    %982 = vmatmul.mubr.f32.gmra.mrb[0].mxu0 %v903
    %v983 = vpop.f32.mrb[0].mxu0
    %v984 = vadd.f32 %v161, %v983
    %v985 = vpop.f32.mrb[0].mxu0
    %986 = vmatprep.mubr.f32.mxu0 0.0
    %987 = vmatmul.mubr.f32.gmra.mrb[0].mxu0 %v906
    %v988 = vpop.f32.mrb[0].mxu0
    %v989 = vadd.f32 %v162, %v988
    %v990 = vpop.f32.mrb[0].mxu0
    %991 = vmatprep.mubr.f32.mxu0 0.0
    %992 = vmatmul.mubr.f32.gmra.mrb[0].mxu0 %v909
    %v993 = vpop.f32.mrb[0].mxu0
    %v994 = vadd.f32 %v163, %v993
    %v995 = vpop.f32.mrb[0].mxu0
    %996 = vmatprep.mubr.f32.mxu0 0.0
    %997 = vmatmul.mubr.f32.gmra.mrb[0].mxu0 %v912
    %v998 = vpop.f32.mrb[0].mxu0
    %v999 = vadd.f32 %v164, %v998
    %v1000 = vpop.f32.mrb[0].mxu0
    %1001 = vmatprep.mubr.f32.mxu0 0.0
    %1002 = vmatmul.mubr.f32.gmra.mrb[0].mxu0 %v915
    %v1003 = vpop.f32.mrb[0].mxu0
    %v1004 = vadd.f32 %v165, %v1003
    %v1005 = vpop.f32.mrb[0].mxu0
    %1006 = vdwg.mxu0
    %v1008 = vsel %vm176, %v126, 0
    %v1011 = vsel %vm176, %v127, 0
    %v1014 = vsel %vm176, %v128, 0
    %v1017 = vsel %vm176, %v129, 0
    %v1020 = vsel %vm176, %v130, 0
    %1022 = vmatprep.subr.mxu0 0.0
    %1023 = vmatpush1.msra.mxu0 %v166
    %1024 = vmatprep.subr.mxu0 0.0
    %1025 = vmatpush1.msra.mxu0 %v167
    %1026 = vmatprep.subr.mxu0 0.0
    %1027 = vmatpush1.msra.mxu0 %v168
    %1028 = vmatprep.subr.mxu0 0.0
    %1029 = vmatpush1.msra.mxu0 %v169
    %1030 = vmatprep.subr.mxu0 0.0
    %1031 = vmatpush1.msra.mxu0 %v170
    %1032 = vmatprep.subr.mxu0 0.0
    %1033 = vmatpush1.msra.mxu0 0.0
    %1034 = vmatprep.subr.mxu0 0.0
    %1035 = vmatpush1.msra.mxu0 0.0
    %1036 = vmatprep.subr.mxu0 0.0
    %1037 = vmatpush1.msra.mxu0 0.0
    %1038 = vmatprep.subr.mxu0 0.0
    %1039 = vmatpush1.msra.mxu0 0.0
    %1040 = vmatprep.subr.mxu0 0.0
    %1041 = vmatpush1.msra.mxu0 0.0
    %1042 = vmatprep.subr.mxu0 0.0
    %1043 = vmatpush1.msra.mxu0 0.0
    %1044 = vmatprep.subr.mxu0 0.0
    %1045 = vmatpush1.msra.mxu0 0.0
    %1046 = vmatprep.subr.mxu0 0.0
    %1047 = vmatpush1.msra.mxu0 0.0
    %1048 = vmatprep.subr.mxu0 0.0
    %1049 = vmatpush1.msra.mxu0 0.0
    %1050 = vmatprep.subr.mxu0 0.0
    %1051 = vmatpush1.msra.mxu0 0.0
    %1052 = vmatprep.subr.mxu0 0.0
    %1053 = vmatpush1.msra.mxu0 0.0
    %1054 = vmatprep.subr.mxu0 0.0
    %1055 = vmatpush1.msra.mxu0 0.0
    %1056 = vmatprep.subr.mxu0 0.0
    %1057 = vmatpush1.msra.mxu0 0.0
    %1058 = vmatprep.subr.mxu0 0.0
    %1059 = vmatpush1.msra.mxu0 0.0
    %1060 = vmatprep.subr.mxu0 0.0
    %1061 = vmatpush1.msra.mxu0 0.0
    %1062 = vmatprep.subr.mxu0 0.0
    %1063 = vmatpush1.msra.mxu0 0.0
    %1064 = vmatprep.subr.mxu0 0.0
    %1065 = vmatpush1.msra.mxu0 0.0
    %1066 = vmatprep.subr.mxu0 0.0
    %1067 = vmatpush1.msra.mxu0 0.0
    %1068 = vmatprep.subr.mxu0 0.0
    %1069 = vmatpush1.msra.mxu0 0.0
    %1070 = vmatprep.subr.mxu0 0.0
    %1071 = vmatpush1.msra.mxu0 0.0
    %1072 = vmatprep.subr.mxu0 0.0
    %1073 = vmatpush1.msra.mxu0 0.0
    %1074 = vmatprep.subr.mxu0 0.0
    %1075 = vmatpush1.msra.mxu0 0.0
    %1076 = vmatprep.subr.mxu0 0.0
    %1077 = vmatpush1.msra.mxu0 0.0
    %1078 = vmatprep.subr.mxu0 0.0
    %1079 = vmatpush1.msra.mxu0 0.0
    %1080 = vmatprep.subr.mxu0 0.0
    %1081 = vmatpush1.msra.mxu0 0.0
    %1082 = vmatprep.subr.mxu0 0.0
    %1083 = vmatpush1.msra.mxu0 0.0
    %1084 = vmatprep.subr.mxu0 0.0
    %1085 = vmatpush1.msra.mxu0 0.0
    %1086 = vmatprep.mubr.f32.mxu0 0.0
    %1087 = vmatmul.mubr.f32.gmra.mrb[0].mxu0 %v1008
    %v1088 = vpop.f32.mrb[0].mxu0
    %v1089 = vadd.f32 %v166, %v1088
    %v1090 = vpop.f32.mrb[0].mxu0
    %1091 = vmatprep.mubr.f32.mxu0 0.0
    %1092 = vmatmul.mubr.f32.gmra.mrb[0].mxu0 %v1011
    %v1093 = vpop.f32.mrb[0].mxu0
    %v1094 = vadd.f32 %v167, %v1093
    %v1095 = vpop.f32.mrb[0].mxu0
    %1096 = vmatprep.mubr.f32.mxu0 0.0
    %1097 = vmatmul.mubr.f32.gmra.mrb[0].mxu0 %v1014
    %v1098 = vpop.f32.mrb[0].mxu0
    %v1099 = vadd.f32 %v168, %v1098
    %v1100 = vpop.f32.mrb[0].mxu0
    %1101 = vmatprep.mubr.f32.mxu0 0.0
    %1102 = vmatmul.mubr.f32.gmra.mrb[0].mxu0 %v1017
    %v1103 = vpop.f32.mrb[0].mxu0
    %v1104 = vadd.f32 %v169, %v1103
    %v1105 = vpop.f32.mrb[0].mxu0
    %1106 = vmatprep.mubr.f32.mxu0 0.0
    %1107 = vmatmul.mubr.f32.gmra.mrb[0].mxu0 %v1020
    %v1108 = vpop.f32.mrb[0].mxu0
    %v1109 = vadd.f32 %v170, %v1108
    %v1110 = vpop.f32.mrb[0].mxu0
    %1111 = vdwg.mxu0
    %v1113 = vsel %vm176, %v131, 0
    %v1116 = vsel %vm176, %v132, 0
    %v1119 = vsel %vm176, %v133, 0
    %v1122 = vsel %vm176, %v134, 0
    %v1125 = vsel %vm176, %v135, 0
    %1127 = vmatprep.subr.mxu0 0.0
    %1128 = vmatpush1.msra.mxu0 %v171
    %1129 = vmatprep.subr.mxu0 0.0
    %1130 = vmatpush1.msra.mxu0 %v172
    %1131 = vmatprep.subr.mxu0 0.0
    %1132 = vmatpush1.msra.mxu0 %v173
    %1133 = vmatprep.subr.mxu0 0.0
    %1134 = vmatpush1.msra.mxu0 %v174
    %1135 = vmatprep.subr.mxu0 0.0
    %1136 = vmatpush1.msra.mxu0 %v175
    %1137 = vmatprep.subr.mxu0 0.0
    %1138 = vmatpush1.msra.mxu0 0.0
    %1139 = vmatprep.subr.mxu0 0.0
    %1140 = vmatpush1.msra.mxu0 0.0
    %1141 = vmatprep.subr.mxu0 0.0
    %1142 = vmatpush1.msra.mxu0 0.0
    %1143 = vmatprep.subr.mxu0 0.0
    %1144 = vmatpush1.msra.mxu0 0.0
    %1145 = vmatprep.subr.mxu0 0.0
    %1146 = vmatpush1.msra.mxu0 0.0
    %1147 = vmatprep.subr.mxu0 0.0
    %1148 = vmatpush1.msra.mxu0 0.0
    %1149 = vmatprep.subr.mxu0 0.0
    %1150 = vmatpush1.msra.mxu0 0.0
    %1151 = vmatprep.subr.mxu0 0.0
    %1152 = vmatpush1.msra.mxu0 0.0
    %1153 = vmatprep.subr.mxu0 0.0
    %1154 = vmatpush1.msra.mxu0 0.0
    %1155 = vmatprep.subr.mxu0 0.0
    %1156 = vmatpush1.msra.mxu0 0.0
    %1157 = vmatprep.subr.mxu0 0.0
    %1158 = vmatpush1.msra.mxu0 0.0
    %1159 = vmatprep.subr.mxu0 0.0
    %1160 = vmatpush1.msra.mxu0 0.0
    %1161 = vmatprep.subr.mxu0 0.0
    %1162 = vmatpush1.msra.mxu0 0.0
    %1163 = vmatprep.subr.mxu0 0.0
    %1164 = vmatpush1.msra.mxu0 0.0
    %1165 = vmatprep.subr.mxu0 0.0
    %1166 = vmatpush1.msra.mxu0 0.0
    %1167 = vmatprep.subr.mxu0 0.0
    %1168 = vmatpush1.msra.mxu0 0.0
    %1169 = vmatprep.subr.mxu0 0.0
    %1170 = vmatpush1.msra.mxu0 0.0
    %1171 = vmatprep.subr.mxu0 0.0
    %1172 = vmatpush1.msra.mxu0 0.0
    %1173 = vmatprep.subr.mxu0 0.0
    %1174 = vmatpush1.msra.mxu0 0.0
    %1175 = vmatprep.subr.mxu0 0.0
    %1176 = vmatpush1.msra.mxu0 0.0
    %1177 = vmatprep.subr.mxu0 0.0
    %1178 = vmatpush1.msra.mxu0 0.0
    %1179 = vmatprep.subr.mxu0 0.0
    %1180 = vmatpush1.msra.mxu0 0.0
    %1181 = vmatprep.subr.mxu0 0.0
    %1182 = vmatpush1.msra.mxu0 0.0
    %1183 = vmatprep.subr.mxu0 0.0
    %1184 = vmatpush1.msra.mxu0 0.0
    %1185 = vmatprep.subr.mxu0 0.0
    %1186 = vmatpush1.msra.mxu0 0.0
    %1187 = vmatprep.subr.mxu0 0.0
    %1188 = vmatpush1.msra.mxu0 0.0
    %1189 = vmatprep.subr.mxu0 0.0
    %1190 = vmatpush1.msra.mxu0 0.0
    %1191 = vmatprep.mubr.f32.mxu0 0.0
    %1192 = vmatmul.mubr.f32.gmra.mrb[0].mxu0 %v1113
    %v1193 = vpop.f32.mrb[0].mxu0
    %v1194 = vadd.f32 %v171, %v1193
    %v1195 = vpop.f32.mrb[0].mxu0
    %1196 = vmatprep.mubr.f32.mxu0 0.0
    %1197 = vmatmul.mubr.f32.gmra.mrb[0].mxu0 %v1116
    %v1198 = vpop.f32.mrb[0].mxu0
    %v1199 = vadd.f32 %v172, %v1198
    %v1200 = vpop.f32.mrb[0].mxu0
    %1201 = vmatprep.mubr.f32.mxu0 0.0
    %1202 = vmatmul.mubr.f32.gmra.mrb[0].mxu0 %v1119
    %v1203 = vpop.f32.mrb[0].mxu0
    %v1204 = vadd.f32 %v173, %v1203
    %v1205 = vpop.f32.mrb[0].mxu0
    %1206 = vmatprep.mubr.f32.mxu0 0.0
    %1207 = vmatmul.mubr.f32.gmra.mrb[0].mxu0 %v1122
    %v1208 = vpop.f32.mrb[0].mxu0
    %v1209 = vadd.f32 %v174, %v1208
    %v1210 = vpop.f32.mrb[0].mxu0
    %1211 = vmatprep.mubr.f32.mxu0 0.0
    %1212 = vmatmul.mubr.f32.gmra.mrb[0].mxu0 %v1125
    %v1213 = vpop.f32.mrb[0].mxu0
    %v1214 = vadd.f32 %v175, %v1213
    %v1215 = vpop.f32.mrb[0].mxu0
    %1216 = vdwg.mxu0
    %v1217 = vmul.f32 %v459, %v298
    %v1218 = vmul.f32 %v464, %v300
    %v1219 = vmul.f32 %v469, %v302
    %v1220 = vmul.f32 %v474, %v304
    %v1221 = vmul.f32 %v479, %v306
    %v1222 = vmul.f32 %v564, %v308
    %v1223 = vmul.f32 %v569, %v310
    %v1224 = vmul.f32 %v574, %v312
    %v1225 = vmul.f32 %v579, %v314
    %v1226 = vmul.f32 %v584, %v316
    %v1227 = vmul.f32 %v669, %v318
    %v1228 = vmul.f32 %v674, %v320
    %v1229 = vmul.f32 %v679, %v322
    %v1230 = vmul.f32 %v684, %v324
    %v1231 = vmul.f32 %v689, %v326
    %v1232 = vmul.f32 %v774, %v328
    %v1233 = vmul.f32 %v779, %v330
    %v1234 = vmul.f32 %v784, %v332
    %v1235 = vmul.f32 %v789, %v334
    %v1236 = vmul.f32 %v794, %v336
    %v1237 = vmul.f32 %v879, %v338
    %v1238 = vmul.f32 %v884, %v340
    %v1239 = vmul.f32 %v889, %v342
    %v1240 = vmul.f32 %v894, %v344
    %v1241 = vmul.f32 %v899, %v346
    %v1242 = vmul.f32 %v984, %v348
    %v1243 = vmul.f32 %v989, %v350
    %v1244 = vmul.f32 %v994, %v352
    %v1245 = vmul.f32 %v999, %v354
    %v1246 = vmul.f32 %v1004, %v356
    %v1247 = vmul.f32 %v1089, %v358
    %v1248 = vmul.f32 %v1094, %v360
    %v1249 = vmul.f32 %v1099, %v362
    %v1250 = vmul.f32 %v1104, %v364
    %v1251 = vmul.f32 %v1109, %v366
    %v1252 = vmul.f32 %v1194, %v368
    %v1253 = vmul.f32 %v1199, %v370
    %v1254 = vmul.f32 %v1204, %v372
    %v1255 = vmul.f32 %v1209, %v374
    %v1256 = vmul.f32 %v1214, %v376
    %v1257 = vmul.f32 %v298, 2.0
    %v1258 = vmul.f32 %v300, 2.0
    %v1259 = vmul.f32 %v302, 2.0
    %v1260 = vmul.f32 %v304, 2.0
    %v1261 = vmul.f32 %v306, 2.0
    %v1262 = vmul.f32 %v308, 2.0
    %v1263 = vmul.f32 %v310, 2.0
    %v1264 = vmul.f32 %v312, 2.0
    %v1265 = vmul.f32 %v314, 2.0
    %v1266 = vmul.f32 %v316, 2.0
    %v1267 = vmul.f32 %v318, 2.0
    %v1268 = vmul.f32 %v320, 2.0
    %v1269 = vmul.f32 %v322, 2.0
    %v1270 = vmul.f32 %v324, 2.0
    %v1271 = vmul.f32 %v326, 2.0
    %v1272 = vmul.f32 %v328, 2.0
    %v1273 = vmul.f32 %v330, 2.0
    %v1274 = vmul.f32 %v332, 2.0
    %v1275 = vmul.f32 %v334, 2.0
    %v1276 = vmul.f32 %v336, 2.0
    %v1277 = vmul.f32 %v338, 2.0
    %v1278 = vmul.f32 %v340, 2.0
    %v1279 = vmul.f32 %v342, 2.0
    %v1280 = vmul.f32 %v344, 2.0
    %v1281 = vmul.f32 %v346, 2.0
    %v1282 = vmul.f32 %v348, 2.0
    %v1283 = vmul.f32 %v350, 2.0
    %v1284 = vmul.f32 %v352, 2.0
    %v1285 = vmul.f32 %v354, 2.0
    %v1286 = vmul.f32 %v356, 2.0
    %v1287 = vmul.f32 %v358, 2.0
    %v1288 = vmul.f32 %v360, 2.0
    %v1289 = vmul.f32 %v362, 2.0
    %v1290 = vmul.f32 %v364, 2.0
    %v1291 = vmul.f32 %v366, 2.0
    %v1292 = vmul.f32 %v368, 2.0
    %v1293 = vmul.f32 %v370, 2.0
    %v1294 = vmul.f32 %v372, 2.0
    %v1295 = vmul.f32 %v374, 2.0
    %v1296 = vmul.f32 %v376, 2.0
    %v1297 = vld [vmem:[#allocation7] sm:$0xff]
    %v1298 = vld [vmem:[#allocation7 + $0x8] sm:$0xff]
    %v1299 = vld [vmem:[#allocation7 + $0x10] sm:$0xff]
    %v1300 = vld [vmem:[#allocation7 + $0x18] sm:$0xff]
    %v1301 = vld [vmem:[#allocation7 + $0x20] sm:$0xff]
    %v1302 = vld [vmem:[#allocation7 + $0x28] sm:$0xff]
    %v1303 = vld [vmem:[#allocation7 + $0x30] sm:$0xff]
    %v1304 = vld [vmem:[#allocation7 + $0x38] sm:$0xff]
    %v1305 = vld [vmem:[#allocation7 + $0x40] sm:$0xff]
    %v1306 = vld [vmem:[#allocation7 + $0x48] sm:$0xff]
    %v1307 = vld [vmem:[#allocation7 + $0x50] sm:$0xff]
    %v1308 = vld [vmem:[#allocation7 + $0x58] sm:$0xff]
    %v1309 = vld [vmem:[#allocation7 + $0x60] sm:$0xff]
    %v1310 = vld [vmem:[#allocation7 + $0x68] sm:$0xff]
    %v1311 = vld [vmem:[#allocation7 + $0x70] sm:$0xff]
    %v1312 = vld [vmem:[#allocation7 + $0x78] sm:$0xff]
    %v1313 = vld [vmem:[%s3] sm:$0x1]
    %v1315 = vlaneseq
    %v1316 = vshrl.u32 %v1315, 7
    %v1317 = vsub.s32 0, %v1316
    %v1318 = vrot.slane %v1313, %v1317
    %v1320 = vmul.f32 %v1318, %v1257
    %v1321 = vmul.f32 %v1318, %v1258
    %v1322 = vmul.f32 %v1318, %v1259
    %v1323 = vmul.f32 %v1318, %v1260
    %v1324 = vmul.f32 %v1318, %v1261
    %v1325 = vmul.f32 %v1318, %v1262
    %v1326 = vmul.f32 %v1318, %v1263
    %v1327 = vmul.f32 %v1318, %v1264
    %v1328 = vmul.f32 %v1318, %v1265
    %v1329 = vmul.f32 %v1318, %v1266
    %v1330 = vmul.f32 %v1318, %v1267
    %v1331 = vmul.f32 %v1318, %v1268
    %v1332 = vmul.f32 %v1318, %v1269
    %v1333 = vmul.f32 %v1318, %v1270
    %v1334 = vmul.f32 %v1318, %v1271
    %v1335 = vmul.f32 %v1318, %v1272
    %v1336 = vmul.f32 %v1318, %v1273
    %v1337 = vmul.f32 %v1318, %v1274
    %v1338 = vmul.f32 %v1318, %v1275
    %v1339 = vmul.f32 %v1318, %v1276
    %v1340 = vmul.f32 %v1318, %v1277
    %v1341 = vmul.f32 %v1318, %v1278
    %v1342 = vmul.f32 %v1318, %v1279
    %v1343 = vmul.f32 %v1318, %v1280
    %v1344 = vmul.f32 %v1318, %v1281
    %v1345 = vmul.f32 %v1318, %v1282
    %v1346 = vmul.f32 %v1318, %v1283
    %v1347 = vmul.f32 %v1318, %v1284
    %v1348 = vmul.f32 %v1318, %v1285
    %v1349 = vmul.f32 %v1318, %v1286
    %v1350 = vmul.f32 %v1318, %v1287
    %v1351 = vmul.f32 %v1318, %v1288
    %v1352 = vmul.f32 %v1318, %v1289
    %v1353 = vmul.f32 %v1318, %v1290
    %v1354 = vmul.f32 %v1318, %v1291
    %v1355 = vmul.f32 %v1318, %v1292
    %v1356 = vmul.f32 %v1318, %v1293
    %v1357 = vmul.f32 %v1318, %v1294
    %v1358 = vmul.f32 %v1318, %v1295
    %v1359 = vmul.f32 %v1318, %v1296
    %1360 = vmatprep.subr.mxu0 0.0
    %1361 = vmatpush1.msra.mxu0 %v1297
    %1362 = vmatprep.subr.mxu0 0.0
    %1363 = vmatpush1.msra.mxu0 %v1298
    %1364 = vmatprep.subr.mxu0 0.0
    %1365 = vmatpush1.msra.mxu0 %v1299
    %1366 = vmatprep.subr.mxu0 0.0
    %1367 = vmatpush1.msra.mxu0 %v1300
    %1368 = vmatprep.subr.mxu0 0.0
    %1369 = vmatpush1.msra.mxu0 %v1301
    %1370 = vmatprep.subr.mxu0 0.0
    %1371 = vmatpush1.msra.mxu0 %v1302
    %1372 = vmatprep.subr.mxu0 0.0
    %1373 = vmatpush1.msra.mxu0 %v1303
    %1374 = vmatprep.subr.mxu0 0.0
    %1375 = vmatpush1.msra.mxu0 %v1304
    %1376 = vmatprep.subr.mxu0 0.0
    %1377 = vmatpush1.msra.mxu0 %v1305
    %1378 = vmatprep.subr.mxu0 0.0
    %1379 = vmatpush1.msra.mxu0 %v1306
    %1380 = vmatprep.subr.mxu0 0.0
    %1381 = vmatpush1.msra.mxu0 %v1307
    %1382 = vmatprep.subr.mxu0 0.0
    %1383 = vmatpush1.msra.mxu0 %v1308
    %1384 = vmatprep.subr.mxu0 0.0
    %1385 = vmatpush1.msra.mxu0 %v1309
    %1386 = vmatprep.subr.mxu0 0.0
    %1387 = vmatpush1.msra.mxu0 %v1310
    %1388 = vmatprep.subr.mxu0 0.0
    %1389 = vmatpush1.msra.mxu0 %v1311
    %1390 = vmatprep.subr.mxu0 0.0
    %1391 = vmatpush1.msra.mxu0 %v1312
    %1392 = vmatprep.subr.mxu0 0.0
    %1393 = vmatpush1.msra.mxu0 0.0
    %1394 = vmatprep.subr.mxu0 0.0
    %1395 = vmatpush1.msra.mxu0 0.0
    %1396 = vmatprep.subr.mxu0 0.0
    %1397 = vmatpush1.msra.mxu0 0.0
    %1398 = vmatprep.subr.mxu0 0.0
    %1399 = vmatpush1.msra.mxu0 0.0
    %1400 = vmatprep.subr.mxu0 0.0
    %1401 = vmatpush1.msra.mxu0 0.0
    %1402 = vmatprep.subr.mxu0 0.0
    %1403 = vmatpush1.msra.mxu0 0.0
    %1404 = vmatprep.subr.mxu0 0.0
    %1405 = vmatpush1.msra.mxu0 0.0
    %1406 = vmatprep.subr.mxu0 0.0
    %1407 = vmatpush1.msra.mxu0 0.0
    %1408 = vmatprep.subr.mxu0 0.0
    %1409 = vmatpush1.msra.mxu0 0.0
    %1410 = vmatprep.subr.mxu0 0.0
    %1411 = vmatpush1.msra.mxu0 0.0
    %1412 = vmatprep.subr.mxu0 0.0
    %1413 = vmatpush1.msra.mxu0 0.0
    %1414 = vmatprep.subr.mxu0 0.0
    %1415 = vmatpush1.msra.mxu0 0.0
    %1416 = vmatprep.subr.mxu0 0.0
    %1417 = vmatpush1.msra.mxu0 0.0
    %1418 = vmatprep.subr.mxu0 0.0
    %1419 = vmatpush1.msra.mxu0 0.0
    %1420 = vmatprep.subr.mxu0 0.0
    %1421 = vmatpush1.msra.mxu0 0.0
    %1422 = vmatprep.subr.mxu0 0.0
    %1423 = vmatpush1.msra.mxu0 0.0
    %1424 = vmatprep.mubr.f32.mxu0 0.0
    %1425 = vmatmul.mubr.f32.gmra.mrb[0].mxu0 %v1217
    %v1426 = vpop.f32.mrb[0].mxu0
    %v1427 = vadd.f32 %v1320, %v1426
    %v1428 = vpop.f32.mrb[0].mxu0
    %1429 = vmatprep.mubr.f32.mxu0 0.0
    %1430 = vmatmul.mubr.f32.gmra.mrb[0].mxu0 %v1218
    %v1431 = vpop.f32.mrb[0].mxu0
    %v1432 = vadd.f32 %v1321, %v1431
    %v1433 = vpop.f32.mrb[0].mxu0
    %1434 = vmatprep.mubr.f32.mxu0 0.0
    %1435 = vmatmul.mubr.f32.gmra.mrb[0].mxu0 %v1219
    %v1436 = vpop.f32.mrb[0].mxu0
    %v1437 = vadd.f32 %v1322, %v1436
    %v1438 = vpop.f32.mrb[0].mxu0
    %1439 = vmatprep.mubr.f32.mxu0 0.0
    %1440 = vmatmul.mubr.f32.gmra.mrb[0].mxu0 %v1220
    %v1441 = vpop.f32.mrb[0].mxu0
    %v1442 = vadd.f32 %v1323, %v1441
    %v1443 = vpop.f32.mrb[0].mxu0
    %1444 = vmatprep.mubr.f32.mxu0 0.0
    %1445 = vmatmul.mubr.f32.gmra.mrb[0].mxu0 %v1221
    %v1446 = vpop.f32.mrb[0].mxu0
    %v1447 = vadd.f32 %v1324, %v1446
    %v1448 = vpop.f32.mrb[0].mxu0
    %1449 = vmatprep.mubr.f32.mxu0 0.0
    %1450 = vmatmul.mubr.f32.gmra.mrb[0].mxu0 %v1222
    %v1451 = vpop.f32.mrb[0].mxu0
    %v1452 = vadd.f32 %v1325, %v1451
    %v1453 = vpop.f32.mrb[0].mxu0
    %1454 = vmatprep.mubr.f32.mxu0 0.0
    %1455 = vmatmul.mubr.f32.gmra.mrb[0].mxu0 %v1223
    %v1456 = vpop.f32.mrb[0].mxu0
    %v1457 = vadd.f32 %v1326, %v1456
    %v1458 = vpop.f32.mrb[0].mxu0
    %1459 = vmatprep.mubr.f32.mxu0 0.0
    %1460 = vmatmul.mubr.f32.gmra.mrb[0].mxu0 %v1224
    %v1461 = vpop.f32.mrb[0].mxu0
    %v1462 = vadd.f32 %v1327, %v1461
    %v1463 = vpop.f32.mrb[0].mxu0
    %1464 = vmatprep.mubr.f32.mxu0 0.0
    %1465 = vmatmul.mubr.f32.gmra.mrb[0].mxu0 %v1225
    %v1466 = vpop.f32.mrb[0].mxu0
    %v1467 = vadd.f32 %v1328, %v1466
    %v1468 = vpop.f32.mrb[0].mxu0
    %1469 = vmatprep.mubr.f32.mxu0 0.0
    %1470 = vmatmul.mubr.f32.gmra.mrb[0].mxu0 %v1226
    %v1471 = vpop.f32.mrb[0].mxu0
    %v1472 = vadd.f32 %v1329, %v1471
    %v1473 = vpop.f32.mrb[0].mxu0
    %1474 = vmatprep.mubr.f32.mxu0 0.0
    %1475 = vmatmul.mubr.f32.gmra.mrb[0].mxu0 %v1227
    %v1476 = vpop.f32.mrb[0].mxu0
    %v1477 = vadd.f32 %v1330, %v1476
    %v1478 = vpop.f32.mrb[0].mxu0
    %1479 = vmatprep.mubr.f32.mxu0 0.0
    %1480 = vmatmul.mubr.f32.gmra.mrb[0].mxu0 %v1228
    %v1481 = vpop.f32.mrb[0].mxu0
    %v1482 = vadd.f32 %v1331, %v1481
    %v1483 = vpop.f32.mrb[0].mxu0
    %1484 = vmatprep.mubr.f32.mxu0 0.0
    %1485 = vmatmul.mubr.f32.gmra.mrb[0].mxu0 %v1229
    %v1486 = vpop.f32.mrb[0].mxu0
    %v1487 = vadd.f32 %v1332, %v1486
    %v1488 = vpop.f32.mrb[0].mxu0
    %1489 = vmatprep.mubr.f32.mxu0 0.0
    %1490 = vmatmul.mubr.f32.gmra.mrb[0].mxu0 %v1230
    %v1491 = vpop.f32.mrb[0].mxu0
    %v1492 = vadd.f32 %v1333, %v1491
    %v1493 = vpop.f32.mrb[0].mxu0
    %1494 = vmatprep.mubr.f32.mxu0 0.0
    %1495 = vmatmul.mubr.f32.gmra.mrb[0].mxu0 %v1231
    %v1496 = vpop.f32.mrb[0].mxu0
    %v1497 = vadd.f32 %v1334, %v1496
    %v1498 = vpop.f32.mrb[0].mxu0
    %1499 = vmatprep.mubr.f32.mxu0 0.0
    %1500 = vmatmul.mubr.f32.gmra.mrb[0].mxu0 %v1232
    %v1501 = vpop.f32.mrb[0].mxu0
    %v1502 = vadd.f32 %v1335, %v1501
    %v1503 = vpop.f32.mrb[0].mxu0
    %1504 = vmatprep.mubr.f32.mxu0 0.0
    %1505 = vmatmul.mubr.f32.gmra.mrb[0].mxu0 %v1233
    %v1506 = vpop.f32.mrb[0].mxu0
    %v1507 = vadd.f32 %v1336, %v1506
    %v1508 = vpop.f32.mrb[0].mxu0
    %1509 = vmatprep.mubr.f32.mxu0 0.0
    %1510 = vmatmul.mubr.f32.gmra.mrb[0].mxu0 %v1234
    %v1511 = vpop.f32.mrb[0].mxu0
    %v1512 = vadd.f32 %v1337, %v1511
    %v1513 = vpop.f32.mrb[0].mxu0
    %1514 = vmatprep.mubr.f32.mxu0 0.0
    %1515 = vmatmul.mubr.f32.gmra.mrb[0].mxu0 %v1235
    %v1516 = vpop.f32.mrb[0].mxu0
    %v1517 = vadd.f32 %v1338, %v1516
    %v1518 = vpop.f32.mrb[0].mxu0
    %1519 = vmatprep.mubr.f32.mxu0 0.0
    %1520 = vmatmul.mubr.f32.gmra.mrb[0].mxu0 %v1236
    %v1521 = vpop.f32.mrb[0].mxu0
    %v1522 = vadd.f32 %v1339, %v1521
    %v1523 = vpop.f32.mrb[0].mxu0
    %1524 = vmatprep.mubr.f32.mxu0 0.0
    %1525 = vmatmul.mubr.f32.gmra.mrb[0].mxu0 %v1237
    %v1526 = vpop.f32.mrb[0].mxu0
    %v1527 = vadd.f32 %v1340, %v1526
    %v1528 = vpop.f32.mrb[0].mxu0
    %1529 = vmatprep.mubr.f32.mxu0 0.0
    %1530 = vmatmul.mubr.f32.gmra.mrb[0].mxu0 %v1238
    %v1531 = vpop.f32.mrb[0].mxu0
    %v1532 = vadd.f32 %v1341, %v1531
    %v1533 = vpop.f32.mrb[0].mxu0
    %1534 = vmatprep.mubr.f32.mxu0 0.0
    %1535 = vmatmul.mubr.f32.gmra.mrb[0].mxu0 %v1239
    %v1536 = vpop.f32.mrb[0].mxu0
    %v1537 = vadd.f32 %v1342, %v1536
    %v1538 = vpop.f32.mrb[0].mxu0
    %1539 = vmatprep.mubr.f32.mxu0 0.0
    %1540 = vmatmul.mubr.f32.gmra.mrb[0].mxu0 %v1240
    %v1541 = vpop.f32.mrb[0].mxu0
    %v1542 = vadd.f32 %v1343, %v1541
    %v1543 = vpop.f32.mrb[0].mxu0
    %1544 = vmatprep.mubr.f32.mxu0 0.0
    %1545 = vmatmul.mubr.f32.gmra.mrb[0].mxu0 %v1241
    %v1546 = vpop.f32.mrb[0].mxu0
    %v1547 = vadd.f32 %v1344, %v1546
    %v1548 = vpop.f32.mrb[0].mxu0
    %1549 = vmatprep.mubr.f32.mxu0 0.0
    %1550 = vmatmul.mubr.f32.gmra.mrb[0].mxu0 %v1242
    %v1551 = vpop.f32.mrb[0].mxu0
    %v1552 = vadd.f32 %v1345, %v1551
    %v1553 = vpop.f32.mrb[0].mxu0
    %1554 = vmatprep.mubr.f32.mxu0 0.0
    %1555 = vmatmul.mubr.f32.gmra.mrb[0].mxu0 %v1243
    %v1556 = vpop.f32.mrb[0].mxu0
    %v1557 = vadd.f32 %v1346, %v1556
    %v1558 = vpop.f32.mrb[0].mxu0
    %1559 = vmatprep.mubr.f32.mxu0 0.0
    %1560 = vmatmul.mubr.f32.gmra.mrb[0].mxu0 %v1244
    %v1561 = vpop.f32.mrb[0].mxu0
    %v1562 = vadd.f32 %v1347, %v1561
    %v1563 = vpop.f32.mrb[0].mxu0
    %1564 = vmatprep.mubr.f32.mxu0 0.0
    %1565 = vmatmul.mubr.f32.gmra.mrb[0].mxu0 %v1245
    %v1566 = vpop.f32.mrb[0].mxu0
    %v1567 = vadd.f32 %v1348, %v1566
    %v1568 = vpop.f32.mrb[0].mxu0
    %1569 = vmatprep.mubr.f32.mxu0 0.0
    %1570 = vmatmul.mubr.f32.gmra.mrb[0].mxu0 %v1246
    %v1571 = vpop.f32.mrb[0].mxu0
    %v1572 = vadd.f32 %v1349, %v1571
    %v1573 = vpop.f32.mrb[0].mxu0
    %1574 = vmatprep.mubr.f32.mxu0 0.0
    %1575 = vmatmul.mubr.f32.gmra.mrb[0].mxu0 %v1247
    %v1576 = vpop.f32.mrb[0].mxu0
    %v1577 = vadd.f32 %v1350, %v1576
    %v1578 = vpop.f32.mrb[0].mxu0
    %1579 = vmatprep.mubr.f32.mxu0 0.0
    %1580 = vmatmul.mubr.f32.gmra.mrb[0].mxu0 %v1248
    %v1581 = vpop.f32.mrb[0].mxu0
    %v1582 = vadd.f32 %v1351, %v1581
    %v1583 = vpop.f32.mrb[0].mxu0
    %1584 = vmatprep.mubr.f32.mxu0 0.0
    %1585 = vmatmul.mubr.f32.gmra.mrb[0].mxu0 %v1249
    %v1586 = vpop.f32.mrb[0].mxu0
    %v1587 = vadd.f32 %v1352, %v1586
    %v1588 = vpop.f32.mrb[0].mxu0
    %1589 = vmatprep.mubr.f32.mxu0 0.0
    %1590 = vmatmul.mubr.f32.gmra.mrb[0].mxu0 %v1250
    %v1591 = vpop.f32.mrb[0].mxu0
    %v1592 = vadd.f32 %v1353, %v1591
    %v1593 = vpop.f32.mrb[0].mxu0
    %1594 = vmatprep.mubr.f32.mxu0 0.0
    %1595 = vmatmul.mubr.f32.gmra.mrb[0].mxu0 %v1251
    %v1596 = vpop.f32.mrb[0].mxu0
    %v1597 = vadd.f32 %v1354, %v1596
    %v1598 = vpop.f32.mrb[0].mxu0
    %1599 = vmatprep.mubr.f32.mxu0 0.0
    %1600 = vmatmul.mubr.f32.gmra.mrb[0].mxu0 %v1252
    %v1601 = vpop.f32.mrb[0].mxu0
    %v1602 = vadd.f32 %v1355, %v1601
    %v1603 = vpop.f32.mrb[0].mxu0
    %1604 = vmatprep.mubr.f32.mxu0 0.0
    %1605 = vmatmul.mubr.f32.gmra.mrb[0].mxu0 %v1253
    %v1606 = vpop.f32.mrb[0].mxu0
    %v1607 = vadd.f32 %v1356, %v1606
    %v1608 = vpop.f32.mrb[0].mxu0
    %1609 = vmatprep.mubr.f32.mxu0 0.0
    %1610 = vmatmul.mubr.f32.gmra.mrb[0].mxu0 %v1254
    %v1611 = vpop.f32.mrb[0].mxu0
    %v1612 = vadd.f32 %v1357, %v1611
    %v1613 = vpop.f32.mrb[0].mxu0
    %1614 = vmatprep.mubr.f32.mxu0 0.0
    %1615 = vmatmul.mubr.f32.gmra.mrb[0].mxu0 %v1255
    %v1616 = vpop.f32.mrb[0].mxu0
    %v1617 = vadd.f32 %v1358, %v1616
    %v1618 = vpop.f32.mrb[0].mxu0
    %1619 = vmatprep.mubr.f32.mxu0 0.0
    %1620 = vmatmul.mubr.f32.gmra.mrb[0].mxu0 %v1256
    %v1621 = vpop.f32.mrb[0].mxu0
    %v1622 = vadd.f32 %v1359, %v1621
    %v1623 = vpop.f32.mrb[0].mxu0
    %1624 = vdwg.mxu0
    %v1625 = vmax.f32 %v1427, 0.0
    %v1626 = vmax.f32 %v1432, 0.0
    %v1627 = vmax.f32 %v1437, 0.0
    %v1628 = vmax.f32 %v1442, 0.0
    %v1629 = vmax.f32 %v1447, 0.0
    %v1630 = vmax.f32 %v1452, 0.0
    %v1631 = vmax.f32 %v1457, 0.0
    %v1632 = vmax.f32 %v1462, 0.0
    %v1633 = vmax.f32 %v1467, 0.0
    %v1634 = vmax.f32 %v1472, 0.0
    %v1635 = vmax.f32 %v1477, 0.0
    %v1636 = vmax.f32 %v1482, 0.0
    %v1637 = vmax.f32 %v1487, 0.0
    %v1638 = vmax.f32 %v1492, 0.0
    %v1639 = vmax.f32 %v1497, 0.0
    %v1640 = vmax.f32 %v1502, 0.0
    %v1641 = vmax.f32 %v1507, 0.0
    %v1642 = vmax.f32 %v1512, 0.0
    %v1643 = vmax.f32 %v1517, 0.0
    %v1644 = vmax.f32 %v1522, 0.0
    %v1645 = vmax.f32 %v1527, 0.0
    %v1646 = vmax.f32 %v1532, 0.0
    %v1647 = vmax.f32 %v1537, 0.0
    %v1648 = vmax.f32 %v1542, 0.0
    %v1649 = vmax.f32 %v1547, 0.0
    %v1650 = vmax.f32 %v1552, 0.0
    %v1651 = vmax.f32 %v1557, 0.0
    %v1652 = vmax.f32 %v1562, 0.0
    %v1653 = vmax.f32 %v1567, 0.0
    %v1654 = vmax.f32 %v1572, 0.0
    %v1655 = vmax.f32 %v1577, 0.0
    %v1656 = vmax.f32 %v1582, 0.0
    %v1657 = vmax.f32 %v1587, 0.0
    %v1658 = vmax.f32 %v1592, 0.0
    %v1659 = vmax.f32 %v1597, 0.0
    %v1660 = vmax.f32 %v1602, 0.0
    %v1661 = vmax.f32 %v1607, 0.0
    %v1662 = vmax.f32 %v1612, 0.0
    %v1663 = vmax.f32 %v1617, 0.0
    %v1664 = vmax.f32 %v1622, 0.0
    %1665 = vmatprep.subr.mxu0 0.0
    %1666 = vmatpush1.msra.mxu0 %v1625
    %1667 = vmatprep.subr.mxu0 0.0
    %1668 = vmatpush1.msra.mxu0 %v1626
    %1669 = vmatprep.subr.mxu0 0.0
    %1670 = vmatpush1.msra.mxu0 %v1627
    %1671 = vmatprep.subr.mxu0 0.0
    %1672 = vmatpush1.msra.mxu0 %v1628
    %1673 = vmatprep.subr.mxu0 0.0
    %1674 = vmatpush1.msra.mxu0 %v1629
    %1675 = vmatprep.subr.mxu0 0.0
    %1676 = vmatpush1.msra.mxu0 0.0
    %1677 = vmatprep.subr.mxu0 0.0
    %1678 = vmatpush1.msra.mxu0 0.0
    %1679 = vmatprep.subr.mxu0 0.0
    %1680 = vmatpush1.msra.mxu0 0.0
    %1681 = vmatprep.subr.mxu0 0.0
    %1682 = vmatpush1.msra.mxu0 0.0
    %1683 = vmatprep.subr.mxu0 0.0
    %1684 = vmatpush1.msra.mxu0 0.0
    %1685 = vmatprep.subr.mxu0 0.0
    %1686 = vmatpush1.msra.mxu0 0.0
    %1687 = vmatprep.subr.mxu0 0.0
    %1688 = vmatpush1.msra.mxu0 0.0
    %1689 = vmatprep.subr.mxu0 0.0
    %1690 = vmatpush1.msra.mxu0 0.0
    %1691 = vmatprep.subr.mxu0 0.0
    %1692 = vmatpush1.msra.mxu0 0.0
    %1693 = vmatprep.subr.mxu0 0.0
    %1694 = vmatpush1.msra.mxu0 0.0
    %1695 = vmatprep.subr.mxu0 0.0
    %1696 = vmatpush1.msra.mxu0 0.0
    %1697 = vmatprep.subr.mxu0 0.0
    %1698 = vmatpush1.msra.mxu0 0.0
    %1699 = vmatprep.subr.mxu0 0.0
    %1700 = vmatpush1.msra.mxu0 0.0
    %1701 = vmatprep.subr.mxu0 0.0
    %1702 = vmatpush1.msra.mxu0 0.0
    %1703 = vmatprep.subr.mxu0 0.0
    %1704 = vmatpush1.msra.mxu0 0.0
    %1705 = vmatprep.subr.mxu0 0.0
    %1706 = vmatpush1.msra.mxu0 0.0
    %1707 = vmatprep.subr.mxu0 0.0
    %1708 = vmatpush1.msra.mxu0 0.0
    %1709 = vmatprep.subr.mxu0 0.0
    %1710 = vmatpush1.msra.mxu0 0.0
    %1711 = vmatprep.subr.mxu0 0.0
    %1712 = vmatpush1.msra.mxu0 0.0
    %1713 = vmatprep.subr.mxu0 0.0
    %1714 = vmatpush1.msra.mxu0 0.0
    %1715 = vmatprep.subr.mxu0 0.0
    %1716 = vmatpush1.msra.mxu0 0.0
    %1717 = vmatprep.subr.mxu0 0.0
    %1718 = vmatpush1.msra.mxu0 0.0
    %1719 = vmatprep.subr.mxu0 0.0
    %1720 = vmatpush1.msra.mxu0 0.0
    %1721 = vmatprep.subr.mxu0 0.0
    %1722 = vmatpush1.msra.mxu0 0.0
    %1723 = vmatprep.subr.mxu0 0.0
    %1724 = vmatpush1.msra.mxu0 0.0
    %1725 = vmatprep.subr.mxu0 0.0
    %1726 = vmatpush1.msra.mxu0 0.0
    %1727 = vmatprep.subr.mxu0 0.0
    %1728 = vmatpush1.msra.mxu0 0.0
    %1729 = vmatprep.mubr.f32.mxu0 0.0
    %1730 = vmatmul.mubr.f32.gmra.mrb[0].mxu0 %v378
    %v1731 = vpop.f32.mrb[0].mxu0
    %v1732 = vadd.f32 %v1625, %v1731
    %v1733 = vpop.f32.mrb[0].mxu0
    %1734 = vmatprep.mubr.f32.mxu0 0.0
    %1735 = vmatmul.mubr.f32.gmra.mrb[0].mxu0 %v381
    %v1736 = vpop.f32.mrb[0].mxu0
    %v1737 = vadd.f32 %v1626, %v1736
    %v1738 = vpop.f32.mrb[0].mxu0
    %1739 = vmatprep.mubr.f32.mxu0 0.0
    %1740 = vmatmul.mubr.f32.gmra.mrb[0].mxu0 %v384
    %v1741 = vpop.f32.mrb[0].mxu0
    %v1742 = vadd.f32 %v1627, %v1741
    %v1743 = vpop.f32.mrb[0].mxu0
    %1744 = vmatprep.mubr.f32.mxu0 0.0
    %1745 = vmatmul.mubr.f32.gmra.mrb[0].mxu0 %v387
    %v1746 = vpop.f32.mrb[0].mxu0
    %v1747 = vadd.f32 %v1628, %v1746
    %v1748 = vpop.f32.mrb[0].mxu0
    %1749 = vmatprep.mubr.f32.mxu0 0.0
    %1750 = vmatmul.mubr.f32.gmra.mrb[0].mxu0 %v390
    %v1751 = vpop.f32.mrb[0].mxu0
    %v1752 = vadd.f32 %v1629, %v1751
    %v1753 = vpop.f32.mrb[0].mxu0
    %1754 = vdwg.mxu0
    %1755 = vmatprep.subr.mxu0 0.0
    %1756 = vmatpush1.msra.mxu0 %v1630
    %1757 = vmatprep.subr.mxu0 0.0
    %1758 = vmatpush1.msra.mxu0 %v1631
    %1759 = vmatprep.subr.mxu0 0.0
    %1760 = vmatpush1.msra.mxu0 %v1632
    %1761 = vmatprep.subr.mxu0 0.0
    %1762 = vmatpush1.msra.mxu0 %v1633
    %1763 = vmatprep.subr.mxu0 0.0
    %1764 = vmatpush1.msra.mxu0 %v1634
    %1765 = vmatprep.subr.mxu0 0.0
    %1766 = vmatpush1.msra.mxu0 0.0
    %1767 = vmatprep.subr.mxu0 0.0
    %1768 = vmatpush1.msra.mxu0 0.0
    %1769 = vmatprep.subr.mxu0 0.0
    %1770 = vmatpush1.msra.mxu0 0.0
    %1771 = vmatprep.subr.mxu0 0.0
    %1772 = vmatpush1.msra.mxu0 0.0
    %1773 = vmatprep.subr.mxu0 0.0
    %1774 = vmatpush1.msra.mxu0 0.0
    %1775 = vmatprep.subr.mxu0 0.0
    %1776 = vmatpush1.msra.mxu0 0.0
    %1777 = vmatprep.subr.mxu0 0.0
    %1778 = vmatpush1.msra.mxu0 0.0
    %1779 = vmatprep.subr.mxu0 0.0
    %1780 = vmatpush1.msra.mxu0 0.0
    %1781 = vmatprep.subr.mxu0 0.0
    %1782 = vmatpush1.msra.mxu0 0.0
    %1783 = vmatprep.subr.mxu0 0.0
    %1784 = vmatpush1.msra.mxu0 0.0
    %1785 = vmatprep.subr.mxu0 0.0
    %1786 = vmatpush1.msra.mxu0 0.0
    %1787 = vmatprep.subr.mxu0 0.0
    %1788 = vmatpush1.msra.mxu0 0.0
    %1789 = vmatprep.subr.mxu0 0.0
    %1790 = vmatpush1.msra.mxu0 0.0
    %1791 = vmatprep.subr.mxu0 0.0
    %1792 = vmatpush1.msra.mxu0 0.0
    %1793 = vmatprep.subr.mxu0 0.0
    %1794 = vmatpush1.msra.mxu0 0.0
    %1795 = vmatprep.subr.mxu0 0.0
    %1796 = vmatpush1.msra.mxu0 0.0
    %1797 = vmatprep.subr.mxu0 0.0
    %1798 = vmatpush1.msra.mxu0 0.0
    %1799 = vmatprep.subr.mxu0 0.0
    %1800 = vmatpush1.msra.mxu0 0.0
    %1801 = vmatprep.subr.mxu0 0.0
    %1802 = vmatpush1.msra.mxu0 0.0
    %1803 = vmatprep.subr.mxu0 0.0
    %1804 = vmatpush1.msra.mxu0 0.0
    %1805 = vmatprep.subr.mxu0 0.0
    %1806 = vmatpush1.msra.mxu0 0.0
    %1807 = vmatprep.subr.mxu0 0.0
    %1808 = vmatpush1.msra.mxu0 0.0
    %1809 = vmatprep.subr.mxu0 0.0
    %1810 = vmatpush1.msra.mxu0 0.0
    %1811 = vmatprep.subr.mxu0 0.0
    %1812 = vmatpush1.msra.mxu0 0.0
    %1813 = vmatprep.subr.mxu0 0.0
    %1814 = vmatpush1.msra.mxu0 0.0
    %1815 = vmatprep.subr.mxu0 0.0
    %1816 = vmatpush1.msra.mxu0 0.0
    %1817 = vmatprep.subr.mxu0 0.0
    %1818 = vmatpush1.msra.mxu0 0.0
    %1819 = vmatprep.mubr.f32.mxu0 0.0
    %1820 = vmatmul.mubr.f32.gmra.mrb[0].mxu0 %v483
    %v1821 = vpop.f32.mrb[0].mxu0
    %v1822 = vadd.f32 %v1630, %v1821
    %v1823 = vpop.f32.mrb[0].mxu0
    %1824 = vmatprep.mubr.f32.mxu0 0.0
    %1825 = vmatmul.mubr.f32.gmra.mrb[0].mxu0 %v486
    %v1826 = vpop.f32.mrb[0].mxu0
    %v1827 = vadd.f32 %v1631, %v1826
    %v1828 = vpop.f32.mrb[0].mxu0
    %1829 = vmatprep.mubr.f32.mxu0 0.0
    %1830 = vmatmul.mubr.f32.gmra.mrb[0].mxu0 %v489
    %v1831 = vpop.f32.mrb[0].mxu0
    %v1832 = vadd.f32 %v1632, %v1831
    %v1833 = vpop.f32.mrb[0].mxu0
    %1834 = vmatprep.mubr.f32.mxu0 0.0
    %1835 = vmatmul.mubr.f32.gmra.mrb[0].mxu0 %v492
    %v1836 = vpop.f32.mrb[0].mxu0
    %v1837 = vadd.f32 %v1633, %v1836
    %v1838 = vpop.f32.mrb[0].mxu0
    %1839 = vmatprep.mubr.f32.mxu0 0.0
    %1840 = vmatmul.mubr.f32.gmra.mrb[0].mxu0 %v495
    %v1841 = vpop.f32.mrb[0].mxu0
    %v1842 = vadd.f32 %v1634, %v1841
    %v1843 = vpop.f32.mrb[0].mxu0
    %1844 = vdwg.mxu0
    %1845 = vmatprep.subr.mxu0 0.0
    %1846 = vmatpush1.msra.mxu0 %v1635
    %1847 = vmatprep.subr.mxu0 0.0
    %1848 = vmatpush1.msra.mxu0 %v1636
    %1849 = vmatprep.subr.mxu0 0.0
    %1850 = vmatpush1.msra.mxu0 %v1637
    %1851 = vmatprep.subr.mxu0 0.0
    %1852 = vmatpush1.msra.mxu0 %v1638
    %1853 = vmatprep.subr.mxu0 0.0
    %1854 = vmatpush1.msra.mxu0 %v1639
    %1855 = vmatprep.subr.mxu0 0.0
    %1856 = vmatpush1.msra.mxu0 0.0
    %1857 = vmatprep.subr.mxu0 0.0
    %1858 = vmatpush1.msra.mxu0 0.0
    %1859 = vmatprep.subr.mxu0 0.0
    %1860 = vmatpush1.msra.mxu0 0.0
    %1861 = vmatprep.subr.mxu0 0.0
    %1862 = vmatpush1.msra.mxu0 0.0
    %1863 = vmatprep.subr.mxu0 0.0
    %1864 = vmatpush1.msra.mxu0 0.0
    %1865 = vmatprep.subr.mxu0 0.0
    %1866 = vmatpush1.msra.mxu0 0.0
    %1867 = vmatprep.subr.mxu0 0.0
    %1868 = vmatpush1.msra.mxu0 0.0
    %1869 = vmatprep.subr.mxu0 0.0
    %1870 = vmatpush1.msra.mxu0 0.0
    %1871 = vmatprep.subr.mxu0 0.0
    %1872 = vmatpush1.msra.mxu0 0.0
    %1873 = vmatprep.subr.mxu0 0.0
    %1874 = vmatpush1.msra.mxu0 0.0
    %1875 = vmatprep.subr.mxu0 0.0
    %1876 = vmatpush1.msra.mxu0 0.0
    %1877 = vmatprep.subr.mxu0 0.0
    %1878 = vmatpush1.msra.mxu0 0.0
    %1879 = vmatprep.subr.mxu0 0.0
    %1880 = vmatpush1.msra.mxu0 0.0
    %1881 = vmatprep.subr.mxu0 0.0
    %1882 = vmatpush1.msra.mxu0 0.0
    %1883 = vmatprep.subr.mxu0 0.0
    %1884 = vmatpush1.msra.mxu0 0.0
    %1885 = vmatprep.subr.mxu0 0.0
    %1886 = vmatpush1.msra.mxu0 0.0
    %1887 = vmatprep.subr.mxu0 0.0
    %1888 = vmatpush1.msra.mxu0 0.0
    %1889 = vmatprep.subr.mxu0 0.0
    %1890 = vmatpush1.msra.mxu0 0.0
    %1891 = vmatprep.subr.mxu0 0.0
    %1892 = vmatpush1.msra.mxu0 0.0
    %1893 = vmatprep.subr.mxu0 0.0
    %1894 = vmatpush1.msra.mxu0 0.0
    %1895 = vmatprep.subr.mxu0 0.0
    %1896 = vmatpush1.msra.mxu0 0.0
    %1897 = vmatprep.subr.mxu0 0.0
    %1898 = vmatpush1.msra.mxu0 0.0
    %1899 = vmatprep.subr.mxu0 0.0
    %1900 = vmatpush1.msra.mxu0 0.0
    %1901 = vmatprep.subr.mxu0 0.0
    %1902 = vmatpush1.msra.mxu0 0.0
    %1903 = vmatprep.subr.mxu0 0.0
    %1904 = vmatpush1.msra.mxu0 0.0
    %1905 = vmatprep.subr.mxu0 0.0
    %1906 = vmatpush1.msra.mxu0 0.0
    %1907 = vmatprep.subr.mxu0 0.0
    %1908 = vmatpush1.msra.mxu0 0.0
    %1909 = vmatprep.mubr.f32.mxu0 0.0
    %1910 = vmatmul.mubr.f32.gmra.mrb[0].mxu0 %v588
    %v1911 = vpop.f32.mrb[0].mxu0
    %v1912 = vadd.f32 %v1635, %v1911
    %v1913 = vpop.f32.mrb[0].mxu0
    %1914 = vmatprep.mubr.f32.mxu0 0.0
    %1915 = vmatmul.mubr.f32.gmra.mrb[0].mxu0 %v591
    %v1916 = vpop.f32.mrb[0].mxu0
    %v1917 = vadd.f32 %v1636, %v1916
    %v1918 = vpop.f32.mrb[0].mxu0
    %1919 = vmatprep.mubr.f32.mxu0 0.0
    %1920 = vmatmul.mubr.f32.gmra.mrb[0].mxu0 %v594
    %v1921 = vpop.f32.mrb[0].mxu0
    %v1922 = vadd.f32 %v1637, %v1921
    %v1923 = vpop.f32.mrb[0].mxu0
    %1924 = vmatprep.mubr.f32.mxu0 0.0
    %1925 = vmatmul.mubr.f32.gmra.mrb[0].mxu0 %v597
    %v1926 = vpop.f32.mrb[0].mxu0
    %v1927 = vadd.f32 %v1638, %v1926
    %v1928 = vpop.f32.mrb[0].mxu0
    %1929 = vmatprep.mubr.f32.mxu0 0.0
    %1930 = vmatmul.mubr.f32.gmra.mrb[0].mxu0 %v600
    %v1931 = vpop.f32.mrb[0].mxu0
    %v1932 = vadd.f32 %v1639, %v1931
    %v1933 = vpop.f32.mrb[0].mxu0
    %1934 = vdwg.mxu0
    %1935 = vmatprep.subr.mxu0 0.0
    %1936 = vmatpush1.msra.mxu0 %v1640
    %1937 = vmatprep.subr.mxu0 0.0
    %1938 = vmatpush1.msra.mxu0 %v1641
    %1939 = vmatprep.subr.mxu0 0.0
    %1940 = vmatpush1.msra.mxu0 %v1642
    %1941 = vmatprep.subr.mxu0 0.0
    %1942 = vmatpush1.msra.mxu0 %v1643
    %1943 = vmatprep.subr.mxu0 0.0
    %1944 = vmatpush1.msra.mxu0 %v1644
    %1945 = vmatprep.subr.mxu0 0.0
    %1946 = vmatpush1.msra.mxu0 0.0
    %1947 = vmatprep.subr.mxu0 0.0
    %1948 = vmatpush1.msra.mxu0 0.0
    %1949 = vmatprep.subr.mxu0 0.0
    %1950 = vmatpush1.msra.mxu0 0.0
    %1951 = vmatprep.subr.mxu0 0.0
    %1952 = vmatpush1.msra.mxu0 0.0
    %1953 = vmatprep.subr.mxu0 0.0
    %1954 = vmatpush1.msra.mxu0 0.0
    %1955 = vmatprep.subr.mxu0 0.0
    %1956 = vmatpush1.msra.mxu0 0.0
    %1957 = vmatprep.subr.mxu0 0.0
    %1958 = vmatpush1.msra.mxu0 0.0
    %1959 = vmatprep.subr.mxu0 0.0
    %1960 = vmatpush1.msra.mxu0 0.0
    %1961 = vmatprep.subr.mxu0 0.0
    %1962 = vmatpush1.msra.mxu0 0.0
    %1963 = vmatprep.subr.mxu0 0.0
    %1964 = vmatpush1.msra.mxu0 0.0
    %1965 = vmatprep.subr.mxu0 0.0
    %1966 = vmatpush1.msra.mxu0 0.0
    %1967 = vmatprep.subr.mxu0 0.0
    %1968 = vmatpush1.msra.mxu0 0.0
    %1969 = vmatprep.subr.mxu0 0.0
    %1970 = vmatpush1.msra.mxu0 0.0
    %1971 = vmatprep.subr.mxu0 0.0
    %1972 = vmatpush1.msra.mxu0 0.0
    %1973 = vmatprep.subr.mxu0 0.0
    %1974 = vmatpush1.msra.mxu0 0.0
    %1975 = vmatprep.subr.mxu0 0.0
    %1976 = vmatpush1.msra.mxu0 0.0
    %1977 = vmatprep.subr.mxu0 0.0
    %1978 = vmatpush1.msra.mxu0 0.0
    %1979 = vmatprep.subr.mxu0 0.0
    %1980 = vmatpush1.msra.mxu0 0.0
    %1981 = vmatprep.subr.mxu0 0.0
    %1982 = vmatpush1.msra.mxu0 0.0
    %1983 = vmatprep.subr.mxu0 0.0
    %1984 = vmatpush1.msra.mxu0 0.0
    %1985 = vmatprep.subr.mxu0 0.0
    %1986 = vmatpush1.msra.mxu0 0.0
    %1987 = vmatprep.subr.mxu0 0.0
    %1988 = vmatpush1.msra.mxu0 0.0
    %1989 = vmatprep.subr.mxu0 0.0
    %1990 = vmatpush1.msra.mxu0 0.0
    %1991 = vmatprep.subr.mxu0 0.0
    %1992 = vmatpush1.msra.mxu0 0.0
    %1993 = vmatprep.subr.mxu0 0.0
    %1994 = vmatpush1.msra.mxu0 0.0
    %1995 = vmatprep.subr.mxu0 0.0
    %1996 = vmatpush1.msra.mxu0 0.0
    %1997 = vmatprep.subr.mxu0 0.0
    %1998 = vmatpush1.msra.mxu0 0.0
    %1999 = vmatprep.mubr.f32.mxu0 0.0
    %2000 = vmatmul.mubr.f32.gmra.mrb[0].mxu0 %v693
    %v2001 = vpop.f32.mrb[0].mxu0
    %v2002 = vadd.f32 %v1640, %v2001
    %v2003 = vpop.f32.mrb[0].mxu0
    %2004 = vmatprep.mubr.f32.mxu0 0.0
    %2005 = vmatmul.mubr.f32.gmra.mrb[0].mxu0 %v696
    %v2006 = vpop.f32.mrb[0].mxu0
    %v2007 = vadd.f32 %v1641, %v2006
    %v2008 = vpop.f32.mrb[0].mxu0
    %2009 = vmatprep.mubr.f32.mxu0 0.0
    %2010 = vmatmul.mubr.f32.gmra.mrb[0].mxu0 %v699
    %v2011 = vpop.f32.mrb[0].mxu0
    %v2012 = vadd.f32 %v1642, %v2011
    %v2013 = vpop.f32.mrb[0].mxu0
    %2014 = vmatprep.mubr.f32.mxu0 0.0
    %2015 = vmatmul.mubr.f32.gmra.mrb[0].mxu0 %v702
    %v2016 = vpop.f32.mrb[0].mxu0
    %v2017 = vadd.f32 %v1643, %v2016
    %v2018 = vpop.f32.mrb[0].mxu0
    %2019 = vmatprep.mubr.f32.mxu0 0.0
    %2020 = vmatmul.mubr.f32.gmra.mrb[0].mxu0 %v705
    %v2021 = vpop.f32.mrb[0].mxu0
    %v2022 = vadd.f32 %v1644, %v2021
    %v2023 = vpop.f32.mrb[0].mxu0
    %2024 = vdwg.mxu0
    %2025 = vmatprep.subr.mxu0 0.0
    %2026 = vmatpush1.msra.mxu0 %v1645
    %2027 = vmatprep.subr.mxu0 0.0
    %2028 = vmatpush1.msra.mxu0 %v1646
    %2029 = vmatprep.subr.mxu0 0.0
    %2030 = vmatpush1.msra.mxu0 %v1647
    %2031 = vmatprep.subr.mxu0 0.0
    %2032 = vmatpush1.msra.mxu0 %v1648
    %2033 = vmatprep.subr.mxu0 0.0
    %2034 = vmatpush1.msra.mxu0 %v1649
    %2035 = vmatprep.subr.mxu0 0.0
    %2036 = vmatpush1.msra.mxu0 0.0
    %2037 = vmatprep.subr.mxu0 0.0
    %2038 = vmatpush1.msra.mxu0 0.0
    %2039 = vmatprep.subr.mxu0 0.0
    %2040 = vmatpush1.msra.mxu0 0.0
    %2041 = vmatprep.subr.mxu0 0.0
    %2042 = vmatpush1.msra.mxu0 0.0
    %2043 = vmatprep.subr.mxu0 0.0
    %2044 = vmatpush1.msra.mxu0 0.0
    %2045 = vmatprep.subr.mxu0 0.0
    %2046 = vmatpush1.msra.mxu0 0.0
    %2047 = vmatprep.subr.mxu0 0.0
    %2048 = vmatpush1.msra.mxu0 0.0
    %2049 = vmatprep.subr.mxu0 0.0
    %2050 = vmatpush1.msra.mxu0 0.0
    %2051 = vmatprep.subr.mxu0 0.0
    %2052 = vmatpush1.msra.mxu0 0.0
    %2053 = vmatprep.subr.mxu0 0.0
    %2054 = vmatpush1.msra.mxu0 0.0
    %2055 = vmatprep.subr.mxu0 0.0
    %2056 = vmatpush1.msra.mxu0 0.0
    %2057 = vmatprep.subr.mxu0 0.0
    %2058 = vmatpush1.msra.mxu0 0.0
    %2059 = vmatprep.subr.mxu0 0.0
    %2060 = vmatpush1.msra.mxu0 0.0
    %2061 = vmatprep.subr.mxu0 0.0
    %2062 = vmatpush1.msra.mxu0 0.0
    %2063 = vmatprep.subr.mxu0 0.0
    %2064 = vmatpush1.msra.mxu0 0.0
    %2065 = vmatprep.subr.mxu0 0.0
    %2066 = vmatpush1.msra.mxu0 0.0
    %2067 = vmatprep.subr.mxu0 0.0
    %2068 = vmatpush1.msra.mxu0 0.0
    %2069 = vmatprep.subr.mxu0 0.0
    %2070 = vmatpush1.msra.mxu0 0.0
    %2071 = vmatprep.subr.mxu0 0.0
    %2072 = vmatpush1.msra.mxu0 0.0
    %2073 = vmatprep.subr.mxu0 0.0
    %2074 = vmatpush1.msra.mxu0 0.0
    %2075 = vmatprep.subr.mxu0 0.0
    %2076 = vmatpush1.msra.mxu0 0.0
    %2077 = vmatprep.subr.mxu0 0.0
    %2078 = vmatpush1.msra.mxu0 0.0
    %2079 = vmatprep.subr.mxu0 0.0
    %2080 = vmatpush1.msra.mxu0 0.0
    %2081 = vmatprep.subr.mxu0 0.0
    %2082 = vmatpush1.msra.mxu0 0.0
    %2083 = vmatprep.subr.mxu0 0.0
    %2084 = vmatpush1.msra.mxu0 0.0
    %2085 = vmatprep.subr.mxu0 0.0
    %2086 = vmatpush1.msra.mxu0 0.0
    %2087 = vmatprep.subr.mxu0 0.0
    %2088 = vmatpush1.msra.mxu0 0.0
    %2089 = vmatprep.mubr.f32.mxu0 0.0
    %2090 = vmatmul.mubr.f32.gmra.mrb[0].mxu0 %v798
    %v2091 = vpop.f32.mrb[0].mxu0
    %v2092 = vadd.f32 %v1645, %v2091
    %v2093 = vpop.f32.mrb[0].mxu0
    %2094 = vmatprep.mubr.f32.mxu0 0.0
    %2095 = vmatmul.mubr.f32.gmra.mrb[0].mxu0 %v801
    %v2096 = vpop.f32.mrb[0].mxu0
    %v2097 = vadd.f32 %v1646, %v2096
    %v2098 = vpop.f32.mrb[0].mxu0
    %2099 = vmatprep.mubr.f32.mxu0 0.0
    %2100 = vmatmul.mubr.f32.gmra.mrb[0].mxu0 %v804
    %v2101 = vpop.f32.mrb[0].mxu0
    %v2102 = vadd.f32 %v1647, %v2101
    %v2103 = vpop.f32.mrb[0].mxu0
    %2104 = vmatprep.mubr.f32.mxu0 0.0
    %2105 = vmatmul.mubr.f32.gmra.mrb[0].mxu0 %v807
    %v2106 = vpop.f32.mrb[0].mxu0
    %v2107 = vadd.f32 %v1648, %v2106
    %v2108 = vpop.f32.mrb[0].mxu0
    %2109 = vmatprep.mubr.f32.mxu0 0.0
    %2110 = vmatmul.mubr.f32.gmra.mrb[0].mxu0 %v810
    %v2111 = vpop.f32.mrb[0].mxu0
    %v2112 = vadd.f32 %v1649, %v2111
    %v2113 = vpop.f32.mrb[0].mxu0
    %2114 = vdwg.mxu0
    %2115 = vmatprep.subr.mxu0 0.0
    %2116 = vmatpush1.msra.mxu0 %v1650
    %2117 = vmatprep.subr.mxu0 0.0
    %2118 = vmatpush1.msra.mxu0 %v1651
    %2119 = vmatprep.subr.mxu0 0.0
    %2120 = vmatpush1.msra.mxu0 %v1652
    %2121 = vmatprep.subr.mxu0 0.0
    %2122 = vmatpush1.msra.mxu0 %v1653
    %2123 = vmatprep.subr.mxu0 0.0
    %2124 = vmatpush1.msra.mxu0 %v1654
    %2125 = vmatprep.subr.mxu0 0.0
    %2126 = vmatpush1.msra.mxu0 0.0
    %2127 = vmatprep.subr.mxu0 0.0
    %2128 = vmatpush1.msra.mxu0 0.0
    %2129 = vmatprep.subr.mxu0 0.0
    %2130 = vmatpush1.msra.mxu0 0.0
    %2131 = vmatprep.subr.mxu0 0.0
    %2132 = vmatpush1.msra.mxu0 0.0
    %2133 = vmatprep.subr.mxu0 0.0
    %2134 = vmatpush1.msra.mxu0 0.0
    %2135 = vmatprep.subr.mxu0 0.0
    %2136 = vmatpush1.msra.mxu0 0.0
    %2137 = vmatprep.subr.mxu0 0.0
    %2138 = vmatpush1.msra.mxu0 0.0
    %2139 = vmatprep.subr.mxu0 0.0
    %2140 = vmatpush1.msra.mxu0 0.0
    %2141 = vmatprep.subr.mxu0 0.0
    %2142 = vmatpush1.msra.mxu0 0.0
    %2143 = vmatprep.subr.mxu0 0.0
    %2144 = vmatpush1.msra.mxu0 0.0
    %2145 = vmatprep.subr.mxu0 0.0
    %2146 = vmatpush1.msra.mxu0 0.0
    %2147 = vmatprep.subr.mxu0 0.0
    %2148 = vmatpush1.msra.mxu0 0.0
    %2149 = vmatprep.subr.mxu0 0.0
    %2150 = vmatpush1.msra.mxu0 0.0
    %2151 = vmatprep.subr.mxu0 0.0
    %2152 = vmatpush1.msra.mxu0 0.0
    %2153 = vmatprep.subr.mxu0 0.0
    %2154 = vmatpush1.msra.mxu0 0.0
    %2155 = vmatprep.subr.mxu0 0.0
    %2156 = vmatpush1.msra.mxu0 0.0
    %2157 = vmatprep.subr.mxu0 0.0
    %2158 = vmatpush1.msra.mxu0 0.0
    %2159 = vmatprep.subr.mxu0 0.0
    %2160 = vmatpush1.msra.mxu0 0.0
    %2161 = vmatprep.subr.mxu0 0.0
    %2162 = vmatpush1.msra.mxu0 0.0
    %2163 = vmatprep.subr.mxu0 0.0
    %2164 = vmatpush1.msra.mxu0 0.0
    %2165 = vmatprep.subr.mxu0 0.0
    %2166 = vmatpush1.msra.mxu0 0.0
    %2167 = vmatprep.subr.mxu0 0.0
    %2168 = vmatpush1.msra.mxu0 0.0
    %2169 = vmatprep.subr.mxu0 0.0
    %2170 = vmatpush1.msra.mxu0 0.0
    %2171 = vmatprep.subr.mxu0 0.0
    %2172 = vmatpush1.msra.mxu0 0.0
    %2173 = vmatprep.subr.mxu0 0.0
    %2174 = vmatpush1.msra.mxu0 0.0
    %2175 = vmatprep.subr.mxu0 0.0
    %2176 = vmatpush1.msra.mxu0 0.0
    %2177 = vmatprep.subr.mxu0 0.0
    %2178 = vmatpush1.msra.mxu0 0.0
    %2179 = vmatprep.mubr.f32.mxu0 0.0
    %2180 = vmatmul.mubr.f32.gmra.mrb[0].mxu0 %v903
    %v2181 = vpop.f32.mrb[0].mxu0
    %v2182 = vadd.f32 %v1650, %v2181
    %v2183 = vpop.f32.mrb[0].mxu0
    %2184 = vmatprep.mubr.f32.mxu0 0.0
    %2185 = vmatmul.mubr.f32.gmra.mrb[0].mxu0 %v906
    %v2186 = vpop.f32.mrb[0].mxu0
    %v2187 = vadd.f32 %v1651, %v2186
    %v2188 = vpop.f32.mrb[0].mxu0
    %2189 = vmatprep.mubr.f32.mxu0 0.0
    %2190 = vmatmul.mubr.f32.gmra.mrb[0].mxu0 %v909
    %v2191 = vpop.f32.mrb[0].mxu0
    %v2192 = vadd.f32 %v1652, %v2191
    %v2193 = vpop.f32.mrb[0].mxu0
    %2194 = vmatprep.mubr.f32.mxu0 0.0
    %2195 = vmatmul.mubr.f32.gmra.mrb[0].mxu0 %v912
    %v2196 = vpop.f32.mrb[0].mxu0
    %v2197 = vadd.f32 %v1653, %v2196
    %v2198 = vpop.f32.mrb[0].mxu0
    %2199 = vmatprep.mubr.f32.mxu0 0.0
    %2200 = vmatmul.mubr.f32.gmra.mrb[0].mxu0 %v915
    %v2201 = vpop.f32.mrb[0].mxu0
    %v2202 = vadd.f32 %v1654, %v2201
    %v2203 = vpop.f32.mrb[0].mxu0
    %2204 = vdwg.mxu0
    %2205 = vmatprep.subr.mxu0 0.0
    %2206 = vmatpush1.msra.mxu0 %v1655
    %2207 = vmatprep.subr.mxu0 0.0
    %2208 = vmatpush1.msra.mxu0 %v1656
    %2209 = vmatprep.subr.mxu0 0.0
    %2210 = vmatpush1.msra.mxu0 %v1657
    %2211 = vmatprep.subr.mxu0 0.0
    %2212 = vmatpush1.msra.mxu0 %v1658
    %2213 = vmatprep.subr.mxu0 0.0
    %2214 = vmatpush1.msra.mxu0 %v1659
    %2215 = vmatprep.subr.mxu0 0.0
    %2216 = vmatpush1.msra.mxu0 0.0
    %2217 = vmatprep.subr.mxu0 0.0
    %2218 = vmatpush1.msra.mxu0 0.0
    %2219 = vmatprep.subr.mxu0 0.0
    %2220 = vmatpush1.msra.mxu0 0.0
    %2221 = vmatprep.subr.mxu0 0.0
    %2222 = vmatpush1.msra.mxu0 0.0
    %2223 = vmatprep.subr.mxu0 0.0
    %2224 = vmatpush1.msra.mxu0 0.0
    %2225 = vmatprep.subr.mxu0 0.0
    %2226 = vmatpush1.msra.mxu0 0.0
    %2227 = vmatprep.subr.mxu0 0.0
    %2228 = vmatpush1.msra.mxu0 0.0
    %2229 = vmatprep.subr.mxu0 0.0
    %2230 = vmatpush1.msra.mxu0 0.0
    %2231 = vmatprep.subr.mxu0 0.0
    %2232 = vmatpush1.msra.mxu0 0.0
    %2233 = vmatprep.subr.mxu0 0.0
    %2234 = vmatpush1.msra.mxu0 0.0
    %2235 = vmatprep.subr.mxu0 0.0
    %2236 = vmatpush1.msra.mxu0 0.0
    %2237 = vmatprep.subr.mxu0 0.0
    %2238 = vmatpush1.msra.mxu0 0.0
    %2239 = vmatprep.subr.mxu0 0.0
    %2240 = vmatpush1.msra.mxu0 0.0
    %2241 = vmatprep.subr.mxu0 0.0
    %2242 = vmatpush1.msra.mxu0 0.0
    %2243 = vmatprep.subr.mxu0 0.0
    %2244 = vmatpush1.msra.mxu0 0.0
    %2245 = vmatprep.subr.mxu0 0.0
    %2246 = vmatpush1.msra.mxu0 0.0
    %2247 = vmatprep.subr.mxu0 0.0
    %2248 = vmatpush1.msra.mxu0 0.0
    %2249 = vmatprep.subr.mxu0 0.0
    %2250 = vmatpush1.msra.mxu0 0.0
    %2251 = vmatprep.subr.mxu0 0.0
    %2252 = vmatpush1.msra.mxu0 0.0
    %2253 = vmatprep.subr.mxu0 0.0
    %2254 = vmatpush1.msra.mxu0 0.0
    %2255 = vmatprep.subr.mxu0 0.0
    %2256 = vmatpush1.msra.mxu0 0.0
    %2257 = vmatprep.subr.mxu0 0.0
    %2258 = vmatpush1.msra.mxu0 0.0
    %2259 = vmatprep.subr.mxu0 0.0
    %2260 = vmatpush1.msra.mxu0 0.0
    %2261 = vmatprep.subr.mxu0 0.0
    %2262 = vmatpush1.msra.mxu0 0.0
    %2263 = vmatprep.subr.mxu0 0.0
    %2264 = vmatpush1.msra.mxu0 0.0
    %2265 = vmatprep.subr.mxu0 0.0
    %2266 = vmatpush1.msra.mxu0 0.0
    %2267 = vmatprep.subr.mxu0 0.0
    %2268 = vmatpush1.msra.mxu0 0.0
    %2269 = vmatprep.mubr.f32.mxu0 0.0
    %2270 = vmatmul.mubr.f32.gmra.mrb[0].mxu0 %v1008
    %v2271 = vpop.f32.mrb[0].mxu0
    %v2272 = vadd.f32 %v1655, %v2271
    %v2273 = vpop.f32.mrb[0].mxu0
    %2274 = vmatprep.mubr.f32.mxu0 0.0
    %2275 = vmatmul.mubr.f32.gmra.mrb[0].mxu0 %v1011
    %v2276 = vpop.f32.mrb[0].mxu0
    %v2277 = vadd.f32 %v1656, %v2276
    %v2278 = vpop.f32.mrb[0].mxu0
    %2279 = vmatprep.mubr.f32.mxu0 0.0
    %2280 = vmatmul.mubr.f32.gmra.mrb[0].mxu0 %v1014
    %v2281 = vpop.f32.mrb[0].mxu0
    %v2282 = vadd.f32 %v1657, %v2281
    %v2283 = vpop.f32.mrb[0].mxu0
    %2284 = vmatprep.mubr.f32.mxu0 0.0
    %2285 = vmatmul.mubr.f32.gmra.mrb[0].mxu0 %v1017
    %v2286 = vpop.f32.mrb[0].mxu0
    %v2287 = vadd.f32 %v1658, %v2286
    %v2288 = vpop.f32.mrb[0].mxu0
    %2289 = vmatprep.mubr.f32.mxu0 0.0
    %2290 = vmatmul.mubr.f32.gmra.mrb[0].mxu0 %v1020
    %v2291 = vpop.f32.mrb[0].mxu0
    %v2292 = vadd.f32 %v1659, %v2291
    %v2293 = vpop.f32.mrb[0].mxu0
    %2294 = vdwg.mxu0
    %2295 = vmatprep.subr.mxu0 0.0
    %2296 = vmatpush1.msra.mxu0 %v1660
    %2297 = vmatprep.subr.mxu0 0.0
    %2298 = vmatpush1.msra.mxu0 %v1661
    %2299 = vmatprep.subr.mxu0 0.0
    %2300 = vmatpush1.msra.mxu0 %v1662
    %2301 = vmatprep.subr.mxu0 0.0
    %2302 = vmatpush1.msra.mxu0 %v1663
    %2303 = vmatprep.subr.mxu0 0.0
    %2304 = vmatpush1.msra.mxu0 %v1664
    %2305 = vmatprep.subr.mxu0 0.0
    %2306 = vmatpush1.msra.mxu0 0.0
    %2307 = vmatprep.subr.mxu0 0.0
    %2308 = vmatpush1.msra.mxu0 0.0
    %2309 = vmatprep.subr.mxu0 0.0
    %2310 = vmatpush1.msra.mxu0 0.0
    %2311 = vmatprep.subr.mxu0 0.0
    %2312 = vmatpush1.msra.mxu0 0.0
    %2313 = vmatprep.subr.mxu0 0.0
    %2314 = vmatpush1.msra.mxu0 0.0
    %2315 = vmatprep.subr.mxu0 0.0
    %2316 = vmatpush1.msra.mxu0 0.0
    %2317 = vmatprep.subr.mxu0 0.0
    %2318 = vmatpush1.msra.mxu0 0.0
    %2319 = vmatprep.subr.mxu0 0.0
    %2320 = vmatpush1.msra.mxu0 0.0
    %2321 = vmatprep.subr.mxu0 0.0
    %2322 = vmatpush1.msra.mxu0 0.0
    %2323 = vmatprep.subr.mxu0 0.0
    %2324 = vmatpush1.msra.mxu0 0.0
    %2325 = vmatprep.subr.mxu0 0.0
    %2326 = vmatpush1.msra.mxu0 0.0
    %2327 = vmatprep.subr.mxu0 0.0
    %2328 = vmatpush1.msra.mxu0 0.0
    %2329 = vmatprep.subr.mxu0 0.0
    %2330 = vmatpush1.msra.mxu0 0.0
    %2331 = vmatprep.subr.mxu0 0.0
    %2332 = vmatpush1.msra.mxu0 0.0
    %2333 = vmatprep.subr.mxu0 0.0
    %2334 = vmatpush1.msra.mxu0 0.0
    %2335 = vmatprep.subr.mxu0 0.0
    %2336 = vmatpush1.msra.mxu0 0.0
    %2337 = vmatprep.subr.mxu0 0.0
    %2338 = vmatpush1.msra.mxu0 0.0
    %2339 = vmatprep.subr.mxu0 0.0
    %2340 = vmatpush1.msra.mxu0 0.0
    %2341 = vmatprep.subr.mxu0 0.0
    %2342 = vmatpush1.msra.mxu0 0.0
    %2343 = vmatprep.subr.mxu0 0.0
    %2344 = vmatpush1.msra.mxu0 0.0
    %2345 = vmatprep.subr.mxu0 0.0
    %2346 = vmatpush1.msra.mxu0 0.0
    %2347 = vmatprep.subr.mxu0 0.0
    %2348 = vmatpush1.msra.mxu0 0.0
    %2349 = vmatprep.subr.mxu0 0.0
    %2350 = vmatpush1.msra.mxu0 0.0
    %2351 = vmatprep.subr.mxu0 0.0
    %2352 = vmatpush1.msra.mxu0 0.0
    %2353 = vmatprep.subr.mxu0 0.0
    %2354 = vmatpush1.msra.mxu0 0.0
    %2355 = vmatprep.subr.mxu0 0.0
    %2356 = vmatpush1.msra.mxu0 0.0
    %2357 = vmatprep.subr.mxu0 0.0
    %2358 = vmatpush1.msra.mxu0 0.0
    %2359 = vmatprep.mubr.f32.mxu0 0.0
    %2360 = vmatmul.mubr.f32.gmra.mrb[0].mxu0 %v1113
    %v2361 = vpop.f32.mrb[0].mxu0
    %v2362 = vadd.f32 %v1660, %v2361
    %v2363 = vpop.f32.mrb[0].mxu0
    %2364 = vmatprep.mubr.f32.mxu0 0.0
    %2365 = vmatmul.mubr.f32.gmra.mrb[0].mxu0 %v1116
    %v2366 = vpop.f32.mrb[0].mxu0
    %v2367 = vadd.f32 %v1661, %v2366
    %v2368 = vpop.f32.mrb[0].mxu0
    %2369 = vmatprep.mubr.f32.mxu0 0.0
    %2370 = vmatmul.mubr.f32.gmra.mrb[0].mxu0 %v1119
    %v2371 = vpop.f32.mrb[0].mxu0
    %v2372 = vadd.f32 %v1662, %v2371
    %v2373 = vpop.f32.mrb[0].mxu0
    %2374 = vmatprep.mubr.f32.mxu0 0.0
    %2375 = vmatmul.mubr.f32.gmra.mrb[0].mxu0 %v1122
    %v2376 = vpop.f32.mrb[0].mxu0
    %v2377 = vadd.f32 %v1663, %v2376
    %v2378 = vpop.f32.mrb[0].mxu0
    %2379 = vmatprep.mubr.f32.mxu0 0.0
    %2380 = vmatmul.mubr.f32.gmra.mrb[0].mxu0 %v1125
    %v2381 = vpop.f32.mrb[0].mxu0
    %v2382 = vadd.f32 %v1664, %v2381
    %v2383 = vpop.f32.mrb[0].mxu0
    %2384 = vdwg.mxu0
    %v2385 = vmul.f32 %v1732, %v298
    %v2386 = vmul.f32 %v1737, %v300
    %v2387 = vmul.f32 %v1742, %v302
    %v2388 = vmul.f32 %v1747, %v304
    %v2389 = vmul.f32 %v1752, %v306
    %v2390 = vmul.f32 %v1822, %v308
    %v2391 = vmul.f32 %v1827, %v310
    %v2392 = vmul.f32 %v1832, %v312
    %v2393 = vmul.f32 %v1837, %v314
    %v2394 = vmul.f32 %v1842, %v316
    %v2395 = vmul.f32 %v1912, %v318
    %v2396 = vmul.f32 %v1917, %v320
    %v2397 = vmul.f32 %v1922, %v322
    %v2398 = vmul.f32 %v1927, %v324
    %v2399 = vmul.f32 %v1932, %v326
    %v2400 = vmul.f32 %v2002, %v328
    %v2401 = vmul.f32 %v2007, %v330
    %v2402 = vmul.f32 %v2012, %v332
    %v2403 = vmul.f32 %v2017, %v334
    %v2404 = vmul.f32 %v2022, %v336
    %v2405 = vmul.f32 %v2092, %v338
    %v2406 = vmul.f32 %v2097, %v340
    %v2407 = vmul.f32 %v2102, %v342
    %v2408 = vmul.f32 %v2107, %v344
    %v2409 = vmul.f32 %v2112, %v346
    %v2410 = vmul.f32 %v2182, %v348
    %v2411 = vmul.f32 %v2187, %v350
    %v2412 = vmul.f32 %v2192, %v352
    %v2413 = vmul.f32 %v2197, %v354
    %v2414 = vmul.f32 %v2202, %v356
    %v2415 = vmul.f32 %v2272, %v358
    %v2416 = vmul.f32 %v2277, %v360
    %v2417 = vmul.f32 %v2282, %v362
    %v2418 = vmul.f32 %v2287, %v364
    %v2419 = vmul.f32 %v2292, %v366
    %v2420 = vmul.f32 %v2362, %v368
    %v2421 = vmul.f32 %v2367, %v370
    %v2422 = vmul.f32 %v2372, %v372
    %v2423 = vmul.f32 %v2377, %v374
    %v2424 = vmul.f32 %v2382, %v376
    %v2425 = vld [vmem:[#allocation8] sm:$0xff]
    %v2426 = vld [vmem:[#allocation8 + $0x8] sm:$0xff]
    %v2427 = vld [vmem:[#allocation8 + $0x10] sm:$0xff]
    %v2428 = vld [vmem:[#allocation8 + $0x18] sm:$0xff]
    %v2429 = vld [vmem:[#allocation8 + $0x20] sm:$0xff]
    %v2430 = vld [vmem:[#allocation8 + $0x28] sm:$0xff]
    %v2431 = vld [vmem:[#allocation8 + $0x30] sm:$0xff]
    %v2432 = vld [vmem:[#allocation8 + $0x38] sm:$0xff]
    %vm2433 = vcmask 523264
    %v2435 = vsel %vm2433, %v2385, 0
    %v2438 = vsel %vm2433, %v2386, 0
    %v2441 = vsel %vm2433, %v2387, 0
    %v2444 = vsel %vm2433, %v2388, 0
    %v2447 = vsel %vm2433, %v2389, 0
    %v2450 = vsel %vm2433, %v2390, 0
    %v2453 = vsel %vm2433, %v2391, 0
    %v2456 = vsel %vm2433, %v2392, 0
    %v2459 = vsel %vm2433, %v2393, 0
    %v2462 = vsel %vm2433, %v2394, 0
    %v2465 = vsel %vm2433, %v2395, 0
    %v2468 = vsel %vm2433, %v2396, 0
    %v2471 = vsel %vm2433, %v2397, 0
    %v2474 = vsel %vm2433, %v2398, 0
    %v2477 = vsel %vm2433, %v2399, 0
    %v2480 = vsel %vm2433, %v2400, 0
    %v2483 = vsel %vm2433, %v2401, 0
    %v2486 = vsel %vm2433, %v2402, 0
    %v2489 = vsel %vm2433, %v2403, 0
    %v2492 = vsel %vm2433, %v2404, 0
    %v2495 = vsel %vm2433, %v2405, 0
    %v2498 = vsel %vm2433, %v2406, 0
    %v2501 = vsel %vm2433, %v2407, 0
    %v2504 = vsel %vm2433, %v2408, 0
    %v2507 = vsel %vm2433, %v2409, 0
    %v2510 = vsel %vm2433, %v2410, 0
    %v2513 = vsel %vm2433, %v2411, 0
    %v2516 = vsel %vm2433, %v2412, 0
    %v2519 = vsel %vm2433, %v2413, 0
    %v2522 = vsel %vm2433, %v2414, 0
    %v2525 = vsel %vm2433, %v2415, 0
    %v2528 = vsel %vm2433, %v2416, 0
    %v2531 = vsel %vm2433, %v2417, 0
    %v2534 = vsel %vm2433, %v2418, 0
    %v2537 = vsel %vm2433, %v2419, 0
    %v2540 = vsel %vm2433, %v2420, 0
    %v2543 = vsel %vm2433, %v2421, 0
    %v2546 = vsel %vm2433, %v2422, 0
    %v2549 = vsel %vm2433, %v2423, 0
    %v2552 = vsel %vm2433, %v2424, 0
    %2554 = vmatprep.subr.mxu0 0.0
    %2555 = vmatpush1.msra.mxu0 %v2425
    %2556 = vmatprep.subr.mxu0 0.0
    %2557 = vmatpush1.msra.mxu0 %v2426
    %2558 = vmatprep.subr.mxu0 0.0
    %2559 = vmatpush1.msra.mxu0 %v2427
    %2560 = vmatprep.subr.mxu0 0.0
    %2561 = vmatpush1.msra.mxu0 %v2428
    %2562 = vmatprep.subr.mxu0 0.0
    %2563 = vmatpush1.msra.mxu0 %v2429
    %2564 = vmatprep.subr.mxu0 0.0
    %2565 = vmatpush1.msra.mxu0 %v2430
    %2566 = vmatprep.subr.mxu0 0.0
    %2567 = vmatpush1.msra.mxu0 %v2431
    %2568 = vmatprep.subr.mxu0 0.0
    %2569 = vmatpush1.msra.mxu0 %v2432
    %2570 = vmatprep.subr.mxu0 0.0
    %2571 = vmatpush1.msra.mxu0 0.0
    %2572 = vmatprep.subr.mxu0 0.0
    %2573 = vmatpush1.msra.mxu0 0.0
    %2574 = vmatprep.subr.mxu0 0.0
    %2575 = vmatpush1.msra.mxu0 0.0
    %2576 = vmatprep.subr.mxu0 0.0
    %2577 = vmatpush1.msra.mxu0 0.0
    %2578 = vmatprep.subr.mxu0 0.0
    %2579 = vmatpush1.msra.mxu0 0.0
    %2580 = vmatprep.subr.mxu0 0.0
    %2581 = vmatpush1.msra.mxu0 0.0
    %2582 = vmatprep.subr.mxu0 0.0
    %2583 = vmatpush1.msra.mxu0 0.0
    %2584 = vmatprep.subr.mxu0 0.0
    %2585 = vmatpush1.msra.mxu0 0.0
    %2586 = vmatprep.subr.mxu0 0.0
    %2587 = vmatpush1.msra.mxu0 0.0
    %2588 = vmatprep.subr.mxu0 0.0
    %2589 = vmatpush1.msra.mxu0 0.0
    %2590 = vmatprep.subr.mxu0 0.0
    %2591 = vmatpush1.msra.mxu0 0.0
    %2592 = vmatprep.subr.mxu0 0.0
    %2593 = vmatpush1.msra.mxu0 0.0
    %2594 = vmatprep.subr.mxu0 0.0
    %2595 = vmatpush1.msra.mxu0 0.0
    %2596 = vmatprep.subr.mxu0 0.0
    %2597 = vmatpush1.msra.mxu0 0.0
    %2598 = vmatprep.subr.mxu0 0.0
    %2599 = vmatpush1.msra.mxu0 0.0
    %2600 = vmatprep.subr.mxu0 0.0
    %2601 = vmatpush1.msra.mxu0 0.0
    %2602 = vmatprep.subr.mxu0 0.0
    %2603 = vmatpush1.msra.mxu0 0.0
    %2604 = vmatprep.subr.mxu0 0.0
    %2605 = vmatpush1.msra.mxu0 0.0
    %2606 = vmatprep.subr.mxu0 0.0
    %2607 = vmatpush1.msra.mxu0 0.0
    %2608 = vmatprep.subr.mxu0 0.0
    %2609 = vmatpush1.msra.mxu0 0.0
    %2610 = vmatprep.subr.mxu0 0.0
    %2611 = vmatpush1.msra.mxu0 0.0
    %2612 = vmatprep.subr.mxu0 0.0
    %2613 = vmatpush1.msra.mxu0 0.0
    %2614 = vmatprep.subr.mxu0 0.0
    %2615 = vmatpush1.msra.mxu0 0.0
    %2616 = vmatprep.subr.mxu0 0.0
    %2617 = vmatpush1.msra.mxu0 0.0
    %2618 = vmatprep.mubr.f32.mxu0 0.0
    %2619 = vmatmul.mubr.f32.gmra.mrb[0].mxu0 %v2435
    %v2620 = vpop.f32.mrb[0].mxu0
    %v2621 = vadd.f32 0.0, %v2620
    %v2622 = vpop.f32.mrb[0].mxu0
    %2623 = vmatprep.mubr.f32.mxu0 0.0
    %2624 = vmatmul.mubr.f32.gmra.mrb[0].mxu0 %v2438
    %v2625 = vpop.f32.mrb[0].mxu0
    %v2626 = vadd.f32 0.0, %v2625
    %v2627 = vpop.f32.mrb[0].mxu0
    %2628 = vmatprep.mubr.f32.mxu0 0.0
    %2629 = vmatmul.mubr.f32.gmra.mrb[0].mxu0 %v2441
    %v2630 = vpop.f32.mrb[0].mxu0
    %v2631 = vadd.f32 0.0, %v2630
    %v2632 = vpop.f32.mrb[0].mxu0
    %2633 = vmatprep.mubr.f32.mxu0 0.0
    %2634 = vmatmul.mubr.f32.gmra.mrb[0].mxu0 %v2444
    %v2635 = vpop.f32.mrb[0].mxu0
    %v2636 = vadd.f32 0.0, %v2635
    %v2637 = vpop.f32.mrb[0].mxu0
    %2638 = vmatprep.mubr.f32.mxu0 0.0
    %2639 = vmatmul.mubr.f32.gmra.mrb[0].mxu0 %v2447
    %v2640 = vpop.f32.mrb[0].mxu0
    %v2641 = vadd.f32 0.0, %v2640
    %v2642 = vpop.f32.mrb[0].mxu0
    %2643 = vmatprep.mubr.f32.mxu0 0.0
    %2644 = vmatmul.mubr.f32.gmra.mrb[0].mxu0 %v2450
    %v2645 = vpop.f32.mrb[0].mxu0
    %v2646 = vadd.f32 0.0, %v2645
    %v2647 = vpop.f32.mrb[0].mxu0
    %2648 = vmatprep.mubr.f32.mxu0 0.0
    %2649 = vmatmul.mubr.f32.gmra.mrb[0].mxu0 %v2453
    %v2650 = vpop.f32.mrb[0].mxu0
    %v2651 = vadd.f32 0.0, %v2650
    %v2652 = vpop.f32.mrb[0].mxu0
    %2653 = vmatprep.mubr.f32.mxu0 0.0
    %2654 = vmatmul.mubr.f32.gmra.mrb[0].mxu0 %v2456
    %v2655 = vpop.f32.mrb[0].mxu0
    %v2656 = vadd.f32 0.0, %v2655
    %v2657 = vpop.f32.mrb[0].mxu0
    %2658 = vmatprep.mubr.f32.mxu0 0.0
    %2659 = vmatmul.mubr.f32.gmra.mrb[0].mxu0 %v2459
    %v2660 = vpop.f32.mrb[0].mxu0
    %v2661 = vadd.f32 0.0, %v2660
    %v2662 = vpop.f32.mrb[0].mxu0
    %2663 = vmatprep.mubr.f32.mxu0 0.0
    %2664 = vmatmul.mubr.f32.gmra.mrb[0].mxu0 %v2462
    %v2665 = vpop.f32.mrb[0].mxu0
    %v2666 = vadd.f32 0.0, %v2665
    %v2667 = vpop.f32.mrb[0].mxu0
    %2668 = vmatprep.mubr.f32.mxu0 0.0
    %2669 = vmatmul.mubr.f32.gmra.mrb[0].mxu0 %v2465
    %v2670 = vpop.f32.mrb[0].mxu0
    %v2671 = vadd.f32 0.0, %v2670
    %v2672 = vpop.f32.mrb[0].mxu0
    %2673 = vmatprep.mubr.f32.mxu0 0.0
    %2674 = vmatmul.mubr.f32.gmra.mrb[0].mxu0 %v2468
    %v2675 = vpop.f32.mrb[0].mxu0
    %v2676 = vadd.f32 0.0, %v2675
    %v2677 = vpop.f32.mrb[0].mxu0
    %2678 = vmatprep.mubr.f32.mxu0 0.0
    %2679 = vmatmul.mubr.f32.gmra.mrb[0].mxu0 %v2471
    %v2680 = vpop.f32.mrb[0].mxu0
    %v2681 = vadd.f32 0.0, %v2680
    %v2682 = vpop.f32.mrb[0].mxu0
    %2683 = vmatprep.mubr.f32.mxu0 0.0
    %2684 = vmatmul.mubr.f32.gmra.mrb[0].mxu0 %v2474
    %v2685 = vpop.f32.mrb[0].mxu0
    %v2686 = vadd.f32 0.0, %v2685
    %v2687 = vpop.f32.mrb[0].mxu0
    %2688 = vmatprep.mubr.f32.mxu0 0.0
    %2689 = vmatmul.mubr.f32.gmra.mrb[0].mxu0 %v2477
    %v2690 = vpop.f32.mrb[0].mxu0
    %v2691 = vadd.f32 0.0, %v2690
    %v2692 = vpop.f32.mrb[0].mxu0
    %2693 = vmatprep.mubr.f32.mxu0 0.0
    %2694 = vmatmul.mubr.f32.gmra.mrb[0].mxu0 %v2480
    %v2695 = vpop.f32.mrb[0].mxu0
    %v2696 = vadd.f32 0.0, %v2695
    %v2697 = vpop.f32.mrb[0].mxu0
    %2698 = vmatprep.mubr.f32.mxu0 0.0
    %2699 = vmatmul.mubr.f32.gmra.mrb[0].mxu0 %v2483
    %v2700 = vpop.f32.mrb[0].mxu0
    %v2701 = vadd.f32 0.0, %v2700
    %v2702 = vpop.f32.mrb[0].mxu0
    %2703 = vmatprep.mubr.f32.mxu0 0.0
    %2704 = vmatmul.mubr.f32.gmra.mrb[0].mxu0 %v2486
    %v2705 = vpop.f32.mrb[0].mxu0
    %v2706 = vadd.f32 0.0, %v2705
    %v2707 = vpop.f32.mrb[0].mxu0
    %2708 = vmatprep.mubr.f32.mxu0 0.0
    %2709 = vmatmul.mubr.f32.gmra.mrb[0].mxu0 %v2489
    %v2710 = vpop.f32.mrb[0].mxu0
    %v2711 = vadd.f32 0.0, %v2710
    %v2712 = vpop.f32.mrb[0].mxu0
    %2713 = vmatprep.mubr.f32.mxu0 0.0
    %2714 = vmatmul.mubr.f32.gmra.mrb[0].mxu0 %v2492
    %v2715 = vpop.f32.mrb[0].mxu0
    %v2716 = vadd.f32 0.0, %v2715
    %v2717 = vpop.f32.mrb[0].mxu0
    %2718 = vmatprep.mubr.f32.mxu0 0.0
    %2719 = vmatmul.mubr.f32.gmra.mrb[0].mxu0 %v2495
    %v2720 = vpop.f32.mrb[0].mxu0
    %v2721 = vadd.f32 0.0, %v2720
    %v2722 = vpop.f32.mrb[0].mxu0
    %2723 = vmatprep.mubr.f32.mxu0 0.0
    %2724 = vmatmul.mubr.f32.gmra.mrb[0].mxu0 %v2498
    %v2725 = vpop.f32.mrb[0].mxu0
    %v2726 = vadd.f32 0.0, %v2725
    %v2727 = vpop.f32.mrb[0].mxu0
    %2728 = vmatprep.mubr.f32.mxu0 0.0
    %2729 = vmatmul.mubr.f32.gmra.mrb[0].mxu0 %v2501
    %v2730 = vpop.f32.mrb[0].mxu0
    %v2731 = vadd.f32 0.0, %v2730
    %v2732 = vpop.f32.mrb[0].mxu0
    %2733 = vmatprep.mubr.f32.mxu0 0.0
    %2734 = vmatmul.mubr.f32.gmra.mrb[0].mxu0 %v2504
    %v2735 = vpop.f32.mrb[0].mxu0
    %v2736 = vadd.f32 0.0, %v2735
    %v2737 = vpop.f32.mrb[0].mxu0
    %2738 = vmatprep.mubr.f32.mxu0 0.0
    %2739 = vmatmul.mubr.f32.gmra.mrb[0].mxu0 %v2507
    %v2740 = vpop.f32.mrb[0].mxu0
    %v2741 = vadd.f32 0.0, %v2740
    %v2742 = vpop.f32.mrb[0].mxu0
    %2743 = vmatprep.mubr.f32.mxu0 0.0
    %2744 = vmatmul.mubr.f32.gmra.mrb[0].mxu0 %v2510
    %v2745 = vpop.f32.mrb[0].mxu0
    %v2746 = vadd.f32 0.0, %v2745
    %v2747 = vpop.f32.mrb[0].mxu0
    %2748 = vmatprep.mubr.f32.mxu0 0.0
    %2749 = vmatmul.mubr.f32.gmra.mrb[0].mxu0 %v2513
    %v2750 = vpop.f32.mrb[0].mxu0
    %v2751 = vadd.f32 0.0, %v2750
    %v2752 = vpop.f32.mrb[0].mxu0
    %2753 = vmatprep.mubr.f32.mxu0 0.0
    %2754 = vmatmul.mubr.f32.gmra.mrb[0].mxu0 %v2516
    %v2755 = vpop.f32.mrb[0].mxu0
    %v2756 = vadd.f32 0.0, %v2755
    %v2757 = vpop.f32.mrb[0].mxu0
    %2758 = vmatprep.mubr.f32.mxu0 0.0
    %2759 = vmatmul.mubr.f32.gmra.mrb[0].mxu0 %v2519
    %v2760 = vpop.f32.mrb[0].mxu0
    %v2761 = vadd.f32 0.0, %v2760
    %v2762 = vpop.f32.mrb[0].mxu0
    %2763 = vmatprep.mubr.f32.mxu0 0.0
    %2764 = vmatmul.mubr.f32.gmra.mrb[0].mxu0 %v2522
    %v2765 = vpop.f32.mrb[0].mxu0
    %v2766 = vadd.f32 0.0, %v2765
    %v2767 = vpop.f32.mrb[0].mxu0
    %2768 = vmatprep.mubr.f32.mxu0 0.0
    %2769 = vmatmul.mubr.f32.gmra.mrb[0].mxu0 %v2525
    %v2770 = vpop.f32.mrb[0].mxu0
    %v2771 = vadd.f32 0.0, %v2770
    %v2772 = vpop.f32.mrb[0].mxu0
    %2773 = vmatprep.mubr.f32.mxu0 0.0
    %2774 = vmatmul.mubr.f32.gmra.mrb[0].mxu0 %v2528
    %v2775 = vpop.f32.mrb[0].mxu0
    %v2776 = vadd.f32 0.0, %v2775
    %v2777 = vpop.f32.mrb[0].mxu0
    %2778 = vmatprep.mubr.f32.mxu0 0.0
    %2779 = vmatmul.mubr.f32.gmra.mrb[0].mxu0 %v2531
    %v2780 = vpop.f32.mrb[0].mxu0
    %v2781 = vadd.f32 0.0, %v2780
    %v2782 = vpop.f32.mrb[0].mxu0
    %2783 = vmatprep.mubr.f32.mxu0 0.0
    %2784 = vmatmul.mubr.f32.gmra.mrb[0].mxu0 %v2534
    %v2785 = vpop.f32.mrb[0].mxu0
    %v2786 = vadd.f32 0.0, %v2785
    %v2787 = vpop.f32.mrb[0].mxu0
    %2788 = vmatprep.mubr.f32.mxu0 0.0
    %2789 = vmatmul.mubr.f32.gmra.mrb[0].mxu0 %v2537
    %v2790 = vpop.f32.mrb[0].mxu0
    %v2791 = vadd.f32 0.0, %v2790
    %v2792 = vpop.f32.mrb[0].mxu0
    %2793 = vmatprep.mubr.f32.mxu0 0.0
    %2794 = vmatmul.mubr.f32.gmra.mrb[0].mxu0 %v2540
    %v2795 = vpop.f32.mrb[0].mxu0
    %v2796 = vadd.f32 0.0, %v2795
    %v2797 = vpop.f32.mrb[0].mxu0
    %2798 = vmatprep.mubr.f32.mxu0 0.0
    %2799 = vmatmul.mubr.f32.gmra.mrb[0].mxu0 %v2543
    %v2800 = vpop.f32.mrb[0].mxu0
    %v2801 = vadd.f32 0.0, %v2800
    %v2802 = vpop.f32.mrb[0].mxu0
    %2803 = vmatprep.mubr.f32.mxu0 0.0
    %2804 = vmatmul.mubr.f32.gmra.mrb[0].mxu0 %v2546
    %v2805 = vpop.f32.mrb[0].mxu0
    %v2806 = vadd.f32 0.0, %v2805
    %v2807 = vpop.f32.mrb[0].mxu0
    %2808 = vmatprep.mubr.f32.mxu0 0.0
    %2809 = vmatmul.mubr.f32.gmra.mrb[0].mxu0 %v2549
    %v2810 = vpop.f32.mrb[0].mxu0
    %v2811 = vadd.f32 0.0, %v2810
    %v2812 = vpop.f32.mrb[0].mxu0
    %2813 = vmatprep.mubr.f32.mxu0 0.0
    %2814 = vmatmul.mubr.f32.gmra.mrb[0].mxu0 %v2552
    %v2815 = vpop.f32.mrb[0].mxu0
    %v2816 = vadd.f32 0.0, %v2815
    %v2817 = vpop.f32.mrb[0].mxu0
    %2818 = vdwg.mxu0
    %v2819 = vadd.f32 %v1427, %v2621
    %v2820 = vadd.f32 %v1432, %v2626
    %v2821 = vadd.f32 %v1437, %v2631
    %v2822 = vadd.f32 %v1442, %v2636
    %v2823 = vadd.f32 %v1447, %v2641
    %v2824 = vadd.f32 %v1452, %v2646
    %v2825 = vadd.f32 %v1457, %v2651
    %v2826 = vadd.f32 %v1462, %v2656
    %v2827 = vadd.f32 %v1467, %v2661
    %v2828 = vadd.f32 %v1472, %v2666
    %v2829 = vadd.f32 %v1477, %v2671
    %v2830 = vadd.f32 %v1482, %v2676
    %v2831 = vadd.f32 %v1487, %v2681
    %v2832 = vadd.f32 %v1492, %v2686
    %v2833 = vadd.f32 %v1497, %v2691
    %v2834 = vadd.f32 %v1502, %v2696
    %v2835 = vadd.f32 %v1507, %v2701
    %v2836 = vadd.f32 %v1512, %v2706
    %v2837 = vadd.f32 %v1517, %v2711
    %v2838 = vadd.f32 %v1522, %v2716
    %v2839 = vadd.f32 %v1527, %v2721
    %v2840 = vadd.f32 %v1532, %v2726
    %v2841 = vadd.f32 %v1537, %v2731
    %v2842 = vadd.f32 %v1542, %v2736
    %v2843 = vadd.f32 %v1547, %v2741
    %v2844 = vadd.f32 %v1552, %v2746
    %v2845 = vadd.f32 %v1557, %v2751
    %v2846 = vadd.f32 %v1562, %v2756
    %v2847 = vadd.f32 %v1567, %v2761
    %v2848 = vadd.f32 %v1572, %v2766
    %v2849 = vadd.f32 %v1577, %v2771
    %v2850 = vadd.f32 %v1582, %v2776
    %v2851 = vadd.f32 %v1587, %v2781
    %v2852 = vadd.f32 %v1592, %v2786
    %v2853 = vadd.f32 %v1597, %v2791
    %v2854 = vadd.f32 %v1602, %v2796
    %v2855 = vadd.f32 %v1607, %v2801
    %v2856 = vadd.f32 %v1612, %v2806
    %v2857 = vadd.f32 %v1617, %v2811
    %v2858 = vadd.f32 %v1622, %v2816
    %v2859 = vmax.f32 %v2819, 0.0
    %v2860 = vmax.f32 %v2820, 0.0
    %v2861 = vmax.f32 %v2821, 0.0
    %v2862 = vmax.f32 %v2822, 0.0
    %v2863 = vmax.f32 %v2823, 0.0
    %v2864 = vmax.f32 %v2824, 0.0
    %v2865 = vmax.f32 %v2825, 0.0
    %v2866 = vmax.f32 %v2826, 0.0
    %v2867 = vmax.f32 %v2827, 0.0
    %v2868 = vmax.f32 %v2828, 0.0
    %v2869 = vmax.f32 %v2829, 0.0
    %v2870 = vmax.f32 %v2830, 0.0
    %v2871 = vmax.f32 %v2831, 0.0
    %v2872 = vmax.f32 %v2832, 0.0
    %v2873 = vmax.f32 %v2833, 0.0
    %v2874 = vmax.f32 %v2834, 0.0
    %v2875 = vmax.f32 %v2835, 0.0
    %v2876 = vmax.f32 %v2836, 0.0
    %v2877 = vmax.f32 %v2837, 0.0
    %v2878 = vmax.f32 %v2838, 0.0
    %v2879 = vmax.f32 %v2839, 0.0
    %v2880 = vmax.f32 %v2840, 0.0
    %v2881 = vmax.f32 %v2841, 0.0
    %v2882 = vmax.f32 %v2842, 0.0
    %v2883 = vmax.f32 %v2843, 0.0
    %v2884 = vmax.f32 %v2844, 0.0
    %v2885 = vmax.f32 %v2845, 0.0
    %v2886 = vmax.f32 %v2846, 0.0
    %v2887 = vmax.f32 %v2847, 0.0
    %v2888 = vmax.f32 %v2848, 0.0
    %v2889 = vmax.f32 %v2849, 0.0
    %v2890 = vmax.f32 %v2850, 0.0
    %v2891 = vmax.f32 %v2851, 0.0
    %v2892 = vmax.f32 %v2852, 0.0
    %v2893 = vmax.f32 %v2853, 0.0
    %v2894 = vmax.f32 %v2854, 0.0
    %v2895 = vmax.f32 %v2855, 0.0
    %v2896 = vmax.f32 %v2856, 0.0
    %v2897 = vmax.f32 %v2857, 0.0
    %v2898 = vmax.f32 %v2858, 0.0
    %v2899 = vadd.f32 %v2859, %v136
    %v2900 = vadd.f32 %v2860, %v137
    %v2901 = vadd.f32 %v2861, %v138
    %v2902 = vadd.f32 %v2862, %v139
    %v2903 = vadd.f32 %v2863, %v140
    %v2904 = vadd.f32 %v2864, %v141
    %v2905 = vadd.f32 %v2865, %v142
    %v2906 = vadd.f32 %v2866, %v143
    %v2907 = vadd.f32 %v2867, %v144
    %v2908 = vadd.f32 %v2868, %v145
    %v2909 = vadd.f32 %v2869, %v146
    %v2910 = vadd.f32 %v2870, %v147
    %v2911 = vadd.f32 %v2871, %v148
    %v2912 = vadd.f32 %v2872, %v149
    %v2913 = vadd.f32 %v2873, %v150
    %v2914 = vadd.f32 %v2874, %v151
    %v2915 = vadd.f32 %v2875, %v152
    %v2916 = vadd.f32 %v2876, %v153
    %v2917 = vadd.f32 %v2877, %v154
    %v2918 = vadd.f32 %v2878, %v155
    %v2919 = vadd.f32 %v2879, %v156
    %v2920 = vadd.f32 %v2880, %v157
    %v2921 = vadd.f32 %v2881, %v158
    %v2922 = vadd.f32 %v2882, %v159
    %v2923 = vadd.f32 %v2883, %v160
    %v2924 = vadd.f32 %v2884, %v161
    %v2925 = vadd.f32 %v2885, %v162
    %v2926 = vadd.f32 %v2886, %v163
    %v2927 = vadd.f32 %v2887, %v164
    %v2928 = vadd.f32 %v2888, %v165
    %v2929 = vadd.f32 %v2889, %v166
    %v2930 = vadd.f32 %v2890, %v167
    %v2931 = vadd.f32 %v2891, %v168
    %v2932 = vadd.f32 %v2892, %v169
    %v2933 = vadd.f32 %v2893, %v170
    %v2934 = vadd.f32 %v2894, %v171
    %v2935 = vadd.f32 %v2895, %v172
    %v2936 = vadd.f32 %v2896, %v173
    %v2937 = vadd.f32 %v2897, %v174
    %v2938 = vadd.f32 %v2898, %v175
    %v2939 = vld [vmem:[#allocation10] sm:$0xff]
    %v2940 = vld [vmem:[#allocation10 + $0x8] sm:$0xff]
    %v2941 = vld [vmem:[#allocation10 + $0x10] sm:$0xff]
    %v2942 = vld [vmem:[#allocation10 + $0x18] sm:$0xff]
    %v2943 = vld [vmem:[#allocation10 + $0x20] sm:$0xff]
    %v2944 = vld [vmem:[#allocation10 + $0x28] sm:$0xff]
    %v2945 = vld [vmem:[#allocation10 + $0x30] sm:$0xff]
    %v2946 = vld [vmem:[#allocation10 + $0x38] sm:$0xff]
    %v2947 = vld [vmem:[#allocation10 + $0x40] sm:$0xff]
    %v2948 = vld [vmem:[#allocation10 + $0x48] sm:$0xff]
    %v2949 = vld [vmem:[#allocation10 + $0x50] sm:$0xff]
    %v2950 = vld [vmem:[#allocation10 + $0x58] sm:$0xff]
    %v2951 = vld [vmem:[#allocation10 + $0x60] sm:$0xff]
    %v2952 = vld [vmem:[#allocation10 + $0x68] sm:$0xff]
    %v2953 = vld [vmem:[#allocation10 + $0x70] sm:$0xff]
    %v2954 = vld [vmem:[#allocation10 + $0x78] sm:$0xff]
    %v2956 = vlaneseq
    %v2957 = vshrl.u32 %v2956, 7
    %v2958 = vsub.s32 0, %v2957
    %v2959 = vrot.slane %v95, %v2958
    %2961 = vmatprep.subr.mxu0 0.0
    %2962 = vmatpush1.msra.mxu0 %v2939
    %2963 = vmatprep.subr.mxu0 0.0
    %2964 = vmatpush1.msra.mxu0 %v2940
    %2965 = vmatprep.subr.mxu0 0.0
    %2966 = vmatpush1.msra.mxu0 %v2941
    %2967 = vmatprep.subr.mxu0 0.0
    %2968 = vmatpush1.msra.mxu0 %v2942
    %2969 = vmatprep.subr.mxu0 0.0
    %2970 = vmatpush1.msra.mxu0 %v2943
    %2971 = vmatprep.subr.mxu0 0.0
    %2972 = vmatpush1.msra.mxu0 %v2944
    %2973 = vmatprep.subr.mxu0 0.0
    %2974 = vmatpush1.msra.mxu0 %v2945
    %2975 = vmatprep.subr.mxu0 0.0
    %2976 = vmatpush1.msra.mxu0 %v2946
    %2977 = vmatprep.subr.mxu0 0.0
    %2978 = vmatpush1.msra.mxu0 %v2947
    %2979 = vmatprep.subr.mxu0 0.0
    %2980 = vmatpush1.msra.mxu0 %v2948
    %2981 = vmatprep.subr.mxu0 0.0
    %2982 = vmatpush1.msra.mxu0 %v2949
    %2983 = vmatprep.subr.mxu0 0.0
    %2984 = vmatpush1.msra.mxu0 %v2950
    %2985 = vmatprep.subr.mxu0 0.0
    %2986 = vmatpush1.msra.mxu0 %v2951
    %2987 = vmatprep.subr.mxu0 0.0
    %2988 = vmatpush1.msra.mxu0 %v2952
    %2989 = vmatprep.subr.mxu0 0.0
    %2990 = vmatpush1.msra.mxu0 %v2953
    %2991 = vmatprep.subr.mxu0 0.0
    %2992 = vmatpush1.msra.mxu0 %v2954
    %2993 = vmatprep.subr.mxu0 0.0
    %2994 = vmatpush1.msra.mxu0 0.0
    %2995 = vmatprep.subr.mxu0 0.0
    %2996 = vmatpush1.msra.mxu0 0.0
    %2997 = vmatprep.subr.mxu0 0.0
    %2998 = vmatpush1.msra.mxu0 0.0
    %2999 = vmatprep.subr.mxu0 0.0
    %3000 = vmatpush1.msra.mxu0 0.0
    %3001 = vmatprep.subr.mxu0 0.0
    %3002 = vmatpush1.msra.mxu0 0.0
    %3003 = vmatprep.subr.mxu0 0.0
    %3004 = vmatpush1.msra.mxu0 0.0
    %3005 = vmatprep.subr.mxu0 0.0
    %3006 = vmatpush1.msra.mxu0 0.0
    %3007 = vmatprep.subr.mxu0 0.0
    %3008 = vmatpush1.msra.mxu0 0.0
    %3009 = vmatprep.subr.mxu0 0.0
    %3010 = vmatpush1.msra.mxu0 0.0
    %3011 = vmatprep.subr.mxu0 0.0
    %3012 = vmatpush1.msra.mxu0 0.0
    %3013 = vmatprep.subr.mxu0 0.0
    %3014 = vmatpush1.msra.mxu0 0.0
    %3015 = vmatprep.subr.mxu0 0.0
    %3016 = vmatpush1.msra.mxu0 0.0
    %3017 = vmatprep.subr.mxu0 0.0
    %3018 = vmatpush1.msra.mxu0 0.0
    %3019 = vmatprep.subr.mxu0 0.0
    %3020 = vmatpush1.msra.mxu0 0.0
    %3021 = vmatprep.subr.mxu0 0.0
    %3022 = vmatpush1.msra.mxu0 0.0
    %3023 = vmatprep.subr.mxu0 0.0
    %3024 = vmatpush1.msra.mxu0 0.0
    %3025 = vmatprep.mubr.f32.mxu0 0.0
    %3026 = vmatmul.mubr.f32.gmra.mrb[0].mxu0 %v2899
    %v3027 = vpop.f32.mrb[0].mxu0
    %v3028 = vadd.f32 %v2959, %v3027
    %v3029 = vpop.f32.mrb[0].mxu0
    %3030 = vmatprep.mubr.f32.mxu0 0.0
    %3031 = vmatmul.mubr.f32.gmra.mrb[0].mxu0 %v2900
    %v3032 = vpop.f32.mrb[0].mxu0
    %v3033 = vadd.f32 %v2959, %v3032
    %v3034 = vpop.f32.mrb[0].mxu0
    %3035 = vmatprep.mubr.f32.mxu0 0.0
    %3036 = vmatmul.mubr.f32.gmra.mrb[0].mxu0 %v2901
    %v3037 = vpop.f32.mrb[0].mxu0
    %v3038 = vadd.f32 %v2959, %v3037
    %v3039 = vpop.f32.mrb[0].mxu0
    %3040 = vmatprep.mubr.f32.mxu0 0.0
    %3041 = vmatmul.mubr.f32.gmra.mrb[0].mxu0 %v2902
    %v3042 = vpop.f32.mrb[0].mxu0
    %v3043 = vadd.f32 %v2959, %v3042
    %v3044 = vpop.f32.mrb[0].mxu0
    %3045 = vmatprep.mubr.f32.mxu0 0.0
    %3046 = vmatmul.mubr.f32.gmra.mrb[0].mxu0 %v2903
    %v3047 = vpop.f32.mrb[0].mxu0
    %v3048 = vadd.f32 %v2959, %v3047
    %v3049 = vpop.f32.mrb[0].mxu0
    %3050 = vmatprep.mubr.f32.mxu0 0.0
    %3051 = vmatmul.mubr.f32.gmra.mrb[0].mxu0 %v2904
    %v3052 = vpop.f32.mrb[0].mxu0
    %v3053 = vadd.f32 %v2959, %v3052
    %v3054 = vpop.f32.mrb[0].mxu0
    %3055 = vmatprep.mubr.f32.mxu0 0.0
    %3056 = vmatmul.mubr.f32.gmra.mrb[0].mxu0 %v2905
    %v3057 = vpop.f32.mrb[0].mxu0
    %v3058 = vadd.f32 %v2959, %v3057
    %v3059 = vpop.f32.mrb[0].mxu0
    %3060 = vmatprep.mubr.f32.mxu0 0.0
    %3061 = vmatmul.mubr.f32.gmra.mrb[0].mxu0 %v2906
    %v3062 = vpop.f32.mrb[0].mxu0
    %v3063 = vadd.f32 %v2959, %v3062
    %v3064 = vpop.f32.mrb[0].mxu0
    %3065 = vmatprep.mubr.f32.mxu0 0.0
    %3066 = vmatmul.mubr.f32.gmra.mrb[0].mxu0 %v2907
    %v3067 = vpop.f32.mrb[0].mxu0
    %v3068 = vadd.f32 %v2959, %v3067
    %v3069 = vpop.f32.mrb[0].mxu0
    %3070 = vmatprep.mubr.f32.mxu0 0.0
    %3071 = vmatmul.mubr.f32.gmra.mrb[0].mxu0 %v2908
    %v3072 = vpop.f32.mrb[0].mxu0
    %v3073 = vadd.f32 %v2959, %v3072
    %v3074 = vpop.f32.mrb[0].mxu0
    %3075 = vmatprep.mubr.f32.mxu0 0.0
    %3076 = vmatmul.mubr.f32.gmra.mrb[0].mxu0 %v2909
    %v3077 = vpop.f32.mrb[0].mxu0
    %v3078 = vadd.f32 %v2959, %v3077
    %v3079 = vpop.f32.mrb[0].mxu0
    %3080 = vmatprep.mubr.f32.mxu0 0.0
    %3081 = vmatmul.mubr.f32.gmra.mrb[0].mxu0 %v2910
    %v3082 = vpop.f32.mrb[0].mxu0
    %v3083 = vadd.f32 %v2959, %v3082
    %v3084 = vpop.f32.mrb[0].mxu0
    %3085 = vmatprep.mubr.f32.mxu0 0.0
    %3086 = vmatmul.mubr.f32.gmra.mrb[0].mxu0 %v2911
    %v3087 = vpop.f32.mrb[0].mxu0
    %v3088 = vadd.f32 %v2959, %v3087
    %v3089 = vpop.f32.mrb[0].mxu0
    %3090 = vmatprep.mubr.f32.mxu0 0.0
    %3091 = vmatmul.mubr.f32.gmra.mrb[0].mxu0 %v2912
    %v3092 = vpop.f32.mrb[0].mxu0
    %v3093 = vadd.f32 %v2959, %v3092
    %v3094 = vpop.f32.mrb[0].mxu0
    %3095 = vmatprep.mubr.f32.mxu0 0.0
    %3096 = vmatmul.mubr.f32.gmra.mrb[0].mxu0 %v2913
    %v3097 = vpop.f32.mrb[0].mxu0
    %v3098 = vadd.f32 %v2959, %v3097
    %v3099 = vpop.f32.mrb[0].mxu0
    %3100 = vmatprep.mubr.f32.mxu0 0.0
    %3101 = vmatmul.mubr.f32.gmra.mrb[0].mxu0 %v2914
    %v3102 = vpop.f32.mrb[0].mxu0
    %v3103 = vadd.f32 %v2959, %v3102
    %v3104 = vpop.f32.mrb[0].mxu0
    %3105 = vmatprep.mubr.f32.mxu0 0.0
    %3106 = vmatmul.mubr.f32.gmra.mrb[0].mxu0 %v2915
    %v3107 = vpop.f32.mrb[0].mxu0
    %v3108 = vadd.f32 %v2959, %v3107
    %v3109 = vpop.f32.mrb[0].mxu0
    %3110 = vmatprep.mubr.f32.mxu0 0.0
    %3111 = vmatmul.mubr.f32.gmra.mrb[0].mxu0 %v2916
    %v3112 = vpop.f32.mrb[0].mxu0
    %v3113 = vadd.f32 %v2959, %v3112
    %v3114 = vpop.f32.mrb[0].mxu0
    %3115 = vmatprep.mubr.f32.mxu0 0.0
    %3116 = vmatmul.mubr.f32.gmra.mrb[0].mxu0 %v2917
    %v3117 = vpop.f32.mrb[0].mxu0
    %v3118 = vadd.f32 %v2959, %v3117
    %v3119 = vpop.f32.mrb[0].mxu0
    %3120 = vmatprep.mubr.f32.mxu0 0.0
    %3121 = vmatmul.mubr.f32.gmra.mrb[0].mxu0 %v2918
    %v3122 = vpop.f32.mrb[0].mxu0
    %v3123 = vadd.f32 %v2959, %v3122
    %v3124 = vpop.f32.mrb[0].mxu0
    %3125 = vmatprep.mubr.f32.mxu0 0.0
    %3126 = vmatmul.mubr.f32.gmra.mrb[0].mxu0 %v2919
    %v3127 = vpop.f32.mrb[0].mxu0
    %v3128 = vadd.f32 %v2959, %v3127
    %v3129 = vpop.f32.mrb[0].mxu0
    %3130 = vmatprep.mubr.f32.mxu0 0.0
    %3131 = vmatmul.mubr.f32.gmra.mrb[0].mxu0 %v2920
    %v3132 = vpop.f32.mrb[0].mxu0
    %v3133 = vadd.f32 %v2959, %v3132
    %v3134 = vpop.f32.mrb[0].mxu0
    %3135 = vmatprep.mubr.f32.mxu0 0.0
    %3136 = vmatmul.mubr.f32.gmra.mrb[0].mxu0 %v2921
    %v3137 = vpop.f32.mrb[0].mxu0
    %v3138 = vadd.f32 %v2959, %v3137
    %v3139 = vpop.f32.mrb[0].mxu0
    %3140 = vmatprep.mubr.f32.mxu0 0.0
    %3141 = vmatmul.mubr.f32.gmra.mrb[0].mxu0 %v2922
    %v3142 = vpop.f32.mrb[0].mxu0
    %v3143 = vadd.f32 %v2959, %v3142
    %v3144 = vpop.f32.mrb[0].mxu0
    %3145 = vmatprep.mubr.f32.mxu0 0.0
    %3146 = vmatmul.mubr.f32.gmra.mrb[0].mxu0 %v2923
    %v3147 = vpop.f32.mrb[0].mxu0
    %v3148 = vadd.f32 %v2959, %v3147
    %v3149 = vpop.f32.mrb[0].mxu0
    %3150 = vmatprep.mubr.f32.mxu0 0.0
    %3151 = vmatmul.mubr.f32.gmra.mrb[0].mxu0 %v2924
    %v3152 = vpop.f32.mrb[0].mxu0
    %v3153 = vadd.f32 %v2959, %v3152
    %v3154 = vpop.f32.mrb[0].mxu0
    %3155 = vmatprep.mubr.f32.mxu0 0.0
    %3156 = vmatmul.mubr.f32.gmra.mrb[0].mxu0 %v2925
    %v3157 = vpop.f32.mrb[0].mxu0
    %v3158 = vadd.f32 %v2959, %v3157
    %v3159 = vpop.f32.mrb[0].mxu0
    %3160 = vmatprep.mubr.f32.mxu0 0.0
    %3161 = vmatmul.mubr.f32.gmra.mrb[0].mxu0 %v2926
    %v3162 = vpop.f32.mrb[0].mxu0
    %v3163 = vadd.f32 %v2959, %v3162
    %v3164 = vpop.f32.mrb[0].mxu0
    %3165 = vmatprep.mubr.f32.mxu0 0.0
    %3166 = vmatmul.mubr.f32.gmra.mrb[0].mxu0 %v2927
    %v3167 = vpop.f32.mrb[0].mxu0
    %v3168 = vadd.f32 %v2959, %v3167
    %v3169 = vpop.f32.mrb[0].mxu0
    %3170 = vmatprep.mubr.f32.mxu0 0.0
    %3171 = vmatmul.mubr.f32.gmra.mrb[0].mxu0 %v2928
    %v3172 = vpop.f32.mrb[0].mxu0
    %v3173 = vadd.f32 %v2959, %v3172
    %v3174 = vpop.f32.mrb[0].mxu0
    %3175 = vmatprep.mubr.f32.mxu0 0.0
    %3176 = vmatmul.mubr.f32.gmra.mrb[0].mxu0 %v2929
    %v3177 = vpop.f32.mrb[0].mxu0
    %v3178 = vadd.f32 %v2959, %v3177
    %v3179 = vpop.f32.mrb[0].mxu0
    %3180 = vmatprep.mubr.f32.mxu0 0.0
    %3181 = vmatmul.mubr.f32.gmra.mrb[0].mxu0 %v2930
    %v3182 = vpop.f32.mrb[0].mxu0
    %v3183 = vadd.f32 %v2959, %v3182
    %v3184 = vpop.f32.mrb[0].mxu0
    %3185 = vmatprep.mubr.f32.mxu0 0.0
    %3186 = vmatmul.mubr.f32.gmra.mrb[0].mxu0 %v2931
    %v3187 = vpop.f32.mrb[0].mxu0
    %v3188 = vadd.f32 %v2959, %v3187
    %v3189 = vpop.f32.mrb[0].mxu0
    %3190 = vmatprep.mubr.f32.mxu0 0.0
    %3191 = vmatmul.mubr.f32.gmra.mrb[0].mxu0 %v2932
    %v3192 = vpop.f32.mrb[0].mxu0
    %v3193 = vadd.f32 %v2959, %v3192
    %v3194 = vpop.f32.mrb[0].mxu0
    %3195 = vmatprep.mubr.f32.mxu0 0.0
    %3196 = vmatmul.mubr.f32.gmra.mrb[0].mxu0 %v2933
    %v3197 = vpop.f32.mrb[0].mxu0
    %v3198 = vadd.f32 %v2959, %v3197
    %v3199 = vpop.f32.mrb[0].mxu0
    %3200 = vmatprep.mubr.f32.mxu0 0.0
    %3201 = vmatmul.mubr.f32.gmra.mrb[0].mxu0 %v2934
    %v3202 = vpop.f32.mrb[0].mxu0
    %v3203 = vadd.f32 %v2959, %v3202
    %v3204 = vpop.f32.mrb[0].mxu0
    %3205 = vmatprep.mubr.f32.mxu0 0.0
    %3206 = vmatmul.mubr.f32.gmra.mrb[0].mxu0 %v2935
    %v3207 = vpop.f32.mrb[0].mxu0
    %v3208 = vadd.f32 %v2959, %v3207
    %v3209 = vpop.f32.mrb[0].mxu0
    %3210 = vmatprep.mubr.f32.mxu0 0.0
    %3211 = vmatmul.mubr.f32.gmra.mrb[0].mxu0 %v2936
    %v3212 = vpop.f32.mrb[0].mxu0
    %v3213 = vadd.f32 %v2959, %v3212
    %v3214 = vpop.f32.mrb[0].mxu0
    %3215 = vmatprep.mubr.f32.mxu0 0.0
    %3216 = vmatmul.mubr.f32.gmra.mrb[0].mxu0 %v2937
    %v3217 = vpop.f32.mrb[0].mxu0
    %v3218 = vadd.f32 %v2959, %v3217
    %v3219 = vpop.f32.mrb[0].mxu0
    %3220 = vmatprep.mubr.f32.mxu0 0.0
    %3221 = vmatmul.mubr.f32.gmra.mrb[0].mxu0 %v2938
    %v3222 = vpop.f32.mrb[0].mxu0
    %v3223 = vadd.f32 %v2959, %v3222
    %v3224 = vpop.f32.mrb[0].mxu0
    %3225 = vdwg.mxu0
    %3226 = vst [vmem:[#allocation11] sm:$0xff] %v3028
    %3227 = vst [vmem:[#allocation11 + $0x8] sm:$0xff] %v3033
    %3228 = vst [vmem:[#allocation11 + $0x10] sm:$0xff] %v3038
    %3229 = vst [vmem:[#allocation11 + $0x18] sm:$0xff] %v3043
    %3230 = vst [vmem:[#allocation11 + $0x20] sm:$0xff] %v3048
    %3231 = vst [vmem:[#allocation11 + $0x28] sm:$0xff] %v3053
    %3232 = vst [vmem:[#allocation11 + $0x30] sm:$0xff] %v3058
    %3233 = vst [vmem:[#allocation11 + $0x38] sm:$0xff] %v3063
    %3234 = vst [vmem:[#allocation11 + $0x40] sm:$0xff] %v3068
    %3235 = vst [vmem:[#allocation11 + $0x48] sm:$0xff] %v3073
    %3236 = vst [vmem:[#allocation11 + $0x50] sm:$0xff] %v3078
    %3237 = vst [vmem:[#allocation11 + $0x58] sm:$0xff] %v3083
    %3238 = vst [vmem:[#allocation11 + $0x60] sm:$0xff] %v3088
    %3239 = vst [vmem:[#allocation11 + $0x68] sm:$0xff] %v3093
    %3240 = vst [vmem:[#allocation11 + $0x70] sm:$0xff] %v3098
    %3241 = vst [vmem:[#allocation11 + $0x78] sm:$0xff] %v3103
    %3242 = vst [vmem:[#allocation11 + $0x80] sm:$0xff] %v3108
    %3243 = vst [vmem:[#allocation11 + $0x88] sm:$0xff] %v3113
    %3244 = vst [vmem:[#allocation11 + $0x90] sm:$0xff] %v3118
    %3245 = vst [vmem:[#allocation11 + $0x98] sm:$0xff] %v3123
    %3246 = vst [vmem:[#allocation11 + $0xa0] sm:$0xff] %v3128
    %3247 = vst [vmem:[#allocation11 + $0xa8] sm:$0xff] %v3133
    %3248 = vst [vmem:[#allocation11 + $0xb0] sm:$0xff] %v3138
    %3249 = vst [vmem:[#allocation11 + $0xb8] sm:$0xff] %v3143
    %3250 = vst [vmem:[#allocation11 + $0xc0] sm:$0xff] %v3148
    %3251 = vst [vmem:[#allocation11 + $0xc8] sm:$0xff] %v3153
    %3252 = vst [vmem:[#allocation11 + $0xd0] sm:$0xff] %v3158
    %3253 = vst [vmem:[#allocation11 + $0xd8] sm:$0xff] %v3163
    %3254 = vst [vmem:[#allocation11 + $0xe0] sm:$0xff] %v3168
    %3255 = vst [vmem:[#allocation11 + $0xe8] sm:$0xff] %v3173
    %3256 = vst [vmem:[#allocation11 + $0xf0] sm:$0xff] %v3178
    %3257 = vst [vmem:[#allocation11 + $0xf8] sm:$0xff] %v3183
    %3258 = vst [vmem:[#allocation11 + $0x100] sm:$0xff] %v3188
    %3259 = vst [vmem:[#allocation11 + $0x108] sm:$0xff] %v3193
    %3260 = vst [vmem:[#allocation11 + $0x110] sm:$0xff] %v3198
    %3261 = vst [vmem:[#allocation11 + $0x118] sm:$0xff] %v3203
    %3262 = vst [vmem:[#allocation11 + $0x120] sm:$0xff] %v3208
    %3263 = vst [vmem:[#allocation11 + $0x128] sm:$0xff] %v3213
    %3264 = vst [vmem:[#allocation11 + $0x130] sm:$0xff] %v3218
    %3265 = vst [vmem:[#allocation11 + $0x138] sm:$0xff] %v3223
    // Predicated region
    $region50: #{tpu_custom_call.1} parent=1 // pred_check
      _
    $region51: #{tpu_custom_call.1} parent=1 // pred_check_branch
      %3267 = sbr.rel (0) target = $region53
    $region52: #{tpu_custom_call.1} parent=1 // pred_region
      %s3269 = ssub.s32 5120, 5120
      %3270 = vsyncadd [#allocation4], %s3269
      %s3271 = sshll.u32 [#allocation11], 4
      %s3272 = int_to_ptr.vmem [resolvable:$true] %s3271
      %3277 = dma.vmem_to_hbm [thread:$0]  %s3272, 5120, %s7, [#allocation4], 128, 128, 8
    $region53: #{tpu_custom_call.1} parent=1 // pred_fallthru
      _
    // Predicated region
    $region54: #{tpu_custom_call.1} parent=1 // pred_check
      _
    $region55: #{tpu_custom_call.1} parent=1 // pred_check_branch
      %3279 = sbr.rel (0) target = $region57
    $region56: #{tpu_custom_call.1} parent=1 // pred_region
      %3280 = dma.done [#allocation4], 5120
    $region57: #{tpu_custom_call.1} parent=1 // pred_fallthru
      _
    %3281 = vsyncpa [#allocation3], 1
    %3282 = vsyncpa [#allocation6], 1
    %3283 = vsyncpa [#allocation9], 1
    %3284 = vsyncpa [#allocation4], 1

</llo_original>
